<compile_context>
chip_gen: v7x
topology: tpu7x:2x2x1
jax: 0.10.0
libtpu: 0.0.40
codegen_flags: <defaults>
</compile_context>

<pallas_src>
import functools
import math

import jax
import jax.numpy as jnp
from jax import lax
from jax.experimental import pallas as pl
from jax.experimental.pallas import tpu as pltpu


# ------------------------------ fused kernel ------------------------------ #

def _edsr_fused_kernel(x_ref, w_ref, b_ref, o_ref, r_buf, im_buf, *, H, W, C, depth):
    """Fused EDSR encoder forward for one image, channel-major layout.

    x_ref : (1, C, H*W)    f32   channel-padded input (channels >= n_colors are zero)
    w_ref : (n_conv, C, 9C) bf16 packed conv weights, column index = tap*C + cin
    b_ref : (n_conv, C, 1) f32   biases (res_scale pre-folded into resblock conv2)
    o_ref : (1, C, H*W)    f32   output; also holds the global-skip (head) activation
    r_buf : (C, H*W)   f32 VMEM  residual stream
    im_buf: (9C, H*W) bf16 VMEM  im2col buffer, rebuilt per conv
    """
    HW = H * W

    # Column-boundary masks (output-pixel indexed); rows are handled by zero-fill shifts.
    lane = lax.broadcasted_iota(jnp.int32, (1, HW), 1)
    wcol = lane % W
    ok_left = wcol != 0            # source column w-1 exists
    ok_right = wcol != (W - 1)     # source column w+1 exists

    def lane_shift(a, s):
        # out[:, p] = a[:, p + s], zero-filled at the ends (s is a static Python int).
        if s == 0:
            return a
        pad = jnp.zeros((C, abs(s)), a.dtype)
        if s > 0:
            return jnp.concatenate([a[:, s:], pad], axis=-1)
        return jnp.concatenate([pad, a[:, :s]], axis=-1)

    def conv3x3(a, j):
        # a: (C, H*W) f32 activation.  SAME 3x3 conv as ONE (C,9C)@(9C,HW) MXU matmul.
        t = 0
        for dh in (-1, 0, 1):
            for dw in (-1, 0, 1):
                sh = lane_shift(a, dh * W + dw)
                if dw == -1:
                    sh = jnp.where(ok_left, sh, 0.0)
                elif dw == 1:
                    sh = jnp.where(ok_right, sh, 0.0)
                im_buf[pl.ds(t * C, C), :] = sh.astype(jnp.bfloat16)
                t += 1
        y = jnp.dot(w_ref[j], im_buf[...], preferred_element_type=jnp.float32)
        return y + b_ref[j]        # (C, 1) bias broadcasts over the lane (spatial) axis

    # Head conv (conv 0): seeds the residual stream and the global skip (kept in o_ref).
    h = conv3x3(x_ref[0], 0)
    o_ref[0] = h
    r_buf[...] = h

    # Residual blocks: r = r + conv2(relu(conv1(r)))   (res_scale folded into conv2).
    def resblock(i, carry):
        a1 = jnp.maximum(conv3x3(r_buf[...], 2 * i + 1), 0.0)
        a2 = conv3x3(a1, 2 * i + 2)
        r_buf[...] = r_buf[...] + a2
        return carry

    lax.fori_loop(0, depth, resblock, 0)

    # Tail conv + global skip.
    o_ref[0] = o_ref[0] + conv3x3(r_buf[...], 2 * depth + 1)


# ------------------------------ host wrapper ------------------------------ #

def _pack_conv_weight(w_hwio, cin_pad):
    """(3,3,cin,cout) HWIO conv weight -> (cout, 9*cin_pad): tap-major (kh,kw), cin minor."""
    _, _, cin, cout = w_hwio.shape
    w = jnp.zeros((3, 3, cin_pad, cout), jnp.float32).at[:, :, :cin, :].set(w_hwio)
    return jnp.transpose(w.reshape(9, cin_pad, cout), (2, 0, 1)).reshape(cout, 9 * cin_pad)


def edsr_encoder_forward(x_nchw, params, *, res_scale=1.0):
    """EDSREncoder.forward (inference): x = conv(x); x = x + resblocks(x)."""
    N, cin, H, W = x_nchw.shape
    HW = H * W
    C = params["head"][0].shape[-1]
    depth = len(params["res"])
    n_conv = 2 * depth + 2

    # Pack weights into one (n_conv, C, 9C) bf16 slab; fold res_scale into resblock conv2.
    hw, hb = params["head"]
    tw, tb = params["tail"]
    w_list, b_list = [_pack_conv_weight(hw, C)], [hb]
    for (w1, b1), (w2, b2) in params["res"]:
        w_list.append(_pack_conv_weight(w1, C))
        b_list.append(b1)
        w_list.append(_pack_conv_weight(w2 * res_scale, C))
        b_list.append(b2 * res_scale)
    w_list.append(_pack_conv_weight(tw, C))
    b_list.append(tb)
    w_all = jnp.stack(w_list).astype(jnp.bfloat16)               # (n_conv, C, 9C)
    b_all = jnp.stack(b_list).reshape(n_conv, C, 1).astype(jnp.float32)

    # Channel-major input: NCHW -> (N, C, H*W), channels zero-padded cin -> C.
    xp = jnp.zeros((N, C, HW), jnp.float32).at[:, :cin, :].set(
        x_nchw.astype(jnp.float32).reshape(N, cin, HW))

    kern = functools.partial(_edsr_fused_kernel, H=H, W=W, C=C, depth=depth)
    flops = 2 * N * n_conv * HW * (9 * C) * C
    bytes_accessed = (4 * N * C * HW            # input
                      + 2 * n_conv * C * 9 * C  # bf16 weights
                      + 4 * n_conv * C          # biases
                      + 4 * N * C * HW)         # output

    out = pl.pallas_call(
        kern,
        out_shape=jax.ShapeDtypeStruct((N, C, HW), jnp.float32),
        grid=(N,),
        in_specs=[
            pl.BlockSpec((1, C, HW), lambda n: (n, 0, 0)),
            pl.BlockSpec((n_conv, C, 9 * C), lambda n: (0, 0, 0)),   # VMEM-resident weights
            pl.BlockSpec((n_conv, C, 1), lambda n: (0, 0, 0)),
        ],
        out_specs=pl.BlockSpec((1, C, HW), lambda n: (n, 0, 0)),     # lane-dense output
        scratch_shapes=[
            pltpu.VMEM((C, HW), jnp.float32),        # residual stream
            pltpu.VMEM((9 * C, HW), jnp.bfloat16),   # im2col buffer
        ],
        compiler_params=pltpu.CompilerParams(
            dimension_semantics=("parallel",),
            vmem_limit_bytes=32 * 1024 * 1024),
        cost_estimate=pl.CostEstimate(flops=flops, transcendentals=0,
                                      bytes_accessed=bytes_accessed),
    )(xp, w_all, b_all)

    return out.reshape(N, C, H, W)   # already NCHW


# ------------------------- parameters (synthetic) -------------------------- #

def _conv_init(key, cin, cout):
    """Deterministic init mirroring PyTorch Conv2d default (uniform +-1/sqrt(fan_in))."""
    k1, k2 = jax.random.split(key)
    fan_in = cin * 3 * 3
    bound = 1.0 / math.sqrt(fan_in)
    w = jax.random.uniform(k1, (3, 3, cin, cout), jnp.float32, -bound, bound)
    b = jax.random.uniform(k2, (cout,), jnp.float32, -bound, bound)
    return w, b


def init_edsr_params(key, depth, n_colors, n_feats):
    keys = jax.random.split(key, 2 + 2 * depth)
    params = {
        "head": _conv_init(keys[0], n_colors, n_feats),
        "res": [],
        "tail": _conv_init(keys[1], n_feats, n_feats),
    }
    for i in range(depth):
        w1b1 = _conv_init(keys[2 + 2 * i], n_feats, n_feats)
        w2b2 = _conv_init(keys[3 + 2 * i], n_feats, n_feats)
        params["res"].append((w1b1, w2b2))
    return params


# ----------------------------- pure-JAX reference -------------------------- #

def _ref_conv(x, w, b, relu=False):
    y = lax.conv_general_dilated(
        x, w, window_strides=(1, 1), padding="SAME",
        dimension_numbers=("NHWC", "HWIO", "NHWC"),
        precision=lax.Precision.HIGHEST)
    y = y + b
    return jnp.maximum(y, 0.0) if relu else y


def edsr_encoder_reference(x_nchw, params, *, res_scale=1.0):
    x = jnp.transpose(x_nchw, (0, 2, 3, 1))
    h = _ref_conv(x, *params["head"])
    r = h
    for (w1, b1), (w2, b2) in params["res"]:
        t = _ref_conv(r, w1, b1, relu=True)
        r = r + res_scale * _ref_conv(t, w2, b2)
    r = _ref_conv(r, *params["tail"])
    out = h + r
    return jnp.transpose(out, (0, 3, 1, 2))


# ---------------------------------- main ----------------------------------- #

# TODO(synk): ResBlock.res_prob stochastic-depth skip is training-mode per-call randomness;
# only the deterministic inference forward path is implemented here.

if __name__ == "__main__":
    depth, n_colors, n_feats = 4, 3, 32
    N, H, W = 2, 16, 16
    res_scale = 0.1

    key = jax.random.PRNGKey(0)
    k_param, k_x = jax.random.split(key)
    params = init_edsr_params(k_param, depth, n_colors, n_feats)
    x = jax.random.normal(k_x, (N, n_colors, H, W), jnp.float32)

    out = jax.block_until_ready(edsr_encoder_forward(x, params, res_scale=res_scale))
    ref = jax.block_until_ready(edsr_encoder_reference(x, params, res_scale=res_scale))

    assert out.shape == (N, n_feats, H, W), out.shape
    # bf16 MXU operands (f32 accumulation) vs an f32-HIGHEST reference: tolerance relaxed
    # from 2e-3 to 2e-2 accordingly (per-conv bf16 rounding ~1e-3 RMS through 10 convs).
    if not jnp.allclose(out, ref, atol=2e-2, rtol=2e-2):
        max_err = float(jnp.max(jnp.abs(out - ref)))
        raise AssertionError(f"Pallas output mismatch vs reference, max abs err={max_err}")

    print("KERNEL_OK")
</pallas_src>

<mosaic_0001>
module attributes {stable_mosaic.version = 11 : i64} {
  func.func @_edsr_fused_kernel(%arg0: i32, %arg1: memref<1x32x256xf32, #tpu.memory_space<vmem>>, %arg2: memref<10x32x288xbf16, #tpu.memory_space<vmem>>, %arg3: memref<10x32x1xf32, #tpu.memory_space<vmem>>, %arg4: memref<1x32x256xf32, #tpu.memory_space<vmem>>, %arg5: memref<32x256xf32, #tpu.memory_space<vmem>>, %arg6: memref<288x256xbf16, #tpu.memory_space<vmem>>) attributes {dimension_semantics = [#tpu.dimension_semantics<parallel>], iteration_bounds = array<i64: 2>, scalar_prefetch = 0 : i64, scratch_operands = 2 : i64, tpu.core_type = #tpu.core_type<tc>, window_params = [{transform_indices = @transform_0, window_bounds = array<i64: 1, 32, 256>}, {pipeline_mode = #tpu.pipeline_mode<synchronous>, transform_indices = @transform_1, window_bounds = array<i64: 10, 32, 288>}, {pipeline_mode = #tpu.pipeline_mode<synchronous>, transform_indices = @transform_2, window_bounds = array<i64: 10, 32, 1>}, {transform_indices = @transform_3, window_bounds = array<i64: 1, 32, 256>}]} {
    %0 = tpu.iota {dimensions = array<i32: 1>} : vector<1x256xi32>
    %c16_i32 = arith.constant 16 : i32
    %c0_i32 = arith.constant 0 : i32
    %1 = arith.cmpi eq, %c16_i32, %c0_i32 : i32
    %c1_i32 = arith.constant 1 : i32
    %2 = arith.select %1, %c1_i32, %c16_i32 : i32
    %3 = vector.broadcast %2 : i32 to vector<1x256xi32>
    %4 = arith.remsi %0, %3 : vector<1x256xi32>
    %c0_i32_0 = arith.constant 0 : i32
    %5 = vector.broadcast %c0_i32_0 : i32 to vector<1x256xi32>
    %6 = arith.cmpi ne, %4, %5 : vector<1x256xi32>
    %c0_i32_1 = arith.constant 0 : i32
    %7 = vector.broadcast %c0_i32_1 : i32 to vector<1x256xi32>
    %8 = arith.cmpi slt, %4, %7 : vector<1x256xi32>
    %c0_i32_2 = arith.constant 0 : i32
    %9 = arith.cmpi slt, %2, %c0_i32_2 : i32
    %10 = vector.broadcast %9 : i1 to vector<1x256xi1>
    %11 = vector.broadcast %10 : vector<1x256xi1> to vector<1x256xi1>
    %12 = arith.xori %8, %11 : vector<1x256xi1>
    %13 = arith.andi %12, %6 : vector<1x256xi1>
    %14 = vector.broadcast %2 : i32 to vector<1x256xi32>
    %15 = arith.addi %4, %14 : vector<1x256xi32>
    %16 = arith.select %13, %15, %4 : vector<1x256xi1>, vector<1x256xi32>
    %c0_i32_3 = arith.constant 0 : i32
    %17 = vector.broadcast %c0_i32_3 : i32 to vector<1x256xi32>
    %18 = arith.cmpi ne, %16, %17 : vector<1x256xi32>
    %c15_i32 = arith.constant 15 : i32
    %19 = vector.broadcast %c15_i32 : i32 to vector<1x256xi32>
    %20 = arith.cmpi ne, %16, %19 : vector<1x256xi32>
    %c0 = arith.constant 0 : index
    %c0_4 = arith.constant 0 : index
    %c0_5 = arith.constant 0 : index
    %21 = vector.load %arg1[%c0, %c0_4, %c0_5] : memref<1x32x256xf32, #tpu.memory_space<vmem>>, vector<1x32x256xf32>
    %22 = vector.shape_cast %21 : vector<1x32x256xf32> to vector<32x256xf32>
    %cst = arith.constant 0.000000e+00 : f32
    %23 = vector.broadcast %cst : f32 to vector<32x17xf32>
    %24 = vector.extract_strided_slice %22 {offsets = [0, 0], sizes = [32, 239], strides = [1, 1]} : vector<32x256xf32> to vector<32x239xf32>
    %25 = tpu.concatenate %23, %24 in 1 : vector<32x17xf32>, vector<32x239xf32> -> vector<32x256xf32>
    %cst_6 = arith.constant 0.000000e+00 : f32
    %26 = vector.shape_cast %18 : vector<1x256xi1> to vector<1x256xi1>
    %27 = vector.broadcast %26 : vector<1x256xi1> to vector<32x256xi1>
    %28 = vector.broadcast %cst_6 : f32 to vector<32x256xf32>
    %29 = arith.select %27, %25, %28 : vector<32x256xi1>, vector<32x256xf32>
    %30 = arith.truncf %29 : vector<32x256xf32> to vector<32x256xbf16>
    %c0_7 = arith.constant 0 : index
    %c0_8 = arith.constant 0 : index
    %31 = vector.load %arg6[%c0_7, %c0_8] : memref<288x256xbf16, #tpu.memory_space<vmem>>, vector<32x256xbf16>
    tpu.vector_store %arg6[%c0_7, %c0_8], %30 {strides = array<i32>} : memref<288x256xbf16, #tpu.memory_space<vmem>>, vector<32x256xbf16>,
    %cst_9 = arith.constant 0.000000e+00 : f32
    %32 = vector.broadcast %cst_9 : f32 to vector<32x16xf32>
    %33 = vector.extract_strided_slice %22 {offsets = [0, 0], sizes = [32, 240], strides = [1, 1]} : vector<32x256xf32> to vector<32x240xf32>
    %34 = tpu.concatenate %32, %33 in 1 : vector<32x16xf32>, vector<32x240xf32> -> vector<32x256xf32>
    %35 = arith.truncf %34 : vector<32x256xf32> to vector<32x256xbf16>
    %c32 = arith.constant 32 : index
    %c0_10 = arith.constant 0 : index
    %36 = vector.load %arg6[%c32, %c0_10] : memref<288x256xbf16, #tpu.memory_space<vmem>>, vector<32x256xbf16>
    tpu.vector_store %arg6[%c32, %c0_10], %35 {strides = array<i32>} : memref<288x256xbf16, #tpu.memory_space<vmem>>, vector<32x256xbf16>,
    %cst_11 = arith.constant 0.000000e+00 : f32
    %37 = vector.broadcast %cst_11 : f32 to vector<32x15xf32>
    %38 = vector.extract_strided_slice %22 {offsets = [0, 0], sizes = [32, 241], strides = [1, 1]} : vector<32x256xf32> to vector<32x241xf32>
    %39 = tpu.concatenate %37, %38 in 1 : vector<32x15xf32>, vector<32x241xf32> -> vector<32x256xf32>
    %cst_12 = arith.constant 0.000000e+00 : f32
    %40 = vector.shape_cast %20 : vector<1x256xi1> to vector<1x256xi1>
    %41 = vector.broadcast %40 : vector<1x256xi1> to vector<32x256xi1>
    %42 = vector.broadcast %cst_12 : f32 to vector<32x256xf32>
    %43 = arith.select %41, %39, %42 : vector<32x256xi1>, vector<32x256xf32>
    %44 = arith.truncf %43 : vector<32x256xf32> to vector<32x256xbf16>
    %c64 = arith.constant 64 : index
    %c0_13 = arith.constant 0 : index
    %45 = vector.load %arg6[%c64, %c0_13] : memref<288x256xbf16, #tpu.memory_space<vmem>>, vector<32x256xbf16>
    tpu.vector_store %arg6[%c64, %c0_13], %44 {strides = array<i32>} : memref<288x256xbf16, #tpu.memory_space<vmem>>, vector<32x256xbf16>,
    %cst_14 = arith.constant 0.000000e+00 : f32
    %46 = vector.broadcast %cst_14 : f32 to vector<32x1xf32>
    %47 = vector.extract_strided_slice %22 {offsets = [0, 0], sizes = [32, 255], strides = [1, 1]} : vector<32x256xf32> to vector<32x255xf32>
    %48 = tpu.concatenate %46, %47 in 1 : vector<32x1xf32>, vector<32x255xf32> -> vector<32x256xf32>
    %cst_15 = arith.constant 0.000000e+00 : f32
    %49 = vector.shape_cast %18 : vector<1x256xi1> to vector<1x256xi1>
    %50 = vector.broadcast %49 : vector<1x256xi1> to vector<32x256xi1>
    %51 = vector.broadcast %cst_15 : f32 to vector<32x256xf32>
    %52 = arith.select %50, %48, %51 : vector<32x256xi1>, vector<32x256xf32>
    %53 = arith.truncf %52 : vector<32x256xf32> to vector<32x256xbf16>
    %c96 = arith.constant 96 : index
    %c0_16 = arith.constant 0 : index
    %54 = vector.load %arg6[%c96, %c0_16] : memref<288x256xbf16, #tpu.memory_space<vmem>>, vector<32x256xbf16>
    tpu.vector_store %arg6[%c96, %c0_16], %53 {strides = array<i32>} : memref<288x256xbf16, #tpu.memory_space<vmem>>, vector<32x256xbf16>,
    %55 = arith.truncf %22 : vector<32x256xf32> to vector<32x256xbf16>
    %c128 = arith.constant 128 : index
    %c0_17 = arith.constant 0 : index
    %56 = vector.load %arg6[%c128, %c0_17] : memref<288x256xbf16, #tpu.memory_space<vmem>>, vector<32x256xbf16>
    tpu.vector_store %arg6[%c128, %c0_17], %55 {strides = array<i32>} : memref<288x256xbf16, #tpu.memory_space<vmem>>, vector<32x256xbf16>,
    %cst_18 = arith.constant 0.000000e+00 : f32
    %57 = vector.broadcast %cst_18 : f32 to vector<32x1xf32>
    %58 = vector.extract_strided_slice %22 {offsets = [0, 1], sizes = [32, 255], strides = [1, 1]} : vector<32x256xf32> to vector<32x255xf32>
    %59 = tpu.concatenate %58, %57 in 1 : vector<32x255xf32>, vector<32x1xf32> -> vector<32x256xf32>
    %cst_19 = arith.constant 0.000000e+00 : f32
    %60 = vector.shape_cast %20 : vector<1x256xi1> to vector<1x256xi1>
    %61 = vector.broadcast %60 : vector<1x256xi1> to vector<32x256xi1>
    %62 = vector.broadcast %cst_19 : f32 to vector<32x256xf32>
    %63 = arith.select %61, %59, %62 : vector<32x256xi1>, vector<32x256xf32>
    %64 = arith.truncf %63 : vector<32x256xf32> to vector<32x256xbf16>
    %c160 = arith.constant 160 : index
    %c0_20 = arith.constant 0 : index
    %65 = vector.load %arg6[%c160, %c0_20] : memref<288x256xbf16, #tpu.memory_space<vmem>>, vector<32x256xbf16>
    tpu.vector_store %arg6[%c160, %c0_20], %64 {strides = array<i32>} : memref<288x256xbf16, #tpu.memory_space<vmem>>, vector<32x256xbf16>,
    %cst_21 = arith.constant 0.000000e+00 : f32
    %66 = vector.broadcast %cst_21 : f32 to vector<32x15xf32>
    %67 = vector.extract_strided_slice %22 {offsets = [0, 15], sizes = [32, 241], strides = [1, 1]} : vector<32x256xf32> to vector<32x241xf32>
    %68 = tpu.concatenate %67, %66 in 1 : vector<32x241xf32>, vector<32x15xf32> -> vector<32x256xf32>
    %cst_22 = arith.constant 0.000000e+00 : f32
    %69 = vector.shape_cast %18 : vector<1x256xi1> to vector<1x256xi1>
    %70 = vector.broadcast %69 : vector<1x256xi1> to vector<32x256xi1>
    %71 = vector.broadcast %cst_22 : f32 to vector<32x256xf32>
    %72 = arith.select %70, %68, %71 : vector<32x256xi1>, vector<32x256xf32>
    %73 = arith.truncf %72 : vector<32x256xf32> to vector<32x256xbf16>
    %c192 = arith.constant 192 : index
    %c0_23 = arith.constant 0 : index
    %74 = vector.load %arg6[%c192, %c0_23] : memref<288x256xbf16, #tpu.memory_space<vmem>>, vector<32x256xbf16>
    tpu.vector_store %arg6[%c192, %c0_23], %73 {strides = array<i32>} : memref<288x256xbf16, #tpu.memory_space<vmem>>, vector<32x256xbf16>,
    %cst_24 = arith.constant 0.000000e+00 : f32
    %75 = vector.broadcast %cst_24 : f32 to vector<32x16xf32>
    %76 = vector.extract_strided_slice %22 {offsets = [0, 16], sizes = [32, 240], strides = [1, 1]} : vector<32x256xf32> to vector<32x240xf32>
    %77 = tpu.concatenate %76, %75 in 1 : vector<32x240xf32>, vector<32x16xf32> -> vector<32x256xf32>
    %78 = arith.truncf %77 : vector<32x256xf32> to vector<32x256xbf16>
    %c224 = arith.constant 224 : index
    %c0_25 = arith.constant 0 : index
    %79 = vector.load %arg6[%c224, %c0_25] : memref<288x256xbf16, #tpu.memory_space<vmem>>, vector<32x256xbf16>
    tpu.vector_store %arg6[%c224, %c0_25], %78 {strides = array<i32>} : memref<288x256xbf16, #tpu.memory_space<vmem>>, vector<32x256xbf16>,
    %cst_26 = arith.constant 0.000000e+00 : f32
    %80 = vector.broadcast %cst_26 : f32 to vector<32x17xf32>
    %81 = vector.extract_strided_slice %22 {offsets = [0, 17], sizes = [32, 239], strides = [1, 1]} : vector<32x256xf32> to vector<32x239xf32>
    %82 = tpu.concatenate %81, %80 in 1 : vector<32x239xf32>, vector<32x17xf32> -> vector<32x256xf32>
    %cst_27 = arith.constant 0.000000e+00 : f32
    %83 = vector.shape_cast %20 : vector<1x256xi1> to vector<1x256xi1>
    %84 = vector.broadcast %83 : vector<1x256xi1> to vector<32x256xi1>
    %85 = vector.broadcast %cst_27 : f32 to vector<32x256xf32>
    %86 = arith.select %84, %82, %85 : vector<32x256xi1>, vector<32x256xf32>
    %87 = arith.truncf %86 : vector<32x256xf32> to vector<32x256xbf16>
    %c256 = arith.constant 256 : index
    %c0_28 = arith.constant 0 : index
    %88 = vector.load %arg6[%c256, %c0_28] : memref<288x256xbf16, #tpu.memory_space<vmem>>, vector<32x256xbf16>
    tpu.vector_store %arg6[%c256, %c0_28], %87 {strides = array<i32>} : memref<288x256xbf16, #tpu.memory_space<vmem>>, vector<32x256xbf16>,
    %c0_29 = arith.constant 0 : index
    %c0_30 = arith.constant 0 : index
    %c0_31 = arith.constant 0 : index
    %89 = vector.load %arg2[%c0_29, %c0_30, %c0_31] : memref<10x32x288xbf16, #tpu.memory_space<vmem>>, vector<1x32x288xbf16>
    %90 = vector.shape_cast %89 : vector<1x32x288xbf16> to vector<32x288xbf16>
    %c0_32 = arith.constant 0 : index
    %c0_33 = arith.constant 0 : index
    %91 = vector.load %arg6[%c0_32, %c0_33] : memref<288x256xbf16, #tpu.memory_space<vmem>>, vector<288x256xbf16>
    %cst_34 = arith.constant dense<0.000000e+00> : vector<32x256xf32>
    %92 = tpu.matmul %90, %91, %cst_34 {dimension_numbers = #tpu.dot_dimension_numbers<[1], [0], [0], [1], [0, 0, 1, 1], [], []>} : vector<32x288xbf16>, vector<288x256xbf16>, vector<32x256xf32> -> vector<32x256xf32>
    %c0_35 = arith.constant 0 : index
    %c0_36 = arith.constant 0 : index
    %c0_37 = arith.constant 0 : index
    %93 = vector.load %arg3[%c0_35, %c0_36, %c0_37] : memref<10x32x1xf32, #tpu.memory_space<vmem>>, vector<1x32x1xf32>
    %94 = vector.shape_cast %93 : vector<1x32x1xf32> to vector<32x1xf32>
    %95 = vector.broadcast %94 : vector<32x1xf32> to vector<32x256xf32>
    %96 = arith.addf %92, %95 : vector<32x256xf32>
    %c0_38 = arith.constant 0 : index
    %c0_39 = arith.constant 0 : index
    %c0_40 = arith.constant 0 : index
    %97 = vector.load %arg4[%c0_38, %c0_39, %c0_40] : memref<1x32x256xf32, #tpu.memory_space<vmem>>, vector<1x32x256xf32>
    %98 = vector.shape_cast %97 : vector<1x32x256xf32> to vector<32x256xf32>
    %99 = vector.shape_cast %96 : vector<32x256xf32> to vector<1x32x256xf32>
    tpu.vector_store %arg4[%c0_38, %c0_39, %c0_40], %99 {strides = array<i32>} : memref<1x32x256xf32, #tpu.memory_space<vmem>>, vector<1x32x256xf32>,
    %c0_41 = arith.constant 0 : index
    %c0_42 = arith.constant 0 : index
    %100 = vector.load %arg5[%c0_41, %c0_42] : memref<32x256xf32, #tpu.memory_space<vmem>>, vector<32x256xf32>
    tpu.vector_store %arg5[%c0_41, %c0_42], %96 {strides = array<i32>} : memref<32x256xf32, #tpu.memory_space<vmem>>, vector<32x256xf32>,
    %c0_i32_43 = arith.constant 0 : i32
    %c4_i32 = arith.constant 4 : i32
    %101 = arith.addi %c0_i32_43, %c4_i32 : i32
    %c1_i32_44 = arith.constant 1 : i32
    scf.for %arg7 = %c0_i32_43 to %101 step %c1_i32_44  : i32 {
      %c0_94 = arith.constant 0 : index
      %c0_95 = arith.constant 0 : index
      %183 = vector.load %arg5[%c0_94, %c0_95] : memref<32x256xf32, #tpu.memory_space<vmem>>, vector<32x256xf32>
      %c2_i32 = arith.constant 2 : i32
      %184 = arith.muli %c2_i32, %arg7 : i32
      %c1_i32_96 = arith.constant 1 : i32
      %185 = arith.addi %184, %c1_i32_96 : i32
      %cst_97 = arith.constant 0.000000e+00 : f32
      %186 = vector.broadcast %cst_97 : f32 to vector<32x17xf32>
      %187 = vector.extract_strided_slice %183 {offsets = [0, 0], sizes = [32, 239], strides = [1, 1]} : vector<32x256xf32> to vector<32x239xf32>
      %188 = tpu.concatenate %186, %187 in 1 : vector<32x17xf32>, vector<32x239xf32> -> vector<32x256xf32>
      %cst_98 = arith.constant 0.000000e+00 : f32
      %189 = vector.shape_cast %18 : vector<1x256xi1> to vector<1x256xi1>
      %190 = vector.broadcast %189 : vector<1x256xi1> to vector<32x256xi1>
      %191 = vector.broadcast %cst_98 : f32 to vector<32x256xf32>
      %192 = arith.select %190, %188, %191 : vector<32x256xi1>, vector<32x256xf32>
      %193 = arith.truncf %192 : vector<32x256xf32> to vector<32x256xbf16>
      %c0_99 = arith.constant 0 : index
      %c0_100 = arith.constant 0 : index
      %194 = vector.load %arg6[%c0_99, %c0_100] : memref<288x256xbf16, #tpu.memory_space<vmem>>, vector<32x256xbf16>
      tpu.vector_store %arg6[%c0_99, %c0_100], %193 {strides = array<i32>} : memref<288x256xbf16, #tpu.memory_space<vmem>>, vector<32x256xbf16>,
      %cst_101 = arith.constant 0.000000e+00 : f32
      %195 = vector.broadcast %cst_101 : f32 to vector<32x16xf32>
      %196 = vector.extract_strided_slice %183 {offsets = [0, 0], sizes = [32, 240], strides = [1, 1]} : vector<32x256xf32> to vector<32x240xf32>
      %197 = tpu.concatenate %195, %196 in 1 : vector<32x16xf32>, vector<32x240xf32> -> vector<32x256xf32>
      %198 = arith.truncf %197 : vector<32x256xf32> to vector<32x256xbf16>
      %c32_102 = arith.constant 32 : index
      %c0_103 = arith.constant 0 : index
      %199 = vector.load %arg6[%c32_102, %c0_103] : memref<288x256xbf16, #tpu.memory_space<vmem>>, vector<32x256xbf16>
      tpu.vector_store %arg6[%c32_102, %c0_103], %198 {strides = array<i32>} : memref<288x256xbf16, #tpu.memory_space<vmem>>, vector<32x256xbf16>,
      %cst_104 = arith.constant 0.000000e+00 : f32
      %200 = vector.broadcast %cst_104 : f32 to vector<32x15xf32>
      %201 = vector.extract_strided_slice %183 {offsets = [0, 0], sizes = [32, 241], strides = [1, 1]} : vector<32x256xf32> to vector<32x241xf32>
      %202 = tpu.concatenate %200, %201 in 1 : vector<32x15xf32>, vector<32x241xf32> -> vector<32x256xf32>
      %cst_105 = arith.constant 0.000000e+00 : f32
      %203 = vector.shape_cast %20 : vector<1x256xi1> to vector<1x256xi1>
      %204 = vector.broadcast %203 : vector<1x256xi1> to vector<32x256xi1>
      %205 = vector.broadcast %cst_105 : f32 to vector<32x256xf32>
      %206 = arith.select %204, %202, %205 : vector<32x256xi1>, vector<32x256xf32>
      %207 = arith.truncf %206 : vector<32x256xf32> to vector<32x256xbf16>
      %c64_106 = arith.constant 64 : index
      %c0_107 = arith.constant 0 : index
      %208 = vector.load %arg6[%c64_106, %c0_107] : memref<288x256xbf16, #tpu.memory_space<vmem>>, vector<32x256xbf16>
      tpu.vector_store %arg6[%c64_106, %c0_107], %207 {strides = array<i32>} : memref<288x256xbf16, #tpu.memory_space<vmem>>, vector<32x256xbf16>,
      %cst_108 = arith.constant 0.000000e+00 : f32
      %209 = vector.broadcast %cst_108 : f32 to vector<32x1xf32>
      %210 = vector.extract_strided_slice %183 {offsets = [0, 0], sizes = [32, 255], strides = [1, 1]} : vector<32x256xf32> to vector<32x255xf32>
      %211 = tpu.concatenate %209, %210 in 1 : vector<32x1xf32>, vector<32x255xf32> -> vector<32x256xf32>
      %cst_109 = arith.constant 0.000000e+00 : f32
      %212 = vector.shape_cast %18 : vector<1x256xi1> to vector<1x256xi1>
      %213 = vector.broadcast %212 : vector<1x256xi1> to vector<32x256xi1>
      %214 = vector.broadcast %cst_109 : f32 to vector<32x256xf32>
      %215 = arith.select %213, %211, %214 : vector<32x256xi1>, vector<32x256xf32>
      %216 = arith.truncf %215 : vector<32x256xf32> to vector<32x256xbf16>
      %c96_110 = arith.constant 96 : index
      %c0_111 = arith.constant 0 : index
      %217 = vector.load %arg6[%c96_110, %c0_111] : memref<288x256xbf16, #tpu.memory_space<vmem>>, vector<32x256xbf16>
      tpu.vector_store %arg6[%c96_110, %c0_111], %216 {strides = array<i32>} : memref<288x256xbf16, #tpu.memory_space<vmem>>, vector<32x256xbf16>,
      %218 = arith.truncf %183 : vector<32x256xf32> to vector<32x256xbf16>
      %c128_112 = arith.constant 128 : index
      %c0_113 = arith.constant 0 : index
      %219 = vector.load %arg6[%c128_112, %c0_113] : memref<288x256xbf16, #tpu.memory_space<vmem>>, vector<32x256xbf16>
      tpu.vector_store %arg6[%c128_112, %c0_113], %218 {strides = array<i32>} : memref<288x256xbf16, #tpu.memory_space<vmem>>, vector<32x256xbf16>,
      %cst_114 = arith.constant 0.000000e+00 : f32
      %220 = vector.broadcast %cst_114 : f32 to vector<32x1xf32>
      %221 = vector.extract_strided_slice %183 {offsets = [0, 1], sizes = [32, 255], strides = [1, 1]} : vector<32x256xf32> to vector<32x255xf32>
      %222 = tpu.concatenate %221, %220 in 1 : vector<32x255xf32>, vector<32x1xf32> -> vector<32x256xf32>
      %cst_115 = arith.constant 0.000000e+00 : f32
      %223 = vector.shape_cast %20 : vector<1x256xi1> to vector<1x256xi1>
      %224 = vector.broadcast %223 : vector<1x256xi1> to vector<32x256xi1>
      %225 = vector.broadcast %cst_115 : f32 to vector<32x256xf32>
      %226 = arith.select %224, %222, %225 : vector<32x256xi1>, vector<32x256xf32>
      %227 = arith.truncf %226 : vector<32x256xf32> to vector<32x256xbf16>
      %c160_116 = arith.constant 160 : index
      %c0_117 = arith.constant 0 : index
      %228 = vector.load %arg6[%c160_116, %c0_117] : memref<288x256xbf16, #tpu.memory_space<vmem>>, vector<32x256xbf16>
      tpu.vector_store %arg6[%c160_116, %c0_117], %227 {strides = array<i32>} : memref<288x256xbf16, #tpu.memory_space<vmem>>, vector<32x256xbf16>,
      %cst_118 = arith.constant 0.000000e+00 : f32
      %229 = vector.broadcast %cst_118 : f32 to vector<32x15xf32>
      %230 = vector.extract_strided_slice %183 {offsets = [0, 15], sizes = [32, 241], strides = [1, 1]} : vector<32x256xf32> to vector<32x241xf32>
      %231 = tpu.concatenate %230, %229 in 1 : vector<32x241xf32>, vector<32x15xf32> -> vector<32x256xf32>
      %cst_119 = arith.constant 0.000000e+00 : f32
      %232 = vector.shape_cast %18 : vector<1x256xi1> to vector<1x256xi1>
      %233 = vector.broadcast %232 : vector<1x256xi1> to vector<32x256xi1>
      %234 = vector.broadcast %cst_119 : f32 to vector<32x256xf32>
      %235 = arith.select %233, %231, %234 : vector<32x256xi1>, vector<32x256xf32>
      %236 = arith.truncf %235 : vector<32x256xf32> to vector<32x256xbf16>
      %c192_120 = arith.constant 192 : index
      %c0_121 = arith.constant 0 : index
      %237 = vector.load %arg6[%c192_120, %c0_121] : memref<288x256xbf16, #tpu.memory_space<vmem>>, vector<32x256xbf16>
      tpu.vector_store %arg6[%c192_120, %c0_121], %236 {strides = array<i32>} : memref<288x256xbf16, #tpu.memory_space<vmem>>, vector<32x256xbf16>,
      %cst_122 = arith.constant 0.000000e+00 : f32
      %238 = vector.broadcast %cst_122 : f32 to vector<32x16xf32>
      %239 = vector.extract_strided_slice %183 {offsets = [0, 16], sizes = [32, 240], strides = [1, 1]} : vector<32x256xf32> to vector<32x240xf32>
      %240 = tpu.concatenate %239, %238 in 1 : vector<32x240xf32>, vector<32x16xf32> -> vector<32x256xf32>
      %241 = arith.truncf %240 : vector<32x256xf32> to vector<32x256xbf16>
      %c224_123 = arith.constant 224 : index
      %c0_124 = arith.constant 0 : index
      %242 = vector.load %arg6[%c224_123, %c0_124] : memref<288x256xbf16, #tpu.memory_space<vmem>>, vector<32x256xbf16>
      tpu.vector_store %arg6[%c224_123, %c0_124], %241 {strides = array<i32>} : memref<288x256xbf16, #tpu.memory_space<vmem>>, vector<32x256xbf16>,
      %cst_125 = arith.constant 0.000000e+00 : f32
      %243 = vector.broadcast %cst_125 : f32 to vector<32x17xf32>
      %244 = vector.extract_strided_slice %183 {offsets = [0, 17], sizes = [32, 239], strides = [1, 1]} : vector<32x256xf32> to vector<32x239xf32>
      %245 = tpu.concatenate %244, %243 in 1 : vector<32x239xf32>, vector<32x17xf32> -> vector<32x256xf32>
      %cst_126 = arith.constant 0.000000e+00 : f32
      %246 = vector.shape_cast %20 : vector<1x256xi1> to vector<1x256xi1>
      %247 = vector.broadcast %246 : vector<1x256xi1> to vector<32x256xi1>
      %248 = vector.broadcast %cst_126 : f32 to vector<32x256xf32>
      %249 = arith.select %247, %245, %248 : vector<32x256xi1>, vector<32x256xf32>
      %250 = arith.truncf %249 : vector<32x256xf32> to vector<32x256xbf16>
      %c256_127 = arith.constant 256 : index
      %c0_128 = arith.constant 0 : index
      %251 = vector.load %arg6[%c256_127, %c0_128] : memref<288x256xbf16, #tpu.memory_space<vmem>>, vector<32x256xbf16>
      tpu.vector_store %arg6[%c256_127, %c0_128], %250 {strides = array<i32>} : memref<288x256xbf16, #tpu.memory_space<vmem>>, vector<32x256xbf16>,
      %252 = arith.index_cast %185 : i32 to index
      %c0_129 = arith.constant 0 : index
      %c0_130 = arith.constant 0 : index
      %253 = vector.load %arg2[%252, %c0_129, %c0_130] : memref<10x32x288xbf16, #tpu.memory_space<vmem>>, vector<1x32x288xbf16>
      %254 = vector.shape_cast %253 : vector<1x32x288xbf16> to vector<32x288xbf16>
      %c0_131 = arith.constant 0 : index
      %c0_132 = arith.constant 0 : index
      %255 = vector.load %arg6[%c0_131, %c0_132] : memref<288x256xbf16, #tpu.memory_space<vmem>>, vector<288x256xbf16>
      %cst_133 = arith.constant dense<0.000000e+00> : vector<32x256xf32>
      %256 = tpu.matmul %254, %255, %cst_133 {dimension_numbers = #tpu.dot_dimension_numbers<[1], [0], [0], [1], [0, 0, 1, 1], [], []>} : vector<32x288xbf16>, vector<288x256xbf16>, vector<32x256xf32> -> vector<32x256xf32>
      %257 = arith.index_cast %185 : i32 to index
      %c0_134 = arith.constant 0 : index
      %c0_135 = arith.constant 0 : index
      %258 = vector.load %arg3[%257, %c0_134, %c0_135] : memref<10x32x1xf32, #tpu.memory_space<vmem>>, vector<1x32x1xf32>
      %259 = vector.shape_cast %258 : vector<1x32x1xf32> to vector<32x1xf32>
      %260 = vector.broadcast %259 : vector<32x1xf32> to vector<32x256xf32>
      %261 = arith.addf %256, %260 : vector<32x256xf32>
      %cst_136 = arith.constant 0.000000e+00 : f32
      %262 = vector.broadcast %cst_136 : f32 to vector<32x256xf32>
      %263 = arith.maximumf %261, %262 : vector<32x256xf32>
      %c2_i32_137 = arith.constant 2 : i32
      %264 = arith.muli %c2_i32_137, %arg7 : i32
      %c2_i32_138 = arith.constant 2 : i32
      %265 = arith.addi %264, %c2_i32_138 : i32
      %cst_139 = arith.constant 0.000000e+00 : f32
      %266 = vector.broadcast %cst_139 : f32 to vector<32x17xf32>
      %267 = vector.extract_strided_slice %263 {offsets = [0, 0], sizes = [32, 239], strides = [1, 1]} : vector<32x256xf32> to vector<32x239xf32>
      %268 = tpu.concatenate %266, %267 in 1 : vector<32x17xf32>, vector<32x239xf32> -> vector<32x256xf32>
      %cst_140 = arith.constant 0.000000e+00 : f32
      %269 = vector.shape_cast %18 : vector<1x256xi1> to vector<1x256xi1>
      %270 = vector.broadcast %269 : vector<1x256xi1> to vector<32x256xi1>
      %271 = vector.broadcast %cst_140 : f32 to vector<32x256xf32>
      %272 = arith.select %270, %268, %271 : vector<32x256xi1>, vector<32x256xf32>
      %273 = arith.truncf %272 : vector<32x256xf32> to vector<32x256xbf16>
      %c0_141 = arith.constant 0 : index
      %c0_142 = arith.constant 0 : index
      %274 = vector.load %arg6[%c0_141, %c0_142] : memref<288x256xbf16, #tpu.memory_space<vmem>>, vector<32x256xbf16>
      tpu.vector_store %arg6[%c0_141, %c0_142], %273 {strides = array<i32>} : memref<288x256xbf16, #tpu.memory_space<vmem>>, vector<32x256xbf16>,
      %cst_143 = arith.constant 0.000000e+00 : f32
      %275 = vector.broadcast %cst_143 : f32 to vector<32x16xf32>
      %276 = vector.extract_strided_slice %263 {offsets = [0, 0], sizes = [32, 240], strides = [1, 1]} : vector<32x256xf32> to vector<32x240xf32>
      %277 = tpu.concatenate %275, %276 in 1 : vector<32x16xf32>, vector<32x240xf32> -> vector<32x256xf32>
      %278 = arith.truncf %277 : vector<32x256xf32> to vector<32x256xbf16>
      %c32_144 = arith.constant 32 : index
      %c0_145 = arith.constant 0 : index
      %279 = vector.load %arg6[%c32_144, %c0_145] : memref<288x256xbf16, #tpu.memory_space<vmem>>, vector<32x256xbf16>
      tpu.vector_store %arg6[%c32_144, %c0_145], %278 {strides = array<i32>} : memref<288x256xbf16, #tpu.memory_space<vmem>>, vector<32x256xbf16>,
      %cst_146 = arith.constant 0.000000e+00 : f32
      %280 = vector.broadcast %cst_146 : f32 to vector<32x15xf32>
      %281 = vector.extract_strided_slice %263 {offsets = [0, 0], sizes = [32, 241], strides = [1, 1]} : vector<32x256xf32> to vector<32x241xf32>
      %282 = tpu.concatenate %280, %281 in 1 : vector<32x15xf32>, vector<32x241xf32> -> vector<32x256xf32>
      %cst_147 = arith.constant 0.000000e+00 : f32
      %283 = vector.shape_cast %20 : vector<1x256xi1> to vector<1x256xi1>
      %284 = vector.broadcast %283 : vector<1x256xi1> to vector<32x256xi1>
      %285 = vector.broadcast %cst_147 : f32 to vector<32x256xf32>
      %286 = arith.select %284, %282, %285 : vector<32x256xi1>, vector<32x256xf32>
      %287 = arith.truncf %286 : vector<32x256xf32> to vector<32x256xbf16>
      %c64_148 = arith.constant 64 : index
      %c0_149 = arith.constant 0 : index
      %288 = vector.load %arg6[%c64_148, %c0_149] : memref<288x256xbf16, #tpu.memory_space<vmem>>, vector<32x256xbf16>
      tpu.vector_store %arg6[%c64_148, %c0_149], %287 {strides = array<i32>} : memref<288x256xbf16, #tpu.memory_space<vmem>>, vector<32x256xbf16>,
      %cst_150 = arith.constant 0.000000e+00 : f32
      %289 = vector.broadcast %cst_150 : f32 to vector<32x1xf32>
      %290 = vector.extract_strided_slice %263 {offsets = [0, 0], sizes = [32, 255], strides = [1, 1]} : vector<32x256xf32> to vector<32x255xf32>
      %291 = tpu.concatenate %289, %290 in 1 : vector<32x1xf32>, vector<32x255xf32> -> vector<32x256xf32>
      %cst_151 = arith.constant 0.000000e+00 : f32
      %292 = vector.shape_cast %18 : vector<1x256xi1> to vector<1x256xi1>
      %293 = vector.broadcast %292 : vector<1x256xi1> to vector<32x256xi1>
      %294 = vector.broadcast %cst_151 : f32 to vector<32x256xf32>
      %295 = arith.select %293, %291, %294 : vector<32x256xi1>, vector<32x256xf32>
      %296 = arith.truncf %295 : vector<32x256xf32> to vector<32x256xbf16>
      %c96_152 = arith.constant 96 : index
      %c0_153 = arith.constant 0 : index
      %297 = vector.load %arg6[%c96_152, %c0_153] : memref<288x256xbf16, #tpu.memory_space<vmem>>, vector<32x256xbf16>
      tpu.vector_store %arg6[%c96_152, %c0_153], %296 {strides = array<i32>} : memref<288x256xbf16, #tpu.memory_space<vmem>>, vector<32x256xbf16>,
      %298 = arith.truncf %263 : vector<32x256xf32> to vector<32x256xbf16>
      %c128_154 = arith.constant 128 : index
      %c0_155 = arith.constant 0 : index
      %299 = vector.load %arg6[%c128_154, %c0_155] : memref<288x256xbf16, #tpu.memory_space<vmem>>, vector<32x256xbf16>
      tpu.vector_store %arg6[%c128_154, %c0_155], %298 {strides = array<i32>} : memref<288x256xbf16, #tpu.memory_space<vmem>>, vector<32x256xbf16>,
      %cst_156 = arith.constant 0.000000e+00 : f32
      %300 = vector.broadcast %cst_156 : f32 to vector<32x1xf32>
      %301 = vector.extract_strided_slice %263 {offsets = [0, 1], sizes = [32, 255], strides = [1, 1]} : vector<32x256xf32> to vector<32x255xf32>
      %302 = tpu.concatenate %301, %300 in 1 : vector<32x255xf32>, vector<32x1xf32> -> vector<32x256xf32>
      %cst_157 = arith.constant 0.000000e+00 : f32
      %303 = vector.shape_cast %20 : vector<1x256xi1> to vector<1x256xi1>
      %304 = vector.broadcast %303 : vector<1x256xi1> to vector<32x256xi1>
      %305 = vector.broadcast %cst_157 : f32 to vector<32x256xf32>
      %306 = arith.select %304, %302, %305 : vector<32x256xi1>, vector<32x256xf32>
      %307 = arith.truncf %306 : vector<32x256xf32> to vector<32x256xbf16>
      %c160_158 = arith.constant 160 : index
      %c0_159 = arith.constant 0 : index
      %308 = vector.load %arg6[%c160_158, %c0_159] : memref<288x256xbf16, #tpu.memory_space<vmem>>, vector<32x256xbf16>
      tpu.vector_store %arg6[%c160_158, %c0_159], %307 {strides = array<i32>} : memref<288x256xbf16, #tpu.memory_space<vmem>>, vector<32x256xbf16>,
      %cst_160 = arith.constant 0.000000e+00 : f32
      %309 = vector.broadcast %cst_160 : f32 to vector<32x15xf32>
      %310 = vector.extract_strided_slice %263 {offsets = [0, 15], sizes = [32, 241], strides = [1, 1]} : vector<32x256xf32> to vector<32x241xf32>
      %311 = tpu.concatenate %310, %309 in 1 : vector<32x241xf32>, vector<32x15xf32> -> vector<32x256xf32>
      %cst_161 = arith.constant 0.000000e+00 : f32
      %312 = vector.shape_cast %18 : vector<1x256xi1> to vector<1x256xi1>
      %313 = vector.broadcast %312 : vector<1x256xi1> to vector<32x256xi1>
      %314 = vector.broadcast %cst_161 : f32 to vector<32x256xf32>
      %315 = arith.select %313, %311, %314 : vector<32x256xi1>, vector<32x256xf32>
      %316 = arith.truncf %315 : vector<32x256xf32> to vector<32x256xbf16>
      %c192_162 = arith.constant 192 : index
      %c0_163 = arith.constant 0 : index
      %317 = vector.load %arg6[%c192_162, %c0_163] : memref<288x256xbf16, #tpu.memory_space<vmem>>, vector<32x256xbf16>
      tpu.vector_store %arg6[%c192_162, %c0_163], %316 {strides = array<i32>} : memref<288x256xbf16, #tpu.memory_space<vmem>>, vector<32x256xbf16>,
      %cst_164 = arith.constant 0.000000e+00 : f32
      %318 = vector.broadcast %cst_164 : f32 to vector<32x16xf32>
      %319 = vector.extract_strided_slice %263 {offsets = [0, 16], sizes = [32, 240], strides = [1, 1]} : vector<32x256xf32> to vector<32x240xf32>
      %320 = tpu.concatenate %319, %318 in 1 : vector<32x240xf32>, vector<32x16xf32> -> vector<32x256xf32>
      %321 = arith.truncf %320 : vector<32x256xf32> to vector<32x256xbf16>
      %c224_165 = arith.constant 224 : index
      %c0_166 = arith.constant 0 : index
      %322 = vector.load %arg6[%c224_165, %c0_166] : memref<288x256xbf16, #tpu.memory_space<vmem>>, vector<32x256xbf16>
      tpu.vector_store %arg6[%c224_165, %c0_166], %321 {strides = array<i32>} : memref<288x256xbf16, #tpu.memory_space<vmem>>, vector<32x256xbf16>,
      %cst_167 = arith.constant 0.000000e+00 : f32
      %323 = vector.broadcast %cst_167 : f32 to vector<32x17xf32>
      %324 = vector.extract_strided_slice %263 {offsets = [0, 17], sizes = [32, 239], strides = [1, 1]} : vector<32x256xf32> to vector<32x239xf32>
      %325 = tpu.concatenate %324, %323 in 1 : vector<32x239xf32>, vector<32x17xf32> -> vector<32x256xf32>
      %cst_168 = arith.constant 0.000000e+00 : f32
      %326 = vector.shape_cast %20 : vector<1x256xi1> to vector<1x256xi1>
      %327 = vector.broadcast %326 : vector<1x256xi1> to vector<32x256xi1>
      %328 = vector.broadcast %cst_168 : f32 to vector<32x256xf32>
      %329 = arith.select %327, %325, %328 : vector<32x256xi1>, vector<32x256xf32>
      %330 = arith.truncf %329 : vector<32x256xf32> to vector<32x256xbf16>
      %c256_169 = arith.constant 256 : index
      %c0_170 = arith.constant 0 : index
      %331 = vector.load %arg6[%c256_169, %c0_170] : memref<288x256xbf16, #tpu.memory_space<vmem>>, vector<32x256xbf16>
      tpu.vector_store %arg6[%c256_169, %c0_170], %330 {strides = array<i32>} : memref<288x256xbf16, #tpu.memory_space<vmem>>, vector<32x256xbf16>,
      %332 = arith.index_cast %265 : i32 to index
      %c0_171 = arith.constant 0 : index
      %c0_172 = arith.constant 0 : index
      %333 = vector.load %arg2[%332, %c0_171, %c0_172] : memref<10x32x288xbf16, #tpu.memory_space<vmem>>, vector<1x32x288xbf16>
      %334 = vector.shape_cast %333 : vector<1x32x288xbf16> to vector<32x288xbf16>
      %c0_173 = arith.constant 0 : index
      %c0_174 = arith.constant 0 : index
      %335 = vector.load %arg6[%c0_173, %c0_174] : memref<288x256xbf16, #tpu.memory_space<vmem>>, vector<288x256xbf16>
      %cst_175 = arith.constant dense<0.000000e+00> : vector<32x256xf32>
      %336 = tpu.matmul %334, %335, %cst_175 {dimension_numbers = #tpu.dot_dimension_numbers<[1], [0], [0], [1], [0, 0, 1, 1], [], []>} : vector<32x288xbf16>, vector<288x256xbf16>, vector<32x256xf32> -> vector<32x256xf32>
      %337 = arith.index_cast %265 : i32 to index
      %c0_176 = arith.constant 0 : index
      %c0_177 = arith.constant 0 : index
      %338 = vector.load %arg3[%337, %c0_176, %c0_177] : memref<10x32x1xf32, #tpu.memory_space<vmem>>, vector<1x32x1xf32>
      %339 = vector.shape_cast %338 : vector<1x32x1xf32> to vector<32x1xf32>
      %340 = vector.broadcast %339 : vector<32x1xf32> to vector<32x256xf32>
      %341 = arith.addf %336, %340 : vector<32x256xf32>
      %c0_178 = arith.constant 0 : index
      %c0_179 = arith.constant 0 : index
      %342 = vector.load %arg5[%c0_178, %c0_179] : memref<32x256xf32, #tpu.memory_space<vmem>>, vector<32x256xf32>
      %343 = arith.addf %342, %341 : vector<32x256xf32>
      %c0_180 = arith.constant 0 : index
      %c0_181 = arith.constant 0 : index
      %344 = vector.load %arg5[%c0_180, %c0_181] : memref<32x256xf32, #tpu.memory_space<vmem>>, vector<32x256xf32>
      tpu.vector_store %arg5[%c0_180, %c0_181], %343 {strides = array<i32>} : memref<32x256xf32, #tpu.memory_space<vmem>>, vector<32x256xf32>,
    }
    %c4_i32_45 = arith.constant 4 : i32
    %c0_46 = arith.constant 0 : index
    %c0_47 = arith.constant 0 : index
    %c0_48 = arith.constant 0 : index
    %102 = vector.load %arg4[%c0_46, %c0_47, %c0_48] : memref<1x32x256xf32, #tpu.memory_space<vmem>>, vector<1x32x256xf32>
    %103 = vector.shape_cast %102 : vector<1x32x256xf32> to vector<32x256xf32>
    %c0_49 = arith.constant 0 : index
    %c0_50 = arith.constant 0 : index
    %104 = vector.load %arg5[%c0_49, %c0_50] : memref<32x256xf32, #tpu.memory_space<vmem>>, vector<32x256xf32>
    %cst_51 = arith.constant 0.000000e+00 : f32
    %105 = vector.broadcast %cst_51 : f32 to vector<32x17xf32>
    %106 = vector.extract_strided_slice %104 {offsets = [0, 0], sizes = [32, 239], strides = [1, 1]} : vector<32x256xf32> to vector<32x239xf32>
    %107 = tpu.concatenate %105, %106 in 1 : vector<32x17xf32>, vector<32x239xf32> -> vector<32x256xf32>
    %cst_52 = arith.constant 0.000000e+00 : f32
    %108 = vector.shape_cast %18 : vector<1x256xi1> to vector<1x256xi1>
    %109 = vector.broadcast %108 : vector<1x256xi1> to vector<32x256xi1>
    %110 = vector.broadcast %cst_52 : f32 to vector<32x256xf32>
    %111 = arith.select %109, %107, %110 : vector<32x256xi1>, vector<32x256xf32>
    %112 = arith.truncf %111 : vector<32x256xf32> to vector<32x256xbf16>
    %c0_53 = arith.constant 0 : index
    %c0_54 = arith.constant 0 : index
    %113 = vector.load %arg6[%c0_53, %c0_54] : memref<288x256xbf16, #tpu.memory_space<vmem>>, vector<32x256xbf16>
    tpu.vector_store %arg6[%c0_53, %c0_54], %112 {strides = array<i32>} : memref<288x256xbf16, #tpu.memory_space<vmem>>, vector<32x256xbf16>,
    %cst_55 = arith.constant 0.000000e+00 : f32
    %114 = vector.broadcast %cst_55 : f32 to vector<32x16xf32>
    %115 = vector.extract_strided_slice %104 {offsets = [0, 0], sizes = [32, 240], strides = [1, 1]} : vector<32x256xf32> to vector<32x240xf32>
    %116 = tpu.concatenate %114, %115 in 1 : vector<32x16xf32>, vector<32x240xf32> -> vector<32x256xf32>
    %117 = arith.truncf %116 : vector<32x256xf32> to vector<32x256xbf16>
    %c32_56 = arith.constant 32 : index
    %c0_57 = arith.constant 0 : index
    %118 = vector.load %arg6[%c32_56, %c0_57] : memref<288x256xbf16, #tpu.memory_space<vmem>>, vector<32x256xbf16>
    tpu.vector_store %arg6[%c32_56, %c0_57], %117 {strides = array<i32>} : memref<288x256xbf16, #tpu.memory_space<vmem>>, vector<32x256xbf16>,
    %cst_58 = arith.constant 0.000000e+00 : f32
    %119 = vector.broadcast %cst_58 : f32 to vector<32x15xf32>
    %120 = vector.extract_strided_slice %104 {offsets = [0, 0], sizes = [32, 241], strides = [1, 1]} : vector<32x256xf32> to vector<32x241xf32>
    %121 = tpu.concatenate %119, %120 in 1 : vector<32x15xf32>, vector<32x241xf32> -> vector<32x256xf32>
    %cst_59 = arith.constant 0.000000e+00 : f32
    %122 = vector.shape_cast %20 : vector<1x256xi1> to vector<1x256xi1>
    %123 = vector.broadcast %122 : vector<1x256xi1> to vector<32x256xi1>
    %124 = vector.broadcast %cst_59 : f32 to vector<32x256xf32>
    %125 = arith.select %123, %121, %124 : vector<32x256xi1>, vector<32x256xf32>
    %126 = arith.truncf %125 : vector<32x256xf32> to vector<32x256xbf16>
    %c64_60 = arith.constant 64 : index
    %c0_61 = arith.constant 0 : index
    %127 = vector.load %arg6[%c64_60, %c0_61] : memref<288x256xbf16, #tpu.memory_space<vmem>>, vector<32x256xbf16>
    tpu.vector_store %arg6[%c64_60, %c0_61], %126 {strides = array<i32>} : memref<288x256xbf16, #tpu.memory_space<vmem>>, vector<32x256xbf16>,
    %cst_62 = arith.constant 0.000000e+00 : f32
    %128 = vector.broadcast %cst_62 : f32 to vector<32x1xf32>
    %129 = vector.extract_strided_slice %104 {offsets = [0, 0], sizes = [32, 255], strides = [1, 1]} : vector<32x256xf32> to vector<32x255xf32>
    %130 = tpu.concatenate %128, %129 in 1 : vector<32x1xf32>, vector<32x255xf32> -> vector<32x256xf32>
    %cst_63 = arith.constant 0.000000e+00 : f32
    %131 = vector.shape_cast %18 : vector<1x256xi1> to vector<1x256xi1>
    %132 = vector.broadcast %131 : vector<1x256xi1> to vector<32x256xi1>
    %133 = vector.broadcast %cst_63 : f32 to vector<32x256xf32>
    %134 = arith.select %132, %130, %133 : vector<32x256xi1>, vector<32x256xf32>
    %135 = arith.truncf %134 : vector<32x256xf32> to vector<32x256xbf16>
    %c96_64 = arith.constant 96 : index
    %c0_65 = arith.constant 0 : index
    %136 = vector.load %arg6[%c96_64, %c0_65] : memref<288x256xbf16, #tpu.memory_space<vmem>>, vector<32x256xbf16>
    tpu.vector_store %arg6[%c96_64, %c0_65], %135 {strides = array<i32>} : memref<288x256xbf16, #tpu.memory_space<vmem>>, vector<32x256xbf16>,
    %137 = arith.truncf %104 : vector<32x256xf32> to vector<32x256xbf16>
    %c128_66 = arith.constant 128 : index
    %c0_67 = arith.constant 0 : index
    %138 = vector.load %arg6[%c128_66, %c0_67] : memref<288x256xbf16, #tpu.memory_space<vmem>>, vector<32x256xbf16>
    tpu.vector_store %arg6[%c128_66, %c0_67], %137 {strides = array<i32>} : memref<288x256xbf16, #tpu.memory_space<vmem>>, vector<32x256xbf16>,
    %cst_68 = arith.constant 0.000000e+00 : f32
    %139 = vector.broadcast %cst_68 : f32 to vector<32x1xf32>
    %140 = vector.extract_strided_slice %104 {offsets = [0, 1], sizes = [32, 255], strides = [1, 1]} : vector<32x256xf32> to vector<32x255xf32>
    %141 = tpu.concatenate %140, %139 in 1 : vector<32x255xf32>, vector<32x1xf32> -> vector<32x256xf32>
    %cst_69 = arith.constant 0.000000e+00 : f32
    %142 = vector.shape_cast %20 : vector<1x256xi1> to vector<1x256xi1>
    %143 = vector.broadcast %142 : vector<1x256xi1> to vector<32x256xi1>
    %144 = vector.broadcast %cst_69 : f32 to vector<32x256xf32>
    %145 = arith.select %143, %141, %144 : vector<32x256xi1>, vector<32x256xf32>
    %146 = arith.truncf %145 : vector<32x256xf32> to vector<32x256xbf16>
    %c160_70 = arith.constant 160 : index
    %c0_71 = arith.constant 0 : index
    %147 = vector.load %arg6[%c160_70, %c0_71] : memref<288x256xbf16, #tpu.memory_space<vmem>>, vector<32x256xbf16>
    tpu.vector_store %arg6[%c160_70, %c0_71], %146 {strides = array<i32>} : memref<288x256xbf16, #tpu.memory_space<vmem>>, vector<32x256xbf16>,
    %cst_72 = arith.constant 0.000000e+00 : f32
    %148 = vector.broadcast %cst_72 : f32 to vector<32x15xf32>
    %149 = vector.extract_strided_slice %104 {offsets = [0, 15], sizes = [32, 241], strides = [1, 1]} : vector<32x256xf32> to vector<32x241xf32>
    %150 = tpu.concatenate %149, %148 in 1 : vector<32x241xf32>, vector<32x15xf32> -> vector<32x256xf32>
    %cst_73 = arith.constant 0.000000e+00 : f32
    %151 = vector.shape_cast %18 : vector<1x256xi1> to vector<1x256xi1>
    %152 = vector.broadcast %151 : vector<1x256xi1> to vector<32x256xi1>
    %153 = vector.broadcast %cst_73 : f32 to vector<32x256xf32>
    %154 = arith.select %152, %150, %153 : vector<32x256xi1>, vector<32x256xf32>
    %155 = arith.truncf %154 : vector<32x256xf32> to vector<32x256xbf16>
    %c192_74 = arith.constant 192 : index
    %c0_75 = arith.constant 0 : index
    %156 = vector.load %arg6[%c192_74, %c0_75] : memref<288x256xbf16, #tpu.memory_space<vmem>>, vector<32x256xbf16>
    tpu.vector_store %arg6[%c192_74, %c0_75], %155 {strides = array<i32>} : memref<288x256xbf16, #tpu.memory_space<vmem>>, vector<32x256xbf16>,
    %cst_76 = arith.constant 0.000000e+00 : f32
    %157 = vector.broadcast %cst_76 : f32 to vector<32x16xf32>
    %158 = vector.extract_strided_slice %104 {offsets = [0, 16], sizes = [32, 240], strides = [1, 1]} : vector<32x256xf32> to vector<32x240xf32>
    %159 = tpu.concatenate %158, %157 in 1 : vector<32x240xf32>, vector<32x16xf32> -> vector<32x256xf32>
    %160 = arith.truncf %159 : vector<32x256xf32> to vector<32x256xbf16>
    %c224_77 = arith.constant 224 : index
    %c0_78 = arith.constant 0 : index
    %161 = vector.load %arg6[%c224_77, %c0_78] : memref<288x256xbf16, #tpu.memory_space<vmem>>, vector<32x256xbf16>
    tpu.vector_store %arg6[%c224_77, %c0_78], %160 {strides = array<i32>} : memref<288x256xbf16, #tpu.memory_space<vmem>>, vector<32x256xbf16>,
    %cst_79 = arith.constant 0.000000e+00 : f32
    %162 = vector.broadcast %cst_79 : f32 to vector<32x17xf32>
    %163 = vector.extract_strided_slice %104 {offsets = [0, 17], sizes = [32, 239], strides = [1, 1]} : vector<32x256xf32> to vector<32x239xf32>
    %164 = tpu.concatenate %163, %162 in 1 : vector<32x239xf32>, vector<32x17xf32> -> vector<32x256xf32>
    %cst_80 = arith.constant 0.000000e+00 : f32
    %165 = vector.shape_cast %20 : vector<1x256xi1> to vector<1x256xi1>
    %166 = vector.broadcast %165 : vector<1x256xi1> to vector<32x256xi1>
    %167 = vector.broadcast %cst_80 : f32 to vector<32x256xf32>
    %168 = arith.select %166, %164, %167 : vector<32x256xi1>, vector<32x256xf32>
    %169 = arith.truncf %168 : vector<32x256xf32> to vector<32x256xbf16>
    %c256_81 = arith.constant 256 : index
    %c0_82 = arith.constant 0 : index
    %170 = vector.load %arg6[%c256_81, %c0_82] : memref<288x256xbf16, #tpu.memory_space<vmem>>, vector<32x256xbf16>
    tpu.vector_store %arg6[%c256_81, %c0_82], %169 {strides = array<i32>} : memref<288x256xbf16, #tpu.memory_space<vmem>>, vector<32x256xbf16>,
    %c9 = arith.constant 9 : index
    %c0_83 = arith.constant 0 : index
    %c0_84 = arith.constant 0 : index
    %171 = vector.load %arg2[%c9, %c0_83, %c0_84] : memref<10x32x288xbf16, #tpu.memory_space<vmem>>, vector<1x32x288xbf16>
    %172 = vector.shape_cast %171 : vector<1x32x288xbf16> to vector<32x288xbf16>
    %c0_85 = arith.constant 0 : index
    %c0_86 = arith.constant 0 : index
    %173 = vector.load %arg6[%c0_85, %c0_86] : memref<288x256xbf16, #tpu.memory_space<vmem>>, vector<288x256xbf16>
    %cst_87 = arith.constant dense<0.000000e+00> : vector<32x256xf32>
    %174 = tpu.matmul %172, %173, %cst_87 {dimension_numbers = #tpu.dot_dimension_numbers<[1], [0], [0], [1], [0, 0, 1, 1], [], []>} : vector<32x288xbf16>, vector<288x256xbf16>, vector<32x256xf32> -> vector<32x256xf32>
    %c9_88 = arith.constant 9 : index
    %c0_89 = arith.constant 0 : index
    %c0_90 = arith.constant 0 : index
    %175 = vector.load %arg3[%c9_88, %c0_89, %c0_90] : memref<10x32x1xf32, #tpu.memory_space<vmem>>, vector<1x32x1xf32>
    %176 = vector.shape_cast %175 : vector<1x32x1xf32> to vector<32x1xf32>
    %177 = vector.broadcast %176 : vector<32x1xf32> to vector<32x256xf32>
    %178 = arith.addf %174, %177 : vector<32x256xf32>
    %179 = arith.addf %103, %178 : vector<32x256xf32>
    %c0_91 = arith.constant 0 : index
    %c0_92 = arith.constant 0 : index
    %c0_93 = arith.constant 0 : index
    %180 = vector.load %arg4[%c0_91, %c0_92, %c0_93] : memref<1x32x256xf32, #tpu.memory_space<vmem>>, vector<1x32x256xf32>
    %181 = vector.shape_cast %180 : vector<1x32x256xf32> to vector<32x256xf32>
    %182 = vector.shape_cast %179 : vector<32x256xf32> to vector<1x32x256xf32>
    tpu.vector_store %arg4[%c0_91, %c0_92, %c0_93], %182 {strides = array<i32>} : memref<1x32x256xf32, #tpu.memory_space<vmem>>, vector<1x32x256xf32>,
    return
  }
  func.func @transform_0(%arg0: i32) -> (i32, i32, i32) {
    %c0_i32 = arith.constant 0 : i32
    %c0_i32_0 = arith.constant 0 : i32
    %c0_i32_1 = arith.constant 0 : i32
    return %arg0, %c0_i32, %c0_i32_0 : i32, i32, i32
  }
  func.func @transform_1(%arg0: i32) -> (i32, i32, i32) {
    %c0_i32 = arith.constant 0 : i32
    %c0_i32_0 = arith.constant 0 : i32
    %c0_i32_1 = arith.constant 0 : i32
    %c0_i32_2 = arith.constant 0 : i32
    return %c0_i32, %c0_i32_0, %c0_i32_1 : i32, i32, i32
  }
  func.func @transform_2(%arg0: i32) -> (i32, i32, i32) {
    %c0_i32 = arith.constant 0 : i32
    %c0_i32_0 = arith.constant 0 : i32
    %c0_i32_1 = arith.constant 0 : i32
    %c0_i32_2 = arith.constant 0 : i32
    return %c0_i32, %c0_i32_0, %c0_i32_1 : i32, i32, i32
  }
  func.func @transform_3(%arg0: i32) -> (i32, i32, i32) {
    %c0_i32 = arith.constant 0 : i32
    %c0_i32_0 = arith.constant 0 : i32
    %c0_i32_1 = arith.constant 0 : i32
    return %arg0, %c0_i32, %c0_i32_0 : i32, i32, i32
  }
}

</mosaic_0001>

<llo_original>
// kernel: tpu_custom_call.1
$region0: #{tpu_custom_call.1}
  #allocation0 [shape = 'u32[]', space=smem, size = 0x4, offset = 0x4, fixed_abs, tag = 'smem constant byte address 0x4 - core index']
  #allocation1 [shape = 'u32[144,128]{1,0:T(1,128)}', space=vmem, size = 0x12000, scoped, tag = 'internal scratch']
  #allocation2 [shape = 'f32[32,256]{1,0:T(8,128)}', space=vmem, size = 0x8000, scoped, tag = 'scratch operand']
  #allocation3 [shape = 'bf16[288,256]{1,0:T(16,128)(2,1)}', space=vmem, size = 0x24000, scoped, tag = 'scratch operand']
  %s0 = inlined_call_operand.vmem [shape: f32[2,32,256], index: 0, kind: input, shape index: {}]
  %s1 = inlined_call_operand.hbm [shape: bf16[10,32,288], index: 1, kind: input, shape index: {}]
  %s2 = inlined_call_operand.vmem [shape: f32[10,32,1], index: 2, kind: input, shape index: {}]
  %s3 = inlined_call_operand.hbm [shape: f32[2,32,256], index: 3, kind: output, shape index: {}]
  %s4 = sld [smem:[#allocation0]]
  $region56: #{tpu_custom_call.1} parent=0
    _
  %s6 = ssub.s32 1, %s4
  %s7 = scalar_select 0, %s6, %s4
  $region1: #{tpu_custom_call.1} parent=0
    #allocation4 [shape = 'u8[245760]{0}', space=vmem, size = 0x3c000, scoped, tag = 'input window, operand 1, single buffered']
    #allocation5 [shape = 's32[2]{0}', space=sflag, size = 0x8, scoped, tag = 'scoped memory for tpu_custom_call.1']
    #allocation6 [shape = 's32[2]{0}', space=sflag, size = 0x8, scoped, tag = 'scoped memory for tpu_custom_call.1']
    #allocation7 [shape = 'u8[65536]{0}', space=vmem, size = 0x10000, scoped, tag = 'output window, operand 0']
    %8 = vsyncpa [#allocation5], 0
    %9 = vsyncpa [#allocation6], 0
    %s10 = scalar_lea.sflag [#allocation6], 1
    %11 = vsyncpa %s10, 0
    loop: start=0, step=1, limit=4
    $region2: #{tpu_custom_call.1} parent=1 // loop_pre_header
      _
    $region3: #{tpu_custom_call.1} parent=1 // loop_header
      %s13 = sphi 0, %s17
      %p14 = scmp.ge.s32.totalorder %s13, 4
      %s23 = sphi 0, %s25
      %s26 = sphi 0, %s23
      %s27 = sphi 0, %s26
      %s43 = sphi 0, %s27
      %s47 = sphi 0, %s47
      %s49 = sphi 0, %s47
      %s50 = sphi 0, %s49
      %s64 = sphi 0, %s50
      %s68 = sphi 0, %s68
      %s70 = sphi 0, %s68
      %s71 = sphi 0, %s70
      %s85 = sphi 0, %s71
      %s91 = sphi 0, %s93
      %s94 = sphi 0, %s91
      %s95 = sphi 0, %s94
      %s111 = sphi 0, %s95
    $region4: #{tpu_custom_call.1} parent=1 // loop_header_branch
      %16 = sbr.rel (%p14) target = $region8
    $region5: #{tpu_custom_call.1} parent=1 // loop_body
      %s18 = ssub.s32 %s13, 1
      %s19 = ssub.s32 %s13, 2
      %s20 = sadd.s32 %s13, 1
      %s21 = ssub.s32 %s13, %s20
      %p22 = scmp.eq.s32.totalorder %s21, 0
      %s24 = sadd.s32 %s23, 1
      %s25 = scalar_select %p22, %s23, %s24
      %p28 = pneg %p22
      %p29 = scmp.eq.s32.totalorder %s13, 1
      %p30 = por %p28, %p29
      %p31 = scmp.ne.s32.totalorder %s23, %s26
      %p32 = scmp.eq.s32.totalorder %s13, 0
      %p33 = por %p31, %p32
      %p34 = scmp.ne.s32.totalorder %s23, %s26
      %p35 = scmp.eq.s32.totalorder %s18, 1
      %p36 = por %p34, %p35
      %p37 = scmp.ne.s32.totalorder %s26, %s27
      %p38 = scmp.eq.s32.totalorder %s18, 0
      %p39 = por %p37, %p38
      %p40 = scmp.ne.s32.totalorder %s26, %s27
      %p41 = scmp.eq.s32.totalorder %s19, 1
      %p42 = por %p40, %p41
      %p44 = scmp.ne.s32.totalorder %s27, %s43
      %p45 = scmp.eq.s32.totalorder %s19, 0
      %p46 = por %p44, %p45
      %s48 = sadd.s32 %s47, 1
      %p51 = scmp.eq.s32.totalorder %s13, 1
      %p52 = scmp.ne.s32.totalorder %s47, %s49
      %p53 = scmp.eq.s32.totalorder %s13, 0
      %p54 = por %p52, %p53
      %p55 = scmp.ne.s32.totalorder %s47, %s49
      %p56 = scmp.eq.s32.totalorder %s18, 1
      %p57 = por %p55, %p56
      %p58 = scmp.ne.s32.totalorder %s49, %s50
      %p59 = scmp.eq.s32.totalorder %s18, 0
      %p60 = por %p58, %p59
      %p61 = scmp.ne.s32.totalorder %s49, %s50
      %p62 = scmp.eq.s32.totalorder %s19, 1
      %p63 = por %p61, %p62
      %p65 = scmp.ne.s32.totalorder %s50, %s64
      %p66 = scmp.eq.s32.totalorder %s19, 0
      %p67 = por %p65, %p66
      %s69 = sadd.s32 %s68, 1
      %p72 = scmp.eq.s32.totalorder %s13, 1
      %p73 = scmp.ne.s32.totalorder %s68, %s70
      %p74 = scmp.eq.s32.totalorder %s13, 0
      %p75 = por %p73, %p74
      %p76 = scmp.ne.s32.totalorder %s68, %s70
      %p77 = scmp.eq.s32.totalorder %s18, 1
      %p78 = por %p76, %p77
      %p79 = scmp.ne.s32.totalorder %s70, %s71
      %p80 = scmp.eq.s32.totalorder %s18, 0
      %p81 = por %p79, %p80
      %p82 = scmp.ne.s32.totalorder %s70, %s71
      %p83 = scmp.eq.s32.totalorder %s19, 1
      %p84 = por %p82, %p83
      %p86 = scmp.ne.s32.totalorder %s71, %s85
      %p87 = scmp.eq.s32.totalorder %s19, 0
      %p88 = por %p86, %p87
      %s89 = ssub.s32 %s13, %s20
      %p90 = scmp.eq.s32.totalorder %s89, 0
      %s92 = sadd.s32 %s91, 1
      %s93 = scalar_select %p90, %s91, %s92
      %p96 = pneg %p90
      %p97 = scmp.eq.s32.totalorder %s13, 1
      %p98 = por %p96, %p97
      %p99 = scmp.ne.s32.totalorder %s91, %s94
      %p100 = scmp.eq.s32.totalorder %s13, 0
      %p101 = por %p99, %p100
      %p102 = scmp.ne.s32.totalorder %s91, %s94
      %p103 = scmp.eq.s32.totalorder %s18, 1
      %p104 = por %p102, %p103
      %p105 = scmp.ne.s32.totalorder %s94, %s95
      %p106 = scmp.eq.s32.totalorder %s18, 0
      %p107 = por %p105, %p106
      %p108 = scmp.ne.s32.totalorder %s94, %s95
      %p109 = scmp.eq.s32.totalorder %s19, 1
      %p110 = por %p108, %p109
      %p112 = scmp.ne.s32.totalorder %s95, %s111
      %p113 = scmp.eq.s32.totalorder %s19, 0
      %p114 = por %p112, %p113
      %p115 = scmp.le.s32.totalorder 1, %s13
      %p116 = scmp.lt.s32.totalorder %s13, 3
      %p117 = pnand %p115, %p116
      %p118 = pneg %p117
      // Predicated region
      $region9: #{tpu_custom_call.1} parent=5 // pred_check
        _
      $region10: #{tpu_custom_call.1} parent=5 // pred_check_branch
        %120 = sbr.rel (%p117) target = $region12
      $region11: #{tpu_custom_call.1} parent=5 // pred_region
        %s121 = ssub.s32 %s13, 1
        // Predicated region
        $region13: #{tpu_custom_call.1} parent=11 // pred_check
          %p122 = pneg %p60
        $region14: #{tpu_custom_call.1} parent=11 // pred_check_branch
          %124 = sbr.rel (%p122) target = $region16
        $region15: #{tpu_custom_call.1} parent=11 // pred_region
          %s126 = ssub.s32 7680, 7680
          %127 = vsyncadd [#allocation5], %s126
          %s128 = sshll.u32 [#allocation4], 4
          %s129 = int_to_ptr.vmem [resolvable:$true] %s128
          %134 = dma.hbm_to_vmem [thread:$0]  %s1, 7680, %s129, [#allocation5], 192, 192, 12
        $region16: #{tpu_custom_call.1} parent=11 // pred_fallthru
          _
        // Predicated region
        $region17: #{tpu_custom_call.1} parent=11 // pred_check
          %p135 = pneg %p81
        $region18: #{tpu_custom_call.1} parent=11 // pred_check_branch
          %137 = sbr.rel (%p135) target = $region20
        $region19: #{tpu_custom_call.1} parent=11 // pred_region
          _
        $region20: #{tpu_custom_call.1} parent=11 // pred_fallthru
          _
      $region12: #{tpu_custom_call.1} parent=5 // pred_fallthru
        _
      %p138 = scmp.lt.s32.totalorder %s13, 2
      // Predicated region
      $region21: #{tpu_custom_call.1} parent=5 // pred_check
        %p139 = pneg %p138
      $region22: #{tpu_custom_call.1} parent=5 // pred_check_branch
        %141 = sbr.rel (%p139) target = $region24
      $region23: #{tpu_custom_call.1} parent=5 // pred_region
        // Predicated region
        $region25: #{tpu_custom_call.1} parent=23 // pred_check
          %p142 = pneg %p33
        $region26: #{tpu_custom_call.1} parent=23 // pred_check_branch
          %144 = sbr.rel (%p142) target = $region28
        $region27: #{tpu_custom_call.1} parent=23 // pred_region
          %p145 = scmp.lt.s32.totalorder %s13, 1
          %s146 = scalar_select %p145, %s13, 1
          %s147 = smul.addr %s146, 8
          %s148 = smul.addr %s147, 8
          %s149 = scalar_lea.vmem %s0, %s148
        $region28: #{tpu_custom_call.1} parent=23 // pred_fallthru
          _
      $region24: #{tpu_custom_call.1} parent=5 // pred_fallthru
        _
      %p150 = scmp.le.s32.totalorder 1, %s13
      %p151 = scmp.lt.s32.totalorder %s13, 3
      %p152 = pnand %p150, %p151
      %p153 = pneg %p152
      // Predicated region
      $region29: #{tpu_custom_call.1} parent=5 // pred_check
        _
      $region30: #{tpu_custom_call.1} parent=5 // pred_check_branch
        %155 = sbr.rel (%p152) target = $region32
      $region31: #{tpu_custom_call.1} parent=5 // pred_region
        %s156 = ssub.s32 %s13, 1
        // Predicated region
        $region33: #{tpu_custom_call.1} parent=31 // pred_check
          %p157 = pneg %p60
        $region34: #{tpu_custom_call.1} parent=31 // pred_check_branch
          %159 = sbr.rel (%p157) target = $region36
        $region35: #{tpu_custom_call.1} parent=31 // pred_region
          %160 = dma.done [#allocation5], 7680
        $region36: #{tpu_custom_call.1} parent=31 // pred_fallthru
          _
        %p161 = scmp.lt.s32.totalorder %s18, 1
        %s162 = scalar_select %p161, %s18, 1
        %s163 = smul.addr %s162, 8
        %s164 = smul.addr %s163, 8
        %s165 = scalar_lea.vmem %s0, %s164
        %p166 = pneg %p39
        %p167 = pneg %p36
        %p168 = pneg %p60
        %p169 = pneg %p57
        %p170 = pneg %p81
        %p171 = pneg %p78
        %p172 = pneg %p107
        %p173 = pneg %p104
        %s174 = sand.u32 %s94, 1
        %s175 = scalar_lea.sflag [#allocation6], %s174
        %s176 = sand.u32 %s94, 1
        %s177 = smul.addr %s176, 64
        %s178 = scalar_lea.vmem [#allocation7], %s177
        %p179 = scmp.lt.s32.totalorder %s18, 1
        %s180 = scalar_select %p179, %s18, 1
        %s181 = smul.addr %s180, 8
        %s182 = smul.addr %s181, 8
        %s183 = scalar_lea.vmem %s0, %s182
        %v185 = vlaneseq
        %v186 = vand.u32 %v185, 127
        %v187 = vadd.s32 %v186, 128
        %vm188 = vcmp.lt.s32.totalorder %v186, 0
        %v189 = vsub.s32 0, %v186
        %v190 = vsel %vm188, %v189, %v186
        %v191 = vshrl.u32 %v190, 4
        %v192 = vand.u32 %v190, 15
        %v193 = vsub.s32 0, %v192
        %v194 = vsel %vm188, %v193, %v192
        %vm195 = vcmp.lt.s32.totalorder %v187, 0
        %v196 = vsub.s32 0, %v187
        %v197 = vsel %vm195, %v196, %v187
        %v198 = vshrl.u32 %v197, 4
        %v199 = vand.u32 %v197, 15
        %v200 = vsub.s32 0, %v199
        %v201 = vsel %vm195, %v200, %v199
        %vm202 = vcmp.ne.s32.totalorder %v194, 0
        %vm203 = vcmp.ne.s32.totalorder %v201, 0
        %vm204 = vcmp.lt.s32.totalorder %v194, 0
        %vm205 = vcmp.lt.s32.totalorder %v201, 0
        %vm206 = vmand %vm204, %vm202
        %vm207 = vmand %vm205, %vm203
        %v208 = vadd.s32 %v194, 16
        %v209 = vadd.s32 %v201, 16
        %v210 = vsel %vm206, %v208, %v194
        %v211 = vsel %vm207, %v209, %v201
        %vm212 = vcmp.ne.s32.totalorder %v210, 0
        %vm213 = vcmp.ne.s32.totalorder %v211, 0
        %vm214 = vcmp.ne.s32.totalorder %v210, 15
        %vm215 = vcmp.ne.s32.totalorder %v211, 15
        %v216 = vld [vmem:[%s183] sm:$0xff]
        %v217 = vld [vmem:[%s183 + $0x8] sm:$0xff]
        %v218 = vld [vmem:[%s183 + $0x10] sm:$0xff]
        %v219 = vld [vmem:[%s183 + $0x18] sm:$0xff]
        %v220 = vld [vmem:[%s183 + $0x20] sm:$0xff]
        %v221 = vld [vmem:[%s183 + $0x28] sm:$0xff]
        %v222 = vld [vmem:[%s183 + $0x30] sm:$0xff]
        %v223 = vld [vmem:[%s183 + $0x38] sm:$0xff]
        %232 = vrot.lane.b32.xlu0 %v216, 17
        %v233 = vpop.permute.xlu0 %232
        %234 = vrot.lane.b32.xlu0 %v217, 17
        %v235 = vpop.permute.xlu0 %234
        %236 = vrot.lane.b32.xlu0 %v218, 17
        %v237 = vpop.permute.xlu0 %236
        %238 = vrot.lane.b32.xlu0 %v219, 17
        %v239 = vpop.permute.xlu0 %238
        %240 = vrot.lane.b32.xlu0 %v220, 17
        %v241 = vpop.permute.xlu0 %240
        %242 = vrot.lane.b32.xlu0 %v221, 17
        %v243 = vpop.permute.xlu0 %242
        %244 = vrot.lane.b32.xlu0 %v222, 17
        %v245 = vpop.permute.xlu0 %244
        %246 = vrot.lane.b32.xlu0 %v223, 17
        %v247 = vpop.permute.xlu0 %246
        %vm248 = vcmask 138240
        %v249 = vsel %vm248, %v233, %v235
        %v250 = vsel %vm248, %v237, %v239
        %v251 = vsel %vm248, %v241, %v243
        %v252 = vsel %vm248, %v245, %v247
        %v261 = vsel %vm248, 0.0, %v233
        %v262 = vsel %vm248, 0.0, %v237
        %v263 = vsel %vm248, 0.0, %v241
        %v264 = vsel %vm248, 0.0, %v245
        %v265 = vsel %vm212, 1, 0
        %v266 = vsel %vm213, 1, 0
        %vm267 = vcmp.eq.s32.totalorder %v265, 1
        %vm268 = vcmp.eq.s32.totalorder %v266, 1
        %v269 = vsel %vm267, %v261, 0.0
        %v270 = vsel %vm268, %v249, 0.0
        %v271 = vsel %vm267, %v262, 0.0
        %v272 = vsel %vm268, %v250, 0.0
        %v273 = vsel %vm267, %v263, 0.0
        %v274 = vsel %vm268, %v251, 0.0
        %v275 = vsel %vm267, %v264, 0.0
        %v276 = vsel %vm268, %v252, 0.0
        %v277 = vpack.c.bf16 %v271, %v269
        %v278 = vpack.c.bf16 %v272, %v270
        %v279 = vpack.c.bf16 %v275, %v273
        %v280 = vpack.c.bf16 %v276, %v274
        %281 = vst [vmem:[#allocation3] sm:$0xff] %v277
        %282 = vst [vmem:[#allocation3 + $0x8] sm:$0xff] %v278
        %283 = vst [vmem:[#allocation3 + $0x10] sm:$0xff] %v279
        %284 = vst [vmem:[#allocation3 + $0x18] sm:$0xff] %v280
        %285 = vrot.lane.b32.xlu0 %v216, 16
        %v286 = vpop.permute.xlu0 %285
        %287 = vrot.lane.b32.xlu0 %v217, 16
        %v288 = vpop.permute.xlu0 %287
        %289 = vrot.lane.b32.xlu0 %v218, 16
        %v290 = vpop.permute.xlu0 %289
        %291 = vrot.lane.b32.xlu0 %v219, 16
        %v292 = vpop.permute.xlu0 %291
        %293 = vrot.lane.b32.xlu0 %v220, 16
        %v294 = vpop.permute.xlu0 %293
        %295 = vrot.lane.b32.xlu0 %v221, 16
        %v296 = vpop.permute.xlu0 %295
        %297 = vrot.lane.b32.xlu0 %v222, 16
        %v298 = vpop.permute.xlu0 %297
        %299 = vrot.lane.b32.xlu0 %v223, 16
        %v300 = vpop.permute.xlu0 %299
        %vm301 = vcmask 130048
        %v302 = vsel %vm301, %v286, %v288
        %v303 = vsel %vm301, %v290, %v292
        %v304 = vsel %vm301, %v294, %v296
        %v305 = vsel %vm301, %v298, %v300
        %v314 = vsel %vm301, 0.0, %v286
        %v315 = vsel %vm301, 0.0, %v290
        %v316 = vsel %vm301, 0.0, %v294
        %v317 = vsel %vm301, 0.0, %v298
        %v318 = vpack.c.bf16 %v315, %v314
        %v319 = vpack.c.bf16 %v303, %v302
        %v320 = vpack.c.bf16 %v317, %v316
        %v321 = vpack.c.bf16 %v305, %v304
        %322 = vst [vmem:[#allocation3 + $0x20] sm:$0xff] %v318
        %323 = vst [vmem:[#allocation3 + $0x28] sm:$0xff] %v319
        %324 = vst [vmem:[#allocation3 + $0x30] sm:$0xff] %v320
        %325 = vst [vmem:[#allocation3 + $0x38] sm:$0xff] %v321
        %326 = vrot.lane.b32.xlu0 %v216, 15
        %v327 = vpop.permute.xlu0 %326
        %328 = vrot.lane.b32.xlu0 %v217, 15
        %v329 = vpop.permute.xlu0 %328
        %330 = vrot.lane.b32.xlu0 %v218, 15
        %v331 = vpop.permute.xlu0 %330
        %332 = vrot.lane.b32.xlu0 %v219, 15
        %v333 = vpop.permute.xlu0 %332
        %334 = vrot.lane.b32.xlu0 %v220, 15
        %v335 = vpop.permute.xlu0 %334
        %336 = vrot.lane.b32.xlu0 %v221, 15
        %v337 = vpop.permute.xlu0 %336
        %338 = vrot.lane.b32.xlu0 %v222, 15
        %v339 = vpop.permute.xlu0 %338
        %340 = vrot.lane.b32.xlu0 %v223, 15
        %v341 = vpop.permute.xlu0 %340
        %vm342 = vcmask 121856
        %v343 = vsel %vm342, %v327, %v329
        %v344 = vsel %vm342, %v331, %v333
        %v345 = vsel %vm342, %v335, %v337
        %v346 = vsel %vm342, %v339, %v341
        %v355 = vsel %vm342, 0.0, %v327
        %v356 = vsel %vm342, 0.0, %v331
        %v357 = vsel %vm342, 0.0, %v335
        %v358 = vsel %vm342, 0.0, %v339
        %v359 = vsel %vm214, 1, 0
        %v360 = vsel %vm215, 1, 0
        %vm361 = vcmp.eq.s32.totalorder %v359, 1
        %vm362 = vcmp.eq.s32.totalorder %v360, 1
        %v363 = vsel %vm361, %v355, 0.0
        %v364 = vsel %vm362, %v343, 0.0
        %v365 = vsel %vm361, %v356, 0.0
        %v366 = vsel %vm362, %v344, 0.0
        %v367 = vsel %vm361, %v357, 0.0
        %v368 = vsel %vm362, %v345, 0.0
        %v369 = vsel %vm361, %v358, 0.0
        %v370 = vsel %vm362, %v346, 0.0
        %v371 = vpack.c.bf16 %v365, %v363
        %v372 = vpack.c.bf16 %v366, %v364
        %v373 = vpack.c.bf16 %v369, %v367
        %v374 = vpack.c.bf16 %v370, %v368
        %375 = vst [vmem:[#allocation3 + $0x40] sm:$0xff] %v371
        %376 = vst [vmem:[#allocation3 + $0x48] sm:$0xff] %v372
        %377 = vst [vmem:[#allocation3 + $0x50] sm:$0xff] %v373
        %378 = vst [vmem:[#allocation3 + $0x58] sm:$0xff] %v374
        %379 = vrot.lane.b32.xlu0 %v216, 1
        %v380 = vpop.permute.xlu0 %379
        %381 = vrot.lane.b32.xlu0 %v217, 1
        %v382 = vpop.permute.xlu0 %381
        %383 = vrot.lane.b32.xlu0 %v218, 1
        %v384 = vpop.permute.xlu0 %383
        %385 = vrot.lane.b32.xlu0 %v219, 1
        %v386 = vpop.permute.xlu0 %385
        %387 = vrot.lane.b32.xlu0 %v220, 1
        %v388 = vpop.permute.xlu0 %387
        %389 = vrot.lane.b32.xlu0 %v221, 1
        %v390 = vpop.permute.xlu0 %389
        %391 = vrot.lane.b32.xlu0 %v222, 1
        %v392 = vpop.permute.xlu0 %391
        %393 = vrot.lane.b32.xlu0 %v223, 1
        %v394 = vpop.permute.xlu0 %393
        %vm395 = vcmask 7168
        %v396 = vsel %vm395, %v380, %v382
        %v397 = vsel %vm395, %v384, %v386
        %v398 = vsel %vm395, %v388, %v390
        %v399 = vsel %vm395, %v392, %v394
        %v408 = vsel %vm395, 0.0, %v380
        %v409 = vsel %vm395, 0.0, %v384
        %v410 = vsel %vm395, 0.0, %v388
        %v411 = vsel %vm395, 0.0, %v392
        %v412 = vsel %vm267, %v408, 0.0
        %v413 = vsel %vm268, %v396, 0.0
        %v414 = vsel %vm267, %v409, 0.0
        %v415 = vsel %vm268, %v397, 0.0
        %v416 = vsel %vm267, %v410, 0.0
        %v417 = vsel %vm268, %v398, 0.0
        %v418 = vsel %vm267, %v411, 0.0
        %v419 = vsel %vm268, %v399, 0.0
        %v420 = vpack.c.bf16 %v414, %v412
        %v421 = vpack.c.bf16 %v415, %v413
        %v422 = vpack.c.bf16 %v418, %v416
        %v423 = vpack.c.bf16 %v419, %v417
        %424 = vst [vmem:[#allocation3 + $0x60] sm:$0xff] %v420
        %425 = vst [vmem:[#allocation3 + $0x68] sm:$0xff] %v421
        %426 = vst [vmem:[#allocation3 + $0x70] sm:$0xff] %v422
        %427 = vst [vmem:[#allocation3 + $0x78] sm:$0xff] %v423
        %v428 = vpack.c.bf16 %v218, %v216
        %v429 = vpack.c.bf16 %v219, %v217
        %v430 = vpack.c.bf16 %v222, %v220
        %v431 = vpack.c.bf16 %v223, %v221
        %432 = vst [vmem:[#allocation3 + $0x80] sm:$0xff] %v428
        %433 = vst [vmem:[#allocation3 + $0x88] sm:$0xff] %v429
        %434 = vst [vmem:[#allocation3 + $0x90] sm:$0xff] %v430
        %435 = vst [vmem:[#allocation3 + $0x98] sm:$0xff] %v431
        %436 = vrot.lane.b32.xlu0 %v216, 127
        %v437 = vpop.permute.xlu0 %436
        %438 = vrot.lane.b32.xlu0 %v217, 127
        %v439 = vpop.permute.xlu0 %438
        %440 = vrot.lane.b32.xlu0 %v218, 127
        %v441 = vpop.permute.xlu0 %440
        %442 = vrot.lane.b32.xlu0 %v219, 127
        %v443 = vpop.permute.xlu0 %442
        %444 = vrot.lane.b32.xlu0 %v220, 127
        %v445 = vpop.permute.xlu0 %444
        %446 = vrot.lane.b32.xlu0 %v221, 127
        %v447 = vpop.permute.xlu0 %446
        %448 = vrot.lane.b32.xlu0 %v222, 127
        %v449 = vpop.permute.xlu0 %448
        %450 = vrot.lane.b32.xlu0 %v223, 127
        %v451 = vpop.permute.xlu0 %450
        %vm452 = vcmask 1039360
        %v453 = vsel %vm452, %v437, %v439
        %v454 = vsel %vm452, %v441, %v443
        %v455 = vsel %vm452, %v445, %v447
        %v456 = vsel %vm452, %v449, %v451
        %v465 = vsel %vm452, %v439, 0.0
        %v466 = vsel %vm452, %v443, 0.0
        %v467 = vsel %vm452, %v447, 0.0
        %v468 = vsel %vm452, %v451, 0.0
        %v469 = vsel %vm361, %v453, 0.0
        %v470 = vsel %vm362, %v465, 0.0
        %v471 = vsel %vm361, %v454, 0.0
        %v472 = vsel %vm362, %v466, 0.0
        %v473 = vsel %vm361, %v455, 0.0
        %v474 = vsel %vm362, %v467, 0.0
        %v475 = vsel %vm361, %v456, 0.0
        %v476 = vsel %vm362, %v468, 0.0
        %v477 = vpack.c.bf16 %v471, %v469
        %v478 = vpack.c.bf16 %v472, %v470
        %v479 = vpack.c.bf16 %v475, %v473
        %v480 = vpack.c.bf16 %v476, %v474
        %481 = vst [vmem:[#allocation3 + $0xa0] sm:$0xff] %v477
        %482 = vst [vmem:[#allocation3 + $0xa8] sm:$0xff] %v478
        %483 = vst [vmem:[#allocation3 + $0xb0] sm:$0xff] %v479
        %484 = vst [vmem:[#allocation3 + $0xb8] sm:$0xff] %v480
        %485 = vrot.lane.b32.xlu0 %v216, 113
        %v486 = vpop.permute.xlu0 %485
        %487 = vrot.lane.b32.xlu0 %v217, 113
        %v488 = vpop.permute.xlu0 %487
        %489 = vrot.lane.b32.xlu0 %v218, 113
        %v490 = vpop.permute.xlu0 %489
        %491 = vrot.lane.b32.xlu0 %v219, 113
        %v492 = vpop.permute.xlu0 %491
        %493 = vrot.lane.b32.xlu0 %v220, 113
        %v494 = vpop.permute.xlu0 %493
        %495 = vrot.lane.b32.xlu0 %v221, 113
        %v496 = vpop.permute.xlu0 %495
        %497 = vrot.lane.b32.xlu0 %v222, 113
        %v498 = vpop.permute.xlu0 %497
        %499 = vrot.lane.b32.xlu0 %v223, 113
        %v500 = vpop.permute.xlu0 %499
        %vm501 = vcmask 924672
        %v502 = vsel %vm501, %v486, %v488
        %v503 = vsel %vm501, %v490, %v492
        %v504 = vsel %vm501, %v494, %v496
        %v505 = vsel %vm501, %v498, %v500
        %v514 = vsel %vm501, %v488, 0.0
        %v515 = vsel %vm501, %v492, 0.0
        %v516 = vsel %vm501, %v496, 0.0
        %v517 = vsel %vm501, %v500, 0.0
        %v518 = vsel %vm267, %v502, 0.0
        %v519 = vsel %vm268, %v514, 0.0
        %v520 = vsel %vm267, %v503, 0.0
        %v521 = vsel %vm268, %v515, 0.0
        %v522 = vsel %vm267, %v504, 0.0
        %v523 = vsel %vm268, %v516, 0.0
        %v524 = vsel %vm267, %v505, 0.0
        %v525 = vsel %vm268, %v517, 0.0
        %v526 = vpack.c.bf16 %v520, %v518
        %v527 = vpack.c.bf16 %v521, %v519
        %v528 = vpack.c.bf16 %v524, %v522
        %v529 = vpack.c.bf16 %v525, %v523
        %530 = vst [vmem:[#allocation3 + $0xc0] sm:$0xff] %v526
        %531 = vst [vmem:[#allocation3 + $0xc8] sm:$0xff] %v527
        %532 = vst [vmem:[#allocation3 + $0xd0] sm:$0xff] %v528
        %533 = vst [vmem:[#allocation3 + $0xd8] sm:$0xff] %v529
        %534 = vrot.lane.b32.xlu0 %v216, 112
        %v535 = vpop.permute.xlu0 %534
        %536 = vrot.lane.b32.xlu0 %v217, 112
        %v537 = vpop.permute.xlu0 %536
        %538 = vrot.lane.b32.xlu0 %v218, 112
        %v539 = vpop.permute.xlu0 %538
        %540 = vrot.lane.b32.xlu0 %v219, 112
        %v541 = vpop.permute.xlu0 %540
        %542 = vrot.lane.b32.xlu0 %v220, 112
        %v543 = vpop.permute.xlu0 %542
        %544 = vrot.lane.b32.xlu0 %v221, 112
        %v545 = vpop.permute.xlu0 %544
        %546 = vrot.lane.b32.xlu0 %v222, 112
        %v547 = vpop.permute.xlu0 %546
        %548 = vrot.lane.b32.xlu0 %v223, 112
        %v549 = vpop.permute.xlu0 %548
        %vm550 = vcmask 916480
        %v551 = vsel %vm550, %v535, %v537
        %v552 = vsel %vm550, %v539, %v541
        %v553 = vsel %vm550, %v543, %v545
        %v554 = vsel %vm550, %v547, %v549
        %v563 = vsel %vm550, %v537, 0.0
        %v564 = vsel %vm550, %v541, 0.0
        %v565 = vsel %vm550, %v545, 0.0
        %v566 = vsel %vm550, %v549, 0.0
        %v567 = vpack.c.bf16 %v552, %v551
        %v568 = vpack.c.bf16 %v564, %v563
        %v569 = vpack.c.bf16 %v554, %v553
        %v570 = vpack.c.bf16 %v566, %v565
        %571 = vst [vmem:[#allocation3 + $0xe0] sm:$0xff] %v567
        %572 = vst [vmem:[#allocation3 + $0xe8] sm:$0xff] %v568
        %573 = vst [vmem:[#allocation3 + $0xf0] sm:$0xff] %v569
        %574 = vst [vmem:[#allocation3 + $0xf8] sm:$0xff] %v570
        %575 = vrot.lane.b32.xlu0 %v216, 111
        %v576 = vpop.permute.xlu0 %575
        %577 = vrot.lane.b32.xlu0 %v217, 111
        %v578 = vpop.permute.xlu0 %577
        %579 = vrot.lane.b32.xlu0 %v218, 111
        %v580 = vpop.permute.xlu0 %579
        %581 = vrot.lane.b32.xlu0 %v219, 111
        %v582 = vpop.permute.xlu0 %581
        %583 = vrot.lane.b32.xlu0 %v220, 111
        %v584 = vpop.permute.xlu0 %583
        %585 = vrot.lane.b32.xlu0 %v221, 111
        %v586 = vpop.permute.xlu0 %585
        %587 = vrot.lane.b32.xlu0 %v222, 111
        %v588 = vpop.permute.xlu0 %587
        %589 = vrot.lane.b32.xlu0 %v223, 111
        %v590 = vpop.permute.xlu0 %589
        %vm591 = vcmask 908288
        %v592 = vsel %vm591, %v576, %v578
        %v593 = vsel %vm591, %v580, %v582
        %v594 = vsel %vm591, %v584, %v586
        %v595 = vsel %vm591, %v588, %v590
        %v604 = vsel %vm591, %v578, 0.0
        %v605 = vsel %vm591, %v582, 0.0
        %v606 = vsel %vm591, %v586, 0.0
        %v607 = vsel %vm591, %v590, 0.0
        %v608 = vsel %vm361, %v592, 0.0
        %v609 = vsel %vm362, %v604, 0.0
        %v610 = vsel %vm361, %v593, 0.0
        %v611 = vsel %vm362, %v605, 0.0
        %v612 = vsel %vm361, %v594, 0.0
        %v613 = vsel %vm362, %v606, 0.0
        %v614 = vsel %vm361, %v595, 0.0
        %v615 = vsel %vm362, %v607, 0.0
        %v616 = vpack.c.bf16 %v610, %v608
        %v617 = vpack.c.bf16 %v611, %v609
        %v618 = vpack.c.bf16 %v614, %v612
        %v619 = vpack.c.bf16 %v615, %v613
        %620 = vst [vmem:[#allocation3 + $0x100] sm:$0xff] %v616
        %621 = vst [vmem:[#allocation3 + $0x108] sm:$0xff] %v617
        %622 = vst [vmem:[#allocation3 + $0x110] sm:$0xff] %v618
        %623 = vst [vmem:[#allocation3 + $0x118] sm:$0xff] %v619
        %v624 = vld [vmem:[#allocation4] sm:$0xff]
        %v625 = vld [vmem:[#allocation4 + $0x8] sm:$0xf]
        %v626 = vld [vmem:[#allocation4 + $0xc] sm:$0xff]
        %v627 = vld [vmem:[#allocation4 + $0x14] sm:$0xf]
        %v628 = vld [vmem:[#allocation4 + $0x18] sm:$0xff]
        %v629 = vld [vmem:[#allocation4 + $0x20] sm:$0xf]
        %v630 = vld [vmem:[#allocation4 + $0x24] sm:$0xff]
        %v631 = vld [vmem:[#allocation4 + $0x2c] sm:$0xf]
        %v632 = vld [vmem:[#allocation3] sm:$0xff]
        %v633 = vld [vmem:[#allocation3 + $0x8] sm:$0xff]
        %v634 = vld [vmem:[#allocation3 + $0x10] sm:$0xff]
        %v635 = vld [vmem:[#allocation3 + $0x18] sm:$0xff]
        %v636 = vld [vmem:[#allocation3 + $0x20] sm:$0xff]
        %v637 = vld [vmem:[#allocation3 + $0x28] sm:$0xff]
        %v638 = vld [vmem:[#allocation3 + $0x30] sm:$0xff]
        %v639 = vld [vmem:[#allocation3 + $0x38] sm:$0xff]
        %v640 = vld [vmem:[#allocation3 + $0x40] sm:$0xff]
        %v641 = vld [vmem:[#allocation3 + $0x48] sm:$0xff]
        %v642 = vld [vmem:[#allocation3 + $0x50] sm:$0xff]
        %v643 = vld [vmem:[#allocation3 + $0x58] sm:$0xff]
        %v644 = vld [vmem:[#allocation3 + $0x60] sm:$0xff]
        %v645 = vld [vmem:[#allocation3 + $0x68] sm:$0xff]
        %v646 = vld [vmem:[#allocation3 + $0x70] sm:$0xff]
        %v647 = vld [vmem:[#allocation3 + $0x78] sm:$0xff]
        %v648 = vld [vmem:[#allocation3 + $0x80] sm:$0xff]
        %v649 = vld [vmem:[#allocation3 + $0x88] sm:$0xff]
        %v650 = vld [vmem:[#allocation3 + $0x90] sm:$0xff]
        %v651 = vld [vmem:[#allocation3 + $0x98] sm:$0xff]
        %v652 = vld [vmem:[#allocation3 + $0xa0] sm:$0xff]
        %v653 = vld [vmem:[#allocation3 + $0xa8] sm:$0xff]
        %v654 = vld [vmem:[#allocation3 + $0xb0] sm:$0xff]
        %v655 = vld [vmem:[#allocation3 + $0xb8] sm:$0xff]
        %v656 = vld [vmem:[#allocation3 + $0xc0] sm:$0xff]
        %v657 = vld [vmem:[#allocation3 + $0xc8] sm:$0xff]
        %v658 = vld [vmem:[#allocation3 + $0xd0] sm:$0xff]
        %v659 = vld [vmem:[#allocation3 + $0xd8] sm:$0xff]
        %v660 = vld [vmem:[#allocation3 + $0xe0] sm:$0xff]
        %v661 = vld [vmem:[#allocation3 + $0xe8] sm:$0xff]
        %v662 = vld [vmem:[#allocation3 + $0xf0] sm:$0xff]
        %v663 = vld [vmem:[#allocation3 + $0xf8] sm:$0xff]
        %v664 = vld [vmem:[#allocation3 + $0x100] sm:$0xff]
        %v665 = vld [vmem:[#allocation3 + $0x108] sm:$0xff]
        %v666 = vld [vmem:[#allocation3 + $0x110] sm:$0xff]
        %v667 = vld [vmem:[#allocation3 + $0x118] sm:$0xff]
        %v668 = vld [vmem:[%s2] sm:$0xff]
        %v669 = vld [vmem:[%s2 + $0x8] sm:$0xff]
        %v670 = vld [vmem:[%s2 + $0x10] sm:$0xff]
        %v671 = vld [vmem:[%s2 + $0x18] sm:$0xff]
        %673 = vset.pattern.permute.xlu0 0
        %674 = vperm.xlu0 %673, %v668
        %v675 = vpop.permute.xlu0 %674
        %678 = vset.pattern.permute.xlu0 0
        %679 = vperm.xlu0 %678, %v669
        %v680 = vpop.permute.xlu0 %679
        %683 = vset.pattern.permute.xlu0 0
        %684 = vperm.xlu0 %683, %v670
        %v685 = vpop.permute.xlu0 %684
        %688 = vset.pattern.permute.xlu0 0
        %689 = vperm.xlu0 %688, %v671
        %v690 = vpop.permute.xlu0 %689
        %v700 = vunpack.c.l.b16 %v624
        %v701 = vunpack.c.h.b16 %v624
        %v702 = vunpack.c.l.b16 %v625
        %v703 = vunpack.c.l.b16 %v626
        %v704 = vunpack.c.h.b16 %v626
        %v705 = vunpack.c.l.b16 %v627
        %v706 = vunpack.c.l.b16 %v628
        %v707 = vunpack.c.h.b16 %v628
        %v708 = vunpack.c.l.b16 %v629
        %v709 = vunpack.c.l.b16 %v630
        %v710 = vunpack.c.h.b16 %v630
        %v711 = vunpack.c.l.b16 %v631
        %v712 = vpack.c.b16 %v703, %v700
        %v713 = vpack.c.b16 %v704, %v701
        %v714 = vpack.c.b16 %v705, %v702
        %v715 = vpack.c.b16 %v709, %v706
        %v716 = vpack.c.b16 %v710, %v707
        %v717 = vpack.c.b16 %v711, %v708
        %vm722 = vcmask 261120
        %v724 = vsel %vm722, %v714, 0
        %v727 = vsel %vm722, %v717, 0
        %729 = vmatprep.subr.bf16.mxu0 %v633
        %730 = vmatpush1.bf16.msra.mxu0 %v632
        %731 = vmatprep.subr.bf16.mxu0 %v635
        %732 = vmatpush1.bf16.msra.mxu0 %v634
        %733 = vmatprep.subr.bf16.mxu0 %v637
        %734 = vmatpush1.bf16.msra.mxu0 %v636
        %735 = vmatprep.subr.bf16.mxu0 %v639
        %736 = vmatpush1.bf16.msra.mxu0 %v638
        %737 = vmatprep.subr.bf16.mxu0 %v641
        %738 = vmatpush1.bf16.msra.mxu0 %v640
        %739 = vmatprep.subr.bf16.mxu0 %v643
        %740 = vmatpush1.bf16.msra.mxu0 %v642
        %741 = vmatprep.subr.bf16.mxu0 %v645
        %742 = vmatpush1.bf16.msra.mxu0 %v644
        %743 = vmatprep.subr.bf16.mxu0 %v647
        %744 = vmatpush1.bf16.msra.mxu0 %v646
        %745 = vmatprep.subr.bf16.mxu0 %v649
        %746 = vmatpush1.bf16.msra.mxu0 %v648
        %747 = vmatprep.subr.bf16.mxu0 %v651
        %748 = vmatpush1.bf16.msra.mxu0 %v650
        %749 = vmatprep.subr.bf16.mxu0 %v653
        %750 = vmatpush1.bf16.msra.mxu0 %v652
        %751 = vmatprep.subr.bf16.mxu0 %v655
        %752 = vmatpush1.bf16.msra.mxu0 %v654
        %753 = vmatprep.subr.bf16.mxu0 %v657
        %754 = vmatpush1.bf16.msra.mxu0 %v656
        %755 = vmatprep.subr.bf16.mxu0 %v659
        %756 = vmatpush1.bf16.msra.mxu0 %v658
        %757 = vmatprep.subr.bf16.mxu0 %v661
        %758 = vmatpush1.bf16.msra.mxu0 %v660
        %759 = vmatprep.subr.bf16.mxu0 %v663
        %760 = vmatpush1.bf16.msra.mxu0 %v662
        %761 = vmatprep.mubr.bf16.mxu0 %v713
        %762 = vmatmul.mubr.bf16.gmra.mrb[0].mxu0 %v712
        %v763 = vpop.f32.mrb[0].mxu0
        %v764 = vadd.f32 %v675, %v763
        %v765 = vpop.f32.mrb[0].mxu0
        %v766 = vadd.f32 %v675, %v765
        %v767 = vpop.f32.mrb[0].mxu0
        %v768 = vadd.f32 %v680, %v767
        %v769 = vpop.f32.mrb[0].mxu0
        %v770 = vadd.f32 %v680, %v769
        %771 = vmatprep.mubr.bf16.mxu0 %v716
        %772 = vmatmul.mubr.bf16.gmra.mrb[0].mxu0 %v715
        %v773 = vpop.f32.mrb[0].mxu0
        %v774 = vadd.f32 %v685, %v773
        %v775 = vpop.f32.mrb[0].mxu0
        %v776 = vadd.f32 %v685, %v775
        %v777 = vpop.f32.mrb[0].mxu0
        %v778 = vadd.f32 %v690, %v777
        %v779 = vpop.f32.mrb[0].mxu0
        %v780 = vadd.f32 %v690, %v779
        %781 = vdwg.mxu0
        %782 = vmatprep.subr.bf16.mxu0 %v665
        %783 = vmatpush1.bf16.msra.mxu0 %v664
        %784 = vmatprep.subr.bf16.mxu0 %v667
        %785 = vmatpush1.bf16.msra.mxu0 %v666
        %786 = vmatprep.subr.bf16.mxu0 0
        %787 = vmatpush1.bf16.msra.mxu0 0
        %788 = vmatprep.subr.bf16.mxu0 0
        %789 = vmatpush1.bf16.msra.mxu0 0
        %790 = vmatprep.subr.bf16.mxu0 0
        %791 = vmatpush1.bf16.msra.mxu0 0
        %792 = vmatprep.subr.bf16.mxu0 0
        %793 = vmatpush1.bf16.msra.mxu0 0
        %794 = vmatprep.subr.bf16.mxu0 0
        %795 = vmatpush1.bf16.msra.mxu0 0
        %796 = vmatprep.subr.bf16.mxu0 0
        %797 = vmatpush1.bf16.msra.mxu0 0
        %798 = vmatprep.subr.bf16.mxu0 0
        %799 = vmatpush1.bf16.msra.mxu0 0
        %800 = vmatprep.subr.bf16.mxu0 0
        %801 = vmatpush1.bf16.msra.mxu0 0
        %802 = vmatprep.subr.bf16.mxu0 0
        %803 = vmatpush1.bf16.msra.mxu0 0
        %804 = vmatprep.subr.bf16.mxu0 0
        %805 = vmatpush1.bf16.msra.mxu0 0
        %806 = vmatprep.subr.bf16.mxu0 0
        %807 = vmatpush1.bf16.msra.mxu0 0
        %808 = vmatprep.subr.bf16.mxu0 0
        %809 = vmatpush1.bf16.msra.mxu0 0
        %810 = vmatprep.subr.bf16.mxu0 0
        %811 = vmatpush1.bf16.msra.mxu0 0
        %812 = vmatprep.subr.bf16.mxu0 0
        %813 = vmatpush1.bf16.msra.mxu0 0
        %814 = vmatprep.mubr.bf16.mxu0 0
        %815 = vmatmul.mubr.bf16.gmra.mrb[0].mxu0 %v724
        %v816 = vpop.f32.mrb[0].mxu0
        %v817 = vadd.f32 %v764, %v816
        %v818 = vpop.f32.mrb[0].mxu0
        %v819 = vadd.f32 %v766, %v818
        %v820 = vpop.f32.mrb[0].mxu0
        %v821 = vadd.f32 %v768, %v820
        %v822 = vpop.f32.mrb[0].mxu0
        %v823 = vadd.f32 %v770, %v822
        %824 = vmatprep.mubr.bf16.mxu0 0
        %825 = vmatmul.mubr.bf16.gmra.mrb[0].mxu0 %v727
        %v826 = vpop.f32.mrb[0].mxu0
        %v827 = vadd.f32 %v774, %v826
        %v828 = vpop.f32.mrb[0].mxu0
        %v829 = vadd.f32 %v776, %v828
        %v830 = vpop.f32.mrb[0].mxu0
        %v831 = vadd.f32 %v778, %v830
        %v832 = vpop.f32.mrb[0].mxu0
        %v833 = vadd.f32 %v780, %v832
        %834 = vdwg.mxu0
        %835 = vst [vmem:[%s178] sm:$0xff] %v817
        %836 = vst [vmem:[%s178 + $0x8] sm:$0xff] %v819
        %837 = vst [vmem:[%s178 + $0x10] sm:$0xff] %v821
        %838 = vst [vmem:[%s178 + $0x18] sm:$0xff] %v823
        %839 = vst [vmem:[%s178 + $0x20] sm:$0xff] %v827
        %840 = vst [vmem:[%s178 + $0x28] sm:$0xff] %v829
        %841 = vst [vmem:[%s178 + $0x30] sm:$0xff] %v831
        %842 = vst [vmem:[%s178 + $0x38] sm:$0xff] %v833
        %843 = vst [vmem:[#allocation2] sm:$0xff] %v817
        %844 = vst [vmem:[#allocation2 + $0x8] sm:$0xff] %v819
        %845 = vst [vmem:[#allocation2 + $0x10] sm:$0xff] %v821
        %846 = vst [vmem:[#allocation2 + $0x18] sm:$0xff] %v823
        %847 = vst [vmem:[#allocation2 + $0x20] sm:$0xff] %v827
        %848 = vst [vmem:[#allocation2 + $0x28] sm:$0xff] %v829
        %849 = vst [vmem:[#allocation2 + $0x30] sm:$0xff] %v831
        %850 = vst [vmem:[#allocation2 + $0x38] sm:$0xff] %v833
        loop: start=0, step=1, limit=4
        $region37: #{tpu_custom_call.1} parent=31 // loop_pre_header
          _
        $region38: #{tpu_custom_call.1} parent=31 // loop_header
          %s852 = sphi 0, %s856
          %p853 = scmp.ge.s32.totalorder %s852, 4
        $region39: #{tpu_custom_call.1} parent=31 // loop_header_branch
          %855 = sbr.rel (%p853) target = $region43
        $region40: #{tpu_custom_call.1} parent=31 // loop_body
          %v857 = vld [vmem:[#allocation2] sm:$0xff]
          %v858 = vld [vmem:[#allocation2 + $0x8] sm:$0xff]
          %v859 = vld [vmem:[#allocation2 + $0x10] sm:$0xff]
          %v860 = vld [vmem:[#allocation2 + $0x18] sm:$0xff]
          %v861 = vld [vmem:[#allocation2 + $0x20] sm:$0xff]
          %v862 = vld [vmem:[#allocation2 + $0x28] sm:$0xff]
          %v863 = vld [vmem:[#allocation2 + $0x30] sm:$0xff]
          %v864 = vld [vmem:[#allocation2 + $0x38] sm:$0xff]
          %s865 = smul.u32 %s852, 2
          %s866 = sadd.s32 %s865, 1
          %875 = vrot.lane.b32.xlu0 %v857, 17
          %v876 = vpop.permute.xlu0 %875
          %877 = vrot.lane.b32.xlu0 %v858, 17
          %v878 = vpop.permute.xlu0 %877
          %879 = vrot.lane.b32.xlu0 %v859, 17
          %v880 = vpop.permute.xlu0 %879
          %881 = vrot.lane.b32.xlu0 %v860, 17
          %v882 = vpop.permute.xlu0 %881
          %883 = vrot.lane.b32.xlu0 %v861, 17
          %v884 = vpop.permute.xlu0 %883
          %885 = vrot.lane.b32.xlu0 %v862, 17
          %v886 = vpop.permute.xlu0 %885
          %887 = vrot.lane.b32.xlu0 %v863, 17
          %v888 = vpop.permute.xlu0 %887
          %889 = vrot.lane.b32.xlu0 %v864, 17
          %v890 = vpop.permute.xlu0 %889
          %v891 = vsel %vm248, %v876, %v878
          %v892 = vsel %vm248, %v880, %v882
          %v893 = vsel %vm248, %v884, %v886
          %v894 = vsel %vm248, %v888, %v890
          %v903 = vsel %vm248, 0.0, %v876
          %v904 = vsel %vm248, 0.0, %v880
          %v905 = vsel %vm248, 0.0, %v884
          %v906 = vsel %vm248, 0.0, %v888
          %v907 = vsel %vm267, %v903, 0.0
          %v908 = vsel %vm268, %v891, 0.0
          %v909 = vsel %vm267, %v904, 0.0
          %v910 = vsel %vm268, %v892, 0.0
          %v911 = vsel %vm267, %v905, 0.0
          %v912 = vsel %vm268, %v893, 0.0
          %v913 = vsel %vm267, %v906, 0.0
          %v914 = vsel %vm268, %v894, 0.0
          %v915 = vpack.c.bf16 %v909, %v907
          %v916 = vpack.c.bf16 %v910, %v908
          %v917 = vpack.c.bf16 %v913, %v911
          %v918 = vpack.c.bf16 %v914, %v912
          %919 = vst [vmem:[#allocation3] sm:$0xff] %v915
          %920 = vst [vmem:[#allocation3 + $0x8] sm:$0xff] %v916
          %921 = vst [vmem:[#allocation3 + $0x10] sm:$0xff] %v917
          %922 = vst [vmem:[#allocation3 + $0x18] sm:$0xff] %v918
          %923 = vrot.lane.b32.xlu0 %v857, 16
          %v924 = vpop.permute.xlu0 %923
          %925 = vrot.lane.b32.xlu0 %v858, 16
          %v926 = vpop.permute.xlu0 %925
          %927 = vrot.lane.b32.xlu0 %v859, 16
          %v928 = vpop.permute.xlu0 %927
          %929 = vrot.lane.b32.xlu0 %v860, 16
          %v930 = vpop.permute.xlu0 %929
          %931 = vrot.lane.b32.xlu0 %v861, 16
          %v932 = vpop.permute.xlu0 %931
          %933 = vrot.lane.b32.xlu0 %v862, 16
          %v934 = vpop.permute.xlu0 %933
          %935 = vrot.lane.b32.xlu0 %v863, 16
          %v936 = vpop.permute.xlu0 %935
          %937 = vrot.lane.b32.xlu0 %v864, 16
          %v938 = vpop.permute.xlu0 %937
          %v939 = vsel %vm301, %v924, %v926
          %v940 = vsel %vm301, %v928, %v930
          %v941 = vsel %vm301, %v932, %v934
          %v942 = vsel %vm301, %v936, %v938
          %v951 = vsel %vm301, 0.0, %v924
          %v952 = vsel %vm301, 0.0, %v928
          %v953 = vsel %vm301, 0.0, %v932
          %v954 = vsel %vm301, 0.0, %v936
          %v955 = vpack.c.bf16 %v952, %v951
          %v956 = vpack.c.bf16 %v940, %v939
          %v957 = vpack.c.bf16 %v954, %v953
          %v958 = vpack.c.bf16 %v942, %v941
          %959 = vst [vmem:[#allocation3 + $0x20] sm:$0xff] %v955
          %960 = vst [vmem:[#allocation3 + $0x28] sm:$0xff] %v956
          %961 = vst [vmem:[#allocation3 + $0x30] sm:$0xff] %v957
          %962 = vst [vmem:[#allocation3 + $0x38] sm:$0xff] %v958
          %963 = vrot.lane.b32.xlu0 %v857, 15
          %v964 = vpop.permute.xlu0 %963
          %965 = vrot.lane.b32.xlu0 %v858, 15
          %v966 = vpop.permute.xlu0 %965
          %967 = vrot.lane.b32.xlu0 %v859, 15
          %v968 = vpop.permute.xlu0 %967
          %969 = vrot.lane.b32.xlu0 %v860, 15
          %v970 = vpop.permute.xlu0 %969
          %971 = vrot.lane.b32.xlu0 %v861, 15
          %v972 = vpop.permute.xlu0 %971
          %973 = vrot.lane.b32.xlu0 %v862, 15
          %v974 = vpop.permute.xlu0 %973
          %975 = vrot.lane.b32.xlu0 %v863, 15
          %v976 = vpop.permute.xlu0 %975
          %977 = vrot.lane.b32.xlu0 %v864, 15
          %v978 = vpop.permute.xlu0 %977
          %v979 = vsel %vm342, %v964, %v966
          %v980 = vsel %vm342, %v968, %v970
          %v981 = vsel %vm342, %v972, %v974
          %v982 = vsel %vm342, %v976, %v978
          %v991 = vsel %vm342, 0.0, %v964
          %v992 = vsel %vm342, 0.0, %v968
          %v993 = vsel %vm342, 0.0, %v972
          %v994 = vsel %vm342, 0.0, %v976
          %v995 = vsel %vm361, %v991, 0.0
          %v996 = vsel %vm362, %v979, 0.0
          %v997 = vsel %vm361, %v992, 0.0
          %v998 = vsel %vm362, %v980, 0.0
          %v999 = vsel %vm361, %v993, 0.0
          %v1000 = vsel %vm362, %v981, 0.0
          %v1001 = vsel %vm361, %v994, 0.0
          %v1002 = vsel %vm362, %v982, 0.0
          %v1003 = vpack.c.bf16 %v997, %v995
          %v1004 = vpack.c.bf16 %v998, %v996
          %v1005 = vpack.c.bf16 %v1001, %v999
          %v1006 = vpack.c.bf16 %v1002, %v1000
          %1007 = vst [vmem:[#allocation3 + $0x40] sm:$0xff] %v1003
          %1008 = vst [vmem:[#allocation3 + $0x48] sm:$0xff] %v1004
          %1009 = vst [vmem:[#allocation3 + $0x50] sm:$0xff] %v1005
          %1010 = vst [vmem:[#allocation3 + $0x58] sm:$0xff] %v1006
          %1011 = vrot.lane.b32.xlu0 %v857, 1
          %v1012 = vpop.permute.xlu0 %1011
          %1013 = vrot.lane.b32.xlu0 %v858, 1
          %v1014 = vpop.permute.xlu0 %1013
          %1015 = vrot.lane.b32.xlu0 %v859, 1
          %v1016 = vpop.permute.xlu0 %1015
          %1017 = vrot.lane.b32.xlu0 %v860, 1
          %v1018 = vpop.permute.xlu0 %1017
          %1019 = vrot.lane.b32.xlu0 %v861, 1
          %v1020 = vpop.permute.xlu0 %1019
          %1021 = vrot.lane.b32.xlu0 %v862, 1
          %v1022 = vpop.permute.xlu0 %1021
          %1023 = vrot.lane.b32.xlu0 %v863, 1
          %v1024 = vpop.permute.xlu0 %1023
          %1025 = vrot.lane.b32.xlu0 %v864, 1
          %v1026 = vpop.permute.xlu0 %1025
          %v1027 = vsel %vm395, %v1012, %v1014
          %v1028 = vsel %vm395, %v1016, %v1018
          %v1029 = vsel %vm395, %v1020, %v1022
          %v1030 = vsel %vm395, %v1024, %v1026
          %v1039 = vsel %vm395, 0.0, %v1012
          %v1040 = vsel %vm395, 0.0, %v1016
          %v1041 = vsel %vm395, 0.0, %v1020
          %v1042 = vsel %vm395, 0.0, %v1024
          %v1043 = vsel %vm267, %v1039, 0.0
          %v1044 = vsel %vm268, %v1027, 0.0
          %v1045 = vsel %vm267, %v1040, 0.0
          %v1046 = vsel %vm268, %v1028, 0.0
          %v1047 = vsel %vm267, %v1041, 0.0
          %v1048 = vsel %vm268, %v1029, 0.0
          %v1049 = vsel %vm267, %v1042, 0.0
          %v1050 = vsel %vm268, %v1030, 0.0
          %v1051 = vpack.c.bf16 %v1045, %v1043
          %v1052 = vpack.c.bf16 %v1046, %v1044
          %v1053 = vpack.c.bf16 %v1049, %v1047
          %v1054 = vpack.c.bf16 %v1050, %v1048
          %1055 = vst [vmem:[#allocation3 + $0x60] sm:$0xff] %v1051
          %1056 = vst [vmem:[#allocation3 + $0x68] sm:$0xff] %v1052
          %1057 = vst [vmem:[#allocation3 + $0x70] sm:$0xff] %v1053
          %1058 = vst [vmem:[#allocation3 + $0x78] sm:$0xff] %v1054
          %v1059 = vpack.c.bf16 %v859, %v857
          %v1060 = vpack.c.bf16 %v860, %v858
          %v1061 = vpack.c.bf16 %v863, %v861
          %v1062 = vpack.c.bf16 %v864, %v862
          %1063 = vst [vmem:[#allocation3 + $0x80] sm:$0xff] %v1059
          %1064 = vst [vmem:[#allocation3 + $0x88] sm:$0xff] %v1060
          %1065 = vst [vmem:[#allocation3 + $0x90] sm:$0xff] %v1061
          %1066 = vst [vmem:[#allocation3 + $0x98] sm:$0xff] %v1062
          %1067 = vrot.lane.b32.xlu0 %v857, 127
          %v1068 = vpop.permute.xlu0 %1067
          %1069 = vrot.lane.b32.xlu0 %v858, 127
          %v1070 = vpop.permute.xlu0 %1069
          %1071 = vrot.lane.b32.xlu0 %v859, 127
          %v1072 = vpop.permute.xlu0 %1071
          %1073 = vrot.lane.b32.xlu0 %v860, 127
          %v1074 = vpop.permute.xlu0 %1073
          %1075 = vrot.lane.b32.xlu0 %v861, 127
          %v1076 = vpop.permute.xlu0 %1075
          %1077 = vrot.lane.b32.xlu0 %v862, 127
          %v1078 = vpop.permute.xlu0 %1077
          %1079 = vrot.lane.b32.xlu0 %v863, 127
          %v1080 = vpop.permute.xlu0 %1079
          %1081 = vrot.lane.b32.xlu0 %v864, 127
          %v1082 = vpop.permute.xlu0 %1081
          %v1083 = vsel %vm452, %v1068, %v1070
          %v1084 = vsel %vm452, %v1072, %v1074
          %v1085 = vsel %vm452, %v1076, %v1078
          %v1086 = vsel %vm452, %v1080, %v1082
          %v1095 = vsel %vm452, %v1070, 0.0
          %v1096 = vsel %vm452, %v1074, 0.0
          %v1097 = vsel %vm452, %v1078, 0.0
          %v1098 = vsel %vm452, %v1082, 0.0
          %v1099 = vsel %vm361, %v1083, 0.0
          %v1100 = vsel %vm362, %v1095, 0.0
          %v1101 = vsel %vm361, %v1084, 0.0
          %v1102 = vsel %vm362, %v1096, 0.0
          %v1103 = vsel %vm361, %v1085, 0.0
          %v1104 = vsel %vm362, %v1097, 0.0
          %v1105 = vsel %vm361, %v1086, 0.0
          %v1106 = vsel %vm362, %v1098, 0.0
          %v1107 = vpack.c.bf16 %v1101, %v1099
          %v1108 = vpack.c.bf16 %v1102, %v1100
          %v1109 = vpack.c.bf16 %v1105, %v1103
          %v1110 = vpack.c.bf16 %v1106, %v1104
          %1111 = vst [vmem:[#allocation3 + $0xa0] sm:$0xff] %v1107
          %1112 = vst [vmem:[#allocation3 + $0xa8] sm:$0xff] %v1108
          %1113 = vst [vmem:[#allocation3 + $0xb0] sm:$0xff] %v1109
          %1114 = vst [vmem:[#allocation3 + $0xb8] sm:$0xff] %v1110
          %1115 = vrot.lane.b32.xlu0 %v857, 113
          %v1116 = vpop.permute.xlu0 %1115
          %1117 = vrot.lane.b32.xlu0 %v858, 113
          %v1118 = vpop.permute.xlu0 %1117
          %1119 = vrot.lane.b32.xlu0 %v859, 113
          %v1120 = vpop.permute.xlu0 %1119
          %1121 = vrot.lane.b32.xlu0 %v860, 113
          %v1122 = vpop.permute.xlu0 %1121
          %1123 = vrot.lane.b32.xlu0 %v861, 113
          %v1124 = vpop.permute.xlu0 %1123
          %1125 = vrot.lane.b32.xlu0 %v862, 113
          %v1126 = vpop.permute.xlu0 %1125
          %1127 = vrot.lane.b32.xlu0 %v863, 113
          %v1128 = vpop.permute.xlu0 %1127
          %1129 = vrot.lane.b32.xlu0 %v864, 113
          %v1130 = vpop.permute.xlu0 %1129
          %v1131 = vsel %vm501, %v1116, %v1118
          %v1132 = vsel %vm501, %v1120, %v1122
          %v1133 = vsel %vm501, %v1124, %v1126
          %v1134 = vsel %vm501, %v1128, %v1130
          %v1143 = vsel %vm501, %v1118, 0.0
          %v1144 = vsel %vm501, %v1122, 0.0
          %v1145 = vsel %vm501, %v1126, 0.0
          %v1146 = vsel %vm501, %v1130, 0.0
          %v1147 = vsel %vm267, %v1131, 0.0
          %v1148 = vsel %vm268, %v1143, 0.0
          %v1149 = vsel %vm267, %v1132, 0.0
          %v1150 = vsel %vm268, %v1144, 0.0
          %v1151 = vsel %vm267, %v1133, 0.0
          %v1152 = vsel %vm268, %v1145, 0.0
          %v1153 = vsel %vm267, %v1134, 0.0
          %v1154 = vsel %vm268, %v1146, 0.0
          %v1155 = vpack.c.bf16 %v1149, %v1147
          %v1156 = vpack.c.bf16 %v1150, %v1148
          %v1157 = vpack.c.bf16 %v1153, %v1151
          %v1158 = vpack.c.bf16 %v1154, %v1152
          %1159 = vst [vmem:[#allocation3 + $0xc0] sm:$0xff] %v1155
          %1160 = vst [vmem:[#allocation3 + $0xc8] sm:$0xff] %v1156
          %1161 = vst [vmem:[#allocation3 + $0xd0] sm:$0xff] %v1157
          %1162 = vst [vmem:[#allocation3 + $0xd8] sm:$0xff] %v1158
          %1163 = vrot.lane.b32.xlu0 %v857, 112
          %v1164 = vpop.permute.xlu0 %1163
          %1165 = vrot.lane.b32.xlu0 %v858, 112
          %v1166 = vpop.permute.xlu0 %1165
          %1167 = vrot.lane.b32.xlu0 %v859, 112
          %v1168 = vpop.permute.xlu0 %1167
          %1169 = vrot.lane.b32.xlu0 %v860, 112
          %v1170 = vpop.permute.xlu0 %1169
          %1171 = vrot.lane.b32.xlu0 %v861, 112
          %v1172 = vpop.permute.xlu0 %1171
          %1173 = vrot.lane.b32.xlu0 %v862, 112
          %v1174 = vpop.permute.xlu0 %1173
          %1175 = vrot.lane.b32.xlu0 %v863, 112
          %v1176 = vpop.permute.xlu0 %1175
          %1177 = vrot.lane.b32.xlu0 %v864, 112
          %v1178 = vpop.permute.xlu0 %1177
          %v1179 = vsel %vm550, %v1164, %v1166
          %v1180 = vsel %vm550, %v1168, %v1170
          %v1181 = vsel %vm550, %v1172, %v1174
          %v1182 = vsel %vm550, %v1176, %v1178
          %v1191 = vsel %vm550, %v1166, 0.0
          %v1192 = vsel %vm550, %v1170, 0.0
          %v1193 = vsel %vm550, %v1174, 0.0
          %v1194 = vsel %vm550, %v1178, 0.0
          %v1195 = vpack.c.bf16 %v1180, %v1179
          %v1196 = vpack.c.bf16 %v1192, %v1191
          %v1197 = vpack.c.bf16 %v1182, %v1181
          %v1198 = vpack.c.bf16 %v1194, %v1193
          %1199 = vst [vmem:[#allocation3 + $0xe0] sm:$0xff] %v1195
          %1200 = vst [vmem:[#allocation3 + $0xe8] sm:$0xff] %v1196
          %1201 = vst [vmem:[#allocation3 + $0xf0] sm:$0xff] %v1197
          %1202 = vst [vmem:[#allocation3 + $0xf8] sm:$0xff] %v1198
          %1203 = vrot.lane.b32.xlu0 %v857, 111
          %v1204 = vpop.permute.xlu0 %1203
          %1205 = vrot.lane.b32.xlu0 %v858, 111
          %v1206 = vpop.permute.xlu0 %1205
          %1207 = vrot.lane.b32.xlu0 %v859, 111
          %v1208 = vpop.permute.xlu0 %1207
          %1209 = vrot.lane.b32.xlu0 %v860, 111
          %v1210 = vpop.permute.xlu0 %1209
          %1211 = vrot.lane.b32.xlu0 %v861, 111
          %v1212 = vpop.permute.xlu0 %1211
          %1213 = vrot.lane.b32.xlu0 %v862, 111
          %v1214 = vpop.permute.xlu0 %1213
          %1215 = vrot.lane.b32.xlu0 %v863, 111
          %v1216 = vpop.permute.xlu0 %1215
          %1217 = vrot.lane.b32.xlu0 %v864, 111
          %v1218 = vpop.permute.xlu0 %1217
          %v1219 = vsel %vm591, %v1204, %v1206
          %v1220 = vsel %vm591, %v1208, %v1210
          %v1221 = vsel %vm591, %v1212, %v1214
          %v1222 = vsel %vm591, %v1216, %v1218
          %v1231 = vsel %vm591, %v1206, 0.0
          %v1232 = vsel %vm591, %v1210, 0.0
          %v1233 = vsel %vm591, %v1214, 0.0
          %v1234 = vsel %vm591, %v1218, 0.0
          %v1235 = vsel %vm361, %v1219, 0.0
          %v1236 = vsel %vm362, %v1231, 0.0
          %v1237 = vsel %vm361, %v1220, 0.0
          %v1238 = vsel %vm362, %v1232, 0.0
          %v1239 = vsel %vm361, %v1221, 0.0
          %v1240 = vsel %vm362, %v1233, 0.0
          %v1241 = vsel %vm361, %v1222, 0.0
          %v1242 = vsel %vm362, %v1234, 0.0
          %v1243 = vpack.c.bf16 %v1237, %v1235
          %v1244 = vpack.c.bf16 %v1238, %v1236
          %v1245 = vpack.c.bf16 %v1241, %v1239
          %v1246 = vpack.c.bf16 %v1242, %v1240
          %1247 = vst [vmem:[#allocation3 + $0x100] sm:$0xff] %v1243
          %1248 = vst [vmem:[#allocation3 + $0x108] sm:$0xff] %v1244
          %1249 = vst [vmem:[#allocation3 + $0x110] sm:$0xff] %v1245
          %1250 = vst [vmem:[#allocation3 + $0x118] sm:$0xff] %v1246
          %s1251 = smul.u32 %s866, 12
          %s1252 = smul.addr %s1251, 4
          %s1253 = scalar_lea.vmem [#allocation4], %s1252
          %v1254 = vld [vmem:[%s1253] sm:$0xff]
          %v1255 = vld [vmem:[%s1253 + $0x8] sm:$0xf]
          %v1256 = vld [vmem:[%s1253 + $0xc] sm:$0xff]
          %v1257 = vld [vmem:[%s1253 + $0x14] sm:$0xf]
          %v1258 = vld [vmem:[%s1253 + $0x18] sm:$0xff]
          %v1259 = vld [vmem:[%s1253 + $0x20] sm:$0xf]
          %v1260 = vld [vmem:[%s1253 + $0x24] sm:$0xff]
          %v1261 = vld [vmem:[%s1253 + $0x2c] sm:$0xf]
          %v1262 = vld [vmem:[#allocation3] sm:$0xff]
          %v1263 = vld [vmem:[#allocation3 + $0x8] sm:$0xff]
          %v1264 = vld [vmem:[#allocation3 + $0x10] sm:$0xff]
          %v1265 = vld [vmem:[#allocation3 + $0x18] sm:$0xff]
          %v1266 = vld [vmem:[#allocation3 + $0x20] sm:$0xff]
          %v1267 = vld [vmem:[#allocation3 + $0x28] sm:$0xff]
          %v1268 = vld [vmem:[#allocation3 + $0x30] sm:$0xff]
          %v1269 = vld [vmem:[#allocation3 + $0x38] sm:$0xff]
          %v1270 = vld [vmem:[#allocation3 + $0x40] sm:$0xff]
          %v1271 = vld [vmem:[#allocation3 + $0x48] sm:$0xff]
          %v1272 = vld [vmem:[#allocation3 + $0x50] sm:$0xff]
          %v1273 = vld [vmem:[#allocation3 + $0x58] sm:$0xff]
          %v1274 = vld [vmem:[#allocation3 + $0x60] sm:$0xff]
          %v1275 = vld [vmem:[#allocation3 + $0x68] sm:$0xff]
          %v1276 = vld [vmem:[#allocation3 + $0x70] sm:$0xff]
          %v1277 = vld [vmem:[#allocation3 + $0x78] sm:$0xff]
          %v1278 = vld [vmem:[#allocation3 + $0x80] sm:$0xff]
          %v1279 = vld [vmem:[#allocation3 + $0x88] sm:$0xff]
          %v1280 = vld [vmem:[#allocation3 + $0x90] sm:$0xff]
          %v1281 = vld [vmem:[#allocation3 + $0x98] sm:$0xff]
          %v1282 = vld [vmem:[#allocation3 + $0xa0] sm:$0xff]
          %v1283 = vld [vmem:[#allocation3 + $0xa8] sm:$0xff]
          %v1284 = vld [vmem:[#allocation3 + $0xb0] sm:$0xff]
          %v1285 = vld [vmem:[#allocation3 + $0xb8] sm:$0xff]
          %v1286 = vld [vmem:[#allocation3 + $0xc0] sm:$0xff]
          %v1287 = vld [vmem:[#allocation3 + $0xc8] sm:$0xff]
          %v1288 = vld [vmem:[#allocation3 + $0xd0] sm:$0xff]
          %v1289 = vld [vmem:[#allocation3 + $0xd8] sm:$0xff]
          %v1290 = vld [vmem:[#allocation3 + $0xe0] sm:$0xff]
          %v1291 = vld [vmem:[#allocation3 + $0xe8] sm:$0xff]
          %v1292 = vld [vmem:[#allocation3 + $0xf0] sm:$0xff]
          %v1293 = vld [vmem:[#allocation3 + $0xf8] sm:$0xff]
          %v1294 = vld [vmem:[#allocation3 + $0x100] sm:$0xff]
          %v1295 = vld [vmem:[#allocation3 + $0x108] sm:$0xff]
          %v1296 = vld [vmem:[#allocation3 + $0x110] sm:$0xff]
          %v1297 = vld [vmem:[#allocation3 + $0x118] sm:$0xff]
          %s1298 = smul.u32 %s866, 32
          %s1299 = scalar_lea.vmem %s2, %s1298
          %v1300 = vld [vmem:[%s1299] sm:$0xff]
          %v1301 = vld [vmem:[%s1299 + $0x8] sm:$0xff]
          %v1302 = vld [vmem:[%s1299 + $0x10] sm:$0xff]
          %v1303 = vld [vmem:[%s1299 + $0x18] sm:$0xff]
          %1305 = vset.pattern.permute.xlu0 0
          %1306 = vperm.xlu0 %1305, %v1300
          %v1307 = vpop.permute.xlu0 %1306
          %1310 = vset.pattern.permute.xlu0 0
          %1311 = vperm.xlu0 %1310, %v1301
          %v1312 = vpop.permute.xlu0 %1311
          %1315 = vset.pattern.permute.xlu0 0
          %1316 = vperm.xlu0 %1315, %v1302
          %v1317 = vpop.permute.xlu0 %1316
          %1320 = vset.pattern.permute.xlu0 0
          %1321 = vperm.xlu0 %1320, %v1303
          %v1322 = vpop.permute.xlu0 %1321
          %v1332 = vunpack.c.l.b16 %v1254
          %v1333 = vunpack.c.h.b16 %v1254
          %v1334 = vunpack.c.l.b16 %v1255
          %v1335 = vunpack.c.l.b16 %v1256
          %v1336 = vunpack.c.h.b16 %v1256
          %v1337 = vunpack.c.l.b16 %v1257
          %v1338 = vunpack.c.l.b16 %v1258
          %v1339 = vunpack.c.h.b16 %v1258
          %v1340 = vunpack.c.l.b16 %v1259
          %v1341 = vunpack.c.l.b16 %v1260
          %v1342 = vunpack.c.h.b16 %v1260
          %v1343 = vunpack.c.l.b16 %v1261
          %v1344 = vpack.c.b16 %v1335, %v1332
          %v1345 = vpack.c.b16 %v1336, %v1333
          %v1346 = vpack.c.b16 %v1337, %v1334
          %v1347 = vpack.c.b16 %v1341, %v1338
          %v1348 = vpack.c.b16 %v1342, %v1339
          %v1349 = vpack.c.b16 %v1343, %v1340
          %v1355 = vsel %vm722, %v1346, 0
          %v1358 = vsel %vm722, %v1349, 0
          %1360 = vmatprep.subr.bf16.mxu0 %v1263
          %1361 = vmatpush1.bf16.msra.mxu0 %v1262
          %1362 = vmatprep.subr.bf16.mxu0 %v1265
          %1363 = vmatpush1.bf16.msra.mxu0 %v1264
          %1364 = vmatprep.subr.bf16.mxu0 %v1267
          %1365 = vmatpush1.bf16.msra.mxu0 %v1266
          %1366 = vmatprep.subr.bf16.mxu0 %v1269
          %1367 = vmatpush1.bf16.msra.mxu0 %v1268
          %1368 = vmatprep.subr.bf16.mxu0 %v1271
          %1369 = vmatpush1.bf16.msra.mxu0 %v1270
          %1370 = vmatprep.subr.bf16.mxu0 %v1273
          %1371 = vmatpush1.bf16.msra.mxu0 %v1272
          %1372 = vmatprep.subr.bf16.mxu0 %v1275
          %1373 = vmatpush1.bf16.msra.mxu0 %v1274
          %1374 = vmatprep.subr.bf16.mxu0 %v1277
          %1375 = vmatpush1.bf16.msra.mxu0 %v1276
          %1376 = vmatprep.subr.bf16.mxu0 %v1279
          %1377 = vmatpush1.bf16.msra.mxu0 %v1278
          %1378 = vmatprep.subr.bf16.mxu0 %v1281
          %1379 = vmatpush1.bf16.msra.mxu0 %v1280
          %1380 = vmatprep.subr.bf16.mxu0 %v1283
          %1381 = vmatpush1.bf16.msra.mxu0 %v1282
          %1382 = vmatprep.subr.bf16.mxu0 %v1285
          %1383 = vmatpush1.bf16.msra.mxu0 %v1284
          %1384 = vmatprep.subr.bf16.mxu0 %v1287
          %1385 = vmatpush1.bf16.msra.mxu0 %v1286
          %1386 = vmatprep.subr.bf16.mxu0 %v1289
          %1387 = vmatpush1.bf16.msra.mxu0 %v1288
          %1388 = vmatprep.subr.bf16.mxu0 %v1291
          %1389 = vmatpush1.bf16.msra.mxu0 %v1290
          %1390 = vmatprep.subr.bf16.mxu0 %v1293
          %1391 = vmatpush1.bf16.msra.mxu0 %v1292
          %1392 = vmatprep.mubr.bf16.mxu0 %v1345
          %1393 = vmatmul.mubr.bf16.gmra.mrb[0].mxu0 %v1344
          %v1394 = vpop.f32.mrb[0].mxu0
          %v1395 = vadd.f32 %v1307, %v1394
          %v1396 = vpop.f32.mrb[0].mxu0
          %v1397 = vadd.f32 %v1307, %v1396
          %v1398 = vpop.f32.mrb[0].mxu0
          %v1399 = vadd.f32 %v1312, %v1398
          %v1400 = vpop.f32.mrb[0].mxu0
          %v1401 = vadd.f32 %v1312, %v1400
          %1402 = vmatprep.mubr.bf16.mxu0 %v1348
          %1403 = vmatmul.mubr.bf16.gmra.mrb[0].mxu0 %v1347
          %v1404 = vpop.f32.mrb[0].mxu0
          %v1405 = vadd.f32 %v1317, %v1404
          %v1406 = vpop.f32.mrb[0].mxu0
          %v1407 = vadd.f32 %v1317, %v1406
          %v1408 = vpop.f32.mrb[0].mxu0
          %v1409 = vadd.f32 %v1322, %v1408
          %v1410 = vpop.f32.mrb[0].mxu0
          %v1411 = vadd.f32 %v1322, %v1410
          %1412 = vdwg.mxu0
          %1413 = vmatprep.subr.bf16.mxu0 %v1295
          %1414 = vmatpush1.bf16.msra.mxu0 %v1294
          %1415 = vmatprep.subr.bf16.mxu0 %v1297
          %1416 = vmatpush1.bf16.msra.mxu0 %v1296
          %1417 = vmatprep.subr.bf16.mxu0 0
          %1418 = vmatpush1.bf16.msra.mxu0 0
          %1419 = vmatprep.subr.bf16.mxu0 0
          %1420 = vmatpush1.bf16.msra.mxu0 0
          %1421 = vmatprep.subr.bf16.mxu0 0
          %1422 = vmatpush1.bf16.msra.mxu0 0
          %1423 = vmatprep.subr.bf16.mxu0 0
          %1424 = vmatpush1.bf16.msra.mxu0 0
          %1425 = vmatprep.subr.bf16.mxu0 0
          %1426 = vmatpush1.bf16.msra.mxu0 0
          %1427 = vmatprep.subr.bf16.mxu0 0
          %1428 = vmatpush1.bf16.msra.mxu0 0
          %1429 = vmatprep.subr.bf16.mxu0 0
          %1430 = vmatpush1.bf16.msra.mxu0 0
          %1431 = vmatprep.subr.bf16.mxu0 0
          %1432 = vmatpush1.bf16.msra.mxu0 0
          %1433 = vmatprep.subr.bf16.mxu0 0
          %1434 = vmatpush1.bf16.msra.mxu0 0
          %1435 = vmatprep.subr.bf16.mxu0 0
          %1436 = vmatpush1.bf16.msra.mxu0 0
          %1437 = vmatprep.subr.bf16.mxu0 0
          %1438 = vmatpush1.bf16.msra.mxu0 0
          %1439 = vmatprep.subr.bf16.mxu0 0
          %1440 = vmatpush1.bf16.msra.mxu0 0
          %1441 = vmatprep.subr.bf16.mxu0 0
          %1442 = vmatpush1.bf16.msra.mxu0 0
          %1443 = vmatprep.subr.bf16.mxu0 0
          %1444 = vmatpush1.bf16.msra.mxu0 0
          %1445 = vmatprep.mubr.bf16.mxu0 0
          %1446 = vmatmul.mubr.bf16.gmra.mrb[0].mxu0 %v1355
          %v1447 = vpop.f32.mrb[0].mxu0
          %v1448 = vadd.f32 %v1395, %v1447
          %v1449 = vpop.f32.mrb[0].mxu0
          %v1450 = vadd.f32 %v1397, %v1449
          %v1451 = vpop.f32.mrb[0].mxu0
          %v1452 = vadd.f32 %v1399, %v1451
          %v1453 = vpop.f32.mrb[0].mxu0
          %v1454 = vadd.f32 %v1401, %v1453
          %1455 = vmatprep.mubr.bf16.mxu0 0
          %1456 = vmatmul.mubr.bf16.gmra.mrb[0].mxu0 %v1358
          %v1457 = vpop.f32.mrb[0].mxu0
          %v1458 = vadd.f32 %v1405, %v1457
          %v1459 = vpop.f32.mrb[0].mxu0
          %v1460 = vadd.f32 %v1407, %v1459
          %v1461 = vpop.f32.mrb[0].mxu0
          %v1462 = vadd.f32 %v1409, %v1461
          %v1463 = vpop.f32.mrb[0].mxu0
          %v1464 = vadd.f32 %v1411, %v1463
          %1465 = vdwg.mxu0
          %v1466 = vmax.f32 %v1448, 0.0
          %v1467 = vmax.f32 %v1450, 0.0
          %v1468 = vmax.f32 %v1452, 0.0
          %v1469 = vmax.f32 %v1454, 0.0
          %v1470 = vmax.f32 %v1458, 0.0
          %v1471 = vmax.f32 %v1460, 0.0
          %v1472 = vmax.f32 %v1462, 0.0
          %v1473 = vmax.f32 %v1464, 0.0
          %s1474 = sadd.s32 %s865, 2
          %1483 = vrot.lane.b32.xlu0 %v1466, 17
          %v1484 = vpop.permute.xlu0 %1483
          %1485 = vrot.lane.b32.xlu0 %v1467, 17
          %v1486 = vpop.permute.xlu0 %1485
          %1487 = vrot.lane.b32.xlu0 %v1468, 17
          %v1488 = vpop.permute.xlu0 %1487
          %1489 = vrot.lane.b32.xlu0 %v1469, 17
          %v1490 = vpop.permute.xlu0 %1489
          %1491 = vrot.lane.b32.xlu0 %v1470, 17
          %v1492 = vpop.permute.xlu0 %1491
          %1493 = vrot.lane.b32.xlu0 %v1471, 17
          %v1494 = vpop.permute.xlu0 %1493
          %1495 = vrot.lane.b32.xlu0 %v1472, 17
          %v1496 = vpop.permute.xlu0 %1495
          %1497 = vrot.lane.b32.xlu0 %v1473, 17
          %v1498 = vpop.permute.xlu0 %1497
          %v1499 = vsel %vm248, %v1484, %v1486
          %v1500 = vsel %vm248, %v1488, %v1490
          %v1501 = vsel %vm248, %v1492, %v1494
          %v1502 = vsel %vm248, %v1496, %v1498
          %v1511 = vsel %vm248, 0.0, %v1484
          %v1512 = vsel %vm248, 0.0, %v1488
          %v1513 = vsel %vm248, 0.0, %v1492
          %v1514 = vsel %vm248, 0.0, %v1496
          %v1515 = vsel %vm267, %v1511, 0.0
          %v1516 = vsel %vm268, %v1499, 0.0
          %v1517 = vsel %vm267, %v1512, 0.0
          %v1518 = vsel %vm268, %v1500, 0.0
          %v1519 = vsel %vm267, %v1513, 0.0
          %v1520 = vsel %vm268, %v1501, 0.0
          %v1521 = vsel %vm267, %v1514, 0.0
          %v1522 = vsel %vm268, %v1502, 0.0
          %v1523 = vpack.c.bf16 %v1517, %v1515
          %v1524 = vpack.c.bf16 %v1518, %v1516
          %v1525 = vpack.c.bf16 %v1521, %v1519
          %v1526 = vpack.c.bf16 %v1522, %v1520
          %1527 = vst [vmem:[#allocation3] sm:$0xff] %v1523
          %1528 = vst [vmem:[#allocation3 + $0x8] sm:$0xff] %v1524
          %1529 = vst [vmem:[#allocation3 + $0x10] sm:$0xff] %v1525
          %1530 = vst [vmem:[#allocation3 + $0x18] sm:$0xff] %v1526
          %1531 = vrot.lane.b32.xlu0 %v1466, 16
          %v1532 = vpop.permute.xlu0 %1531
          %1533 = vrot.lane.b32.xlu0 %v1467, 16
          %v1534 = vpop.permute.xlu0 %1533
          %1535 = vrot.lane.b32.xlu0 %v1468, 16
          %v1536 = vpop.permute.xlu0 %1535
          %1537 = vrot.lane.b32.xlu0 %v1469, 16
          %v1538 = vpop.permute.xlu0 %1537
          %1539 = vrot.lane.b32.xlu0 %v1470, 16
          %v1540 = vpop.permute.xlu0 %1539
          %1541 = vrot.lane.b32.xlu0 %v1471, 16
          %v1542 = vpop.permute.xlu0 %1541
          %1543 = vrot.lane.b32.xlu0 %v1472, 16
          %v1544 = vpop.permute.xlu0 %1543
          %1545 = vrot.lane.b32.xlu0 %v1473, 16
          %v1546 = vpop.permute.xlu0 %1545
          %v1547 = vsel %vm301, %v1532, %v1534
          %v1548 = vsel %vm301, %v1536, %v1538
          %v1549 = vsel %vm301, %v1540, %v1542
          %v1550 = vsel %vm301, %v1544, %v1546
          %v1559 = vsel %vm301, 0.0, %v1532
          %v1560 = vsel %vm301, 0.0, %v1536
          %v1561 = vsel %vm301, 0.0, %v1540
          %v1562 = vsel %vm301, 0.0, %v1544
          %v1563 = vpack.c.bf16 %v1560, %v1559
          %v1564 = vpack.c.bf16 %v1548, %v1547
          %v1565 = vpack.c.bf16 %v1562, %v1561
          %v1566 = vpack.c.bf16 %v1550, %v1549
          %1567 = vst [vmem:[#allocation3 + $0x20] sm:$0xff] %v1563
          %1568 = vst [vmem:[#allocation3 + $0x28] sm:$0xff] %v1564
          %1569 = vst [vmem:[#allocation3 + $0x30] sm:$0xff] %v1565
          %1570 = vst [vmem:[#allocation3 + $0x38] sm:$0xff] %v1566
          %1571 = vrot.lane.b32.xlu0 %v1466, 15
          %v1572 = vpop.permute.xlu0 %1571
          %1573 = vrot.lane.b32.xlu0 %v1467, 15
          %v1574 = vpop.permute.xlu0 %1573
          %1575 = vrot.lane.b32.xlu0 %v1468, 15
          %v1576 = vpop.permute.xlu0 %1575
          %1577 = vrot.lane.b32.xlu0 %v1469, 15
          %v1578 = vpop.permute.xlu0 %1577
          %1579 = vrot.lane.b32.xlu0 %v1470, 15
          %v1580 = vpop.permute.xlu0 %1579
          %1581 = vrot.lane.b32.xlu0 %v1471, 15
          %v1582 = vpop.permute.xlu0 %1581
          %1583 = vrot.lane.b32.xlu0 %v1472, 15
          %v1584 = vpop.permute.xlu0 %1583
          %1585 = vrot.lane.b32.xlu0 %v1473, 15
          %v1586 = vpop.permute.xlu0 %1585
          %v1587 = vsel %vm342, %v1572, %v1574
          %v1588 = vsel %vm342, %v1576, %v1578
          %v1589 = vsel %vm342, %v1580, %v1582
          %v1590 = vsel %vm342, %v1584, %v1586
          %v1599 = vsel %vm342, 0.0, %v1572
          %v1600 = vsel %vm342, 0.0, %v1576
          %v1601 = vsel %vm342, 0.0, %v1580
          %v1602 = vsel %vm342, 0.0, %v1584
          %v1603 = vsel %vm361, %v1599, 0.0
          %v1604 = vsel %vm362, %v1587, 0.0
          %v1605 = vsel %vm361, %v1600, 0.0
          %v1606 = vsel %vm362, %v1588, 0.0
          %v1607 = vsel %vm361, %v1601, 0.0
          %v1608 = vsel %vm362, %v1589, 0.0
          %v1609 = vsel %vm361, %v1602, 0.0
          %v1610 = vsel %vm362, %v1590, 0.0
          %v1611 = vpack.c.bf16 %v1605, %v1603
          %v1612 = vpack.c.bf16 %v1606, %v1604
          %v1613 = vpack.c.bf16 %v1609, %v1607
          %v1614 = vpack.c.bf16 %v1610, %v1608
          %1615 = vst [vmem:[#allocation3 + $0x40] sm:$0xff] %v1611
          %1616 = vst [vmem:[#allocation3 + $0x48] sm:$0xff] %v1612
          %1617 = vst [vmem:[#allocation3 + $0x50] sm:$0xff] %v1613
          %1618 = vst [vmem:[#allocation3 + $0x58] sm:$0xff] %v1614
          %1619 = vrot.lane.b32.xlu0 %v1466, 1
          %v1620 = vpop.permute.xlu0 %1619
          %1621 = vrot.lane.b32.xlu0 %v1467, 1
          %v1622 = vpop.permute.xlu0 %1621
          %1623 = vrot.lane.b32.xlu0 %v1468, 1
          %v1624 = vpop.permute.xlu0 %1623
          %1625 = vrot.lane.b32.xlu0 %v1469, 1
          %v1626 = vpop.permute.xlu0 %1625
          %1627 = vrot.lane.b32.xlu0 %v1470, 1
          %v1628 = vpop.permute.xlu0 %1627
          %1629 = vrot.lane.b32.xlu0 %v1471, 1
          %v1630 = vpop.permute.xlu0 %1629
          %1631 = vrot.lane.b32.xlu0 %v1472, 1
          %v1632 = vpop.permute.xlu0 %1631
          %1633 = vrot.lane.b32.xlu0 %v1473, 1
          %v1634 = vpop.permute.xlu0 %1633
          %v1635 = vsel %vm395, %v1620, %v1622
          %v1636 = vsel %vm395, %v1624, %v1626
          %v1637 = vsel %vm395, %v1628, %v1630
          %v1638 = vsel %vm395, %v1632, %v1634
          %v1647 = vsel %vm395, 0.0, %v1620
          %v1648 = vsel %vm395, 0.0, %v1624
          %v1649 = vsel %vm395, 0.0, %v1628
          %v1650 = vsel %vm395, 0.0, %v1632
          %v1651 = vsel %vm267, %v1647, 0.0
          %v1652 = vsel %vm268, %v1635, 0.0
          %v1653 = vsel %vm267, %v1648, 0.0
          %v1654 = vsel %vm268, %v1636, 0.0
          %v1655 = vsel %vm267, %v1649, 0.0
          %v1656 = vsel %vm268, %v1637, 0.0
          %v1657 = vsel %vm267, %v1650, 0.0
          %v1658 = vsel %vm268, %v1638, 0.0
          %v1659 = vpack.c.bf16 %v1653, %v1651
          %v1660 = vpack.c.bf16 %v1654, %v1652
          %v1661 = vpack.c.bf16 %v1657, %v1655
          %v1662 = vpack.c.bf16 %v1658, %v1656
          %1663 = vst [vmem:[#allocation3 + $0x60] sm:$0xff] %v1659
          %1664 = vst [vmem:[#allocation3 + $0x68] sm:$0xff] %v1660
          %1665 = vst [vmem:[#allocation3 + $0x70] sm:$0xff] %v1661
          %1666 = vst [vmem:[#allocation3 + $0x78] sm:$0xff] %v1662
          %v1667 = vpack.c.bf16 %v1468, %v1466
          %v1668 = vpack.c.bf16 %v1469, %v1467
          %v1669 = vpack.c.bf16 %v1472, %v1470
          %v1670 = vpack.c.bf16 %v1473, %v1471
          %1671 = vst [vmem:[#allocation3 + $0x80] sm:$0xff] %v1667
          %1672 = vst [vmem:[#allocation3 + $0x88] sm:$0xff] %v1668
          %1673 = vst [vmem:[#allocation3 + $0x90] sm:$0xff] %v1669
          %1674 = vst [vmem:[#allocation3 + $0x98] sm:$0xff] %v1670
          %1675 = vrot.lane.b32.xlu0 %v1466, 127
          %v1676 = vpop.permute.xlu0 %1675
          %1677 = vrot.lane.b32.xlu0 %v1467, 127
          %v1678 = vpop.permute.xlu0 %1677
          %1679 = vrot.lane.b32.xlu0 %v1468, 127
          %v1680 = vpop.permute.xlu0 %1679
          %1681 = vrot.lane.b32.xlu0 %v1469, 127
          %v1682 = vpop.permute.xlu0 %1681
          %1683 = vrot.lane.b32.xlu0 %v1470, 127
          %v1684 = vpop.permute.xlu0 %1683
          %1685 = vrot.lane.b32.xlu0 %v1471, 127
          %v1686 = vpop.permute.xlu0 %1685
          %1687 = vrot.lane.b32.xlu0 %v1472, 127
          %v1688 = vpop.permute.xlu0 %1687
          %1689 = vrot.lane.b32.xlu0 %v1473, 127
          %v1690 = vpop.permute.xlu0 %1689
          %v1691 = vsel %vm452, %v1676, %v1678
          %v1692 = vsel %vm452, %v1680, %v1682
          %v1693 = vsel %vm452, %v1684, %v1686
          %v1694 = vsel %vm452, %v1688, %v1690
          %v1703 = vsel %vm452, %v1678, 0.0
          %v1704 = vsel %vm452, %v1682, 0.0
          %v1705 = vsel %vm452, %v1686, 0.0
          %v1706 = vsel %vm452, %v1690, 0.0
          %v1707 = vsel %vm361, %v1691, 0.0
          %v1708 = vsel %vm362, %v1703, 0.0
          %v1709 = vsel %vm361, %v1692, 0.0
          %v1710 = vsel %vm362, %v1704, 0.0
          %v1711 = vsel %vm361, %v1693, 0.0
          %v1712 = vsel %vm362, %v1705, 0.0
          %v1713 = vsel %vm361, %v1694, 0.0
          %v1714 = vsel %vm362, %v1706, 0.0
          %v1715 = vpack.c.bf16 %v1709, %v1707
          %v1716 = vpack.c.bf16 %v1710, %v1708
          %v1717 = vpack.c.bf16 %v1713, %v1711
          %v1718 = vpack.c.bf16 %v1714, %v1712
          %1719 = vst [vmem:[#allocation3 + $0xa0] sm:$0xff] %v1715
          %1720 = vst [vmem:[#allocation3 + $0xa8] sm:$0xff] %v1716
          %1721 = vst [vmem:[#allocation3 + $0xb0] sm:$0xff] %v1717
          %1722 = vst [vmem:[#allocation3 + $0xb8] sm:$0xff] %v1718
          %1723 = vrot.lane.b32.xlu0 %v1466, 113
          %v1724 = vpop.permute.xlu0 %1723
          %1725 = vrot.lane.b32.xlu0 %v1467, 113
          %v1726 = vpop.permute.xlu0 %1725
          %1727 = vrot.lane.b32.xlu0 %v1468, 113
          %v1728 = vpop.permute.xlu0 %1727
          %1729 = vrot.lane.b32.xlu0 %v1469, 113
          %v1730 = vpop.permute.xlu0 %1729
          %1731 = vrot.lane.b32.xlu0 %v1470, 113
          %v1732 = vpop.permute.xlu0 %1731
          %1733 = vrot.lane.b32.xlu0 %v1471, 113
          %v1734 = vpop.permute.xlu0 %1733
          %1735 = vrot.lane.b32.xlu0 %v1472, 113
          %v1736 = vpop.permute.xlu0 %1735
          %1737 = vrot.lane.b32.xlu0 %v1473, 113
          %v1738 = vpop.permute.xlu0 %1737
          %v1739 = vsel %vm501, %v1724, %v1726
          %v1740 = vsel %vm501, %v1728, %v1730
          %v1741 = vsel %vm501, %v1732, %v1734
          %v1742 = vsel %vm501, %v1736, %v1738
          %v1751 = vsel %vm501, %v1726, 0.0
          %v1752 = vsel %vm501, %v1730, 0.0
          %v1753 = vsel %vm501, %v1734, 0.0
          %v1754 = vsel %vm501, %v1738, 0.0
          %v1755 = vsel %vm267, %v1739, 0.0
          %v1756 = vsel %vm268, %v1751, 0.0
          %v1757 = vsel %vm267, %v1740, 0.0
          %v1758 = vsel %vm268, %v1752, 0.0
          %v1759 = vsel %vm267, %v1741, 0.0
          %v1760 = vsel %vm268, %v1753, 0.0
          %v1761 = vsel %vm267, %v1742, 0.0
          %v1762 = vsel %vm268, %v1754, 0.0
          %v1763 = vpack.c.bf16 %v1757, %v1755
          %v1764 = vpack.c.bf16 %v1758, %v1756
          %v1765 = vpack.c.bf16 %v1761, %v1759
          %v1766 = vpack.c.bf16 %v1762, %v1760
          %1767 = vst [vmem:[#allocation3 + $0xc0] sm:$0xff] %v1763
          %1768 = vst [vmem:[#allocation3 + $0xc8] sm:$0xff] %v1764
          %1769 = vst [vmem:[#allocation3 + $0xd0] sm:$0xff] %v1765
          %1770 = vst [vmem:[#allocation3 + $0xd8] sm:$0xff] %v1766
          %1771 = vrot.lane.b32.xlu0 %v1466, 112
          %v1772 = vpop.permute.xlu0 %1771
          %1773 = vrot.lane.b32.xlu0 %v1467, 112
          %v1774 = vpop.permute.xlu0 %1773
          %1775 = vrot.lane.b32.xlu0 %v1468, 112
          %v1776 = vpop.permute.xlu0 %1775
          %1777 = vrot.lane.b32.xlu0 %v1469, 112
          %v1778 = vpop.permute.xlu0 %1777
          %1779 = vrot.lane.b32.xlu0 %v1470, 112
          %v1780 = vpop.permute.xlu0 %1779
          %1781 = vrot.lane.b32.xlu0 %v1471, 112
          %v1782 = vpop.permute.xlu0 %1781
          %1783 = vrot.lane.b32.xlu0 %v1472, 112
          %v1784 = vpop.permute.xlu0 %1783
          %1785 = vrot.lane.b32.xlu0 %v1473, 112
          %v1786 = vpop.permute.xlu0 %1785
          %v1787 = vsel %vm550, %v1772, %v1774
          %v1788 = vsel %vm550, %v1776, %v1778
          %v1789 = vsel %vm550, %v1780, %v1782
          %v1790 = vsel %vm550, %v1784, %v1786
          %v1799 = vsel %vm550, %v1774, 0.0
          %v1800 = vsel %vm550, %v1778, 0.0
          %v1801 = vsel %vm550, %v1782, 0.0
          %v1802 = vsel %vm550, %v1786, 0.0
          %v1803 = vpack.c.bf16 %v1788, %v1787
          %v1804 = vpack.c.bf16 %v1800, %v1799
          %v1805 = vpack.c.bf16 %v1790, %v1789
          %v1806 = vpack.c.bf16 %v1802, %v1801
          %1807 = vst [vmem:[#allocation3 + $0xe0] sm:$0xff] %v1803
          %1808 = vst [vmem:[#allocation3 + $0xe8] sm:$0xff] %v1804
          %1809 = vst [vmem:[#allocation3 + $0xf0] sm:$0xff] %v1805
          %1810 = vst [vmem:[#allocation3 + $0xf8] sm:$0xff] %v1806
          %1811 = vrot.lane.b32.xlu0 %v1466, 111
          %v1812 = vpop.permute.xlu0 %1811
          %1813 = vrot.lane.b32.xlu0 %v1467, 111
          %v1814 = vpop.permute.xlu0 %1813
          %1815 = vrot.lane.b32.xlu0 %v1468, 111
          %v1816 = vpop.permute.xlu0 %1815
          %1817 = vrot.lane.b32.xlu0 %v1469, 111
          %v1818 = vpop.permute.xlu0 %1817
          %1819 = vrot.lane.b32.xlu0 %v1470, 111
          %v1820 = vpop.permute.xlu0 %1819
          %1821 = vrot.lane.b32.xlu0 %v1471, 111
          %v1822 = vpop.permute.xlu0 %1821
          %1823 = vrot.lane.b32.xlu0 %v1472, 111
          %v1824 = vpop.permute.xlu0 %1823
          %1825 = vrot.lane.b32.xlu0 %v1473, 111
          %v1826 = vpop.permute.xlu0 %1825
          %v1827 = vsel %vm591, %v1812, %v1814
          %v1828 = vsel %vm591, %v1816, %v1818
          %v1829 = vsel %vm591, %v1820, %v1822
          %v1830 = vsel %vm591, %v1824, %v1826
          %v1839 = vsel %vm591, %v1814, 0.0
          %v1840 = vsel %vm591, %v1818, 0.0
          %v1841 = vsel %vm591, %v1822, 0.0
          %v1842 = vsel %vm591, %v1826, 0.0
          %v1843 = vsel %vm361, %v1827, 0.0
          %v1844 = vsel %vm362, %v1839, 0.0
          %v1845 = vsel %vm361, %v1828, 0.0
          %v1846 = vsel %vm362, %v1840, 0.0
          %v1847 = vsel %vm361, %v1829, 0.0
          %v1848 = vsel %vm362, %v1841, 0.0
          %v1849 = vsel %vm361, %v1830, 0.0
          %v1850 = vsel %vm362, %v1842, 0.0
          %v1851 = vpack.c.bf16 %v1845, %v1843
          %v1852 = vpack.c.bf16 %v1846, %v1844
          %v1853 = vpack.c.bf16 %v1849, %v1847
          %v1854 = vpack.c.bf16 %v1850, %v1848
          %1855 = vst [vmem:[#allocation3 + $0x100] sm:$0xff] %v1851
          %1856 = vst [vmem:[#allocation3 + $0x108] sm:$0xff] %v1852
          %1857 = vst [vmem:[#allocation3 + $0x110] sm:$0xff] %v1853
          %1858 = vst [vmem:[#allocation3 + $0x118] sm:$0xff] %v1854
          %s1859 = smul.u32 %s1474, 12
          %s1860 = smul.addr %s1859, 4
          %s1861 = scalar_lea.vmem [#allocation4], %s1860
          %v1862 = vld [vmem:[%s1861] sm:$0xff]
          %v1863 = vld [vmem:[%s1861 + $0x8] sm:$0xf]
          %v1864 = vld [vmem:[%s1861 + $0xc] sm:$0xff]
          %v1865 = vld [vmem:[%s1861 + $0x14] sm:$0xf]
          %v1866 = vld [vmem:[%s1861 + $0x18] sm:$0xff]
          %v1867 = vld [vmem:[%s1861 + $0x20] sm:$0xf]
          %v1868 = vld [vmem:[%s1861 + $0x24] sm:$0xff]
          %v1869 = vld [vmem:[%s1861 + $0x2c] sm:$0xf]
          %v1870 = vld [vmem:[#allocation3] sm:$0xff]
          %v1871 = vld [vmem:[#allocation3 + $0x8] sm:$0xff]
          %v1872 = vld [vmem:[#allocation3 + $0x10] sm:$0xff]
          %v1873 = vld [vmem:[#allocation3 + $0x18] sm:$0xff]
          %v1874 = vld [vmem:[#allocation3 + $0x20] sm:$0xff]
          %v1875 = vld [vmem:[#allocation3 + $0x28] sm:$0xff]
          %v1876 = vld [vmem:[#allocation3 + $0x30] sm:$0xff]
          %v1877 = vld [vmem:[#allocation3 + $0x38] sm:$0xff]
          %v1878 = vld [vmem:[#allocation3 + $0x40] sm:$0xff]
          %v1879 = vld [vmem:[#allocation3 + $0x48] sm:$0xff]
          %v1880 = vld [vmem:[#allocation3 + $0x50] sm:$0xff]
          %v1881 = vld [vmem:[#allocation3 + $0x58] sm:$0xff]
          %v1882 = vld [vmem:[#allocation3 + $0x60] sm:$0xff]
          %v1883 = vld [vmem:[#allocation3 + $0x68] sm:$0xff]
          %v1884 = vld [vmem:[#allocation3 + $0x70] sm:$0xff]
          %v1885 = vld [vmem:[#allocation3 + $0x78] sm:$0xff]
          %v1886 = vld [vmem:[#allocation3 + $0x80] sm:$0xff]
          %v1887 = vld [vmem:[#allocation3 + $0x88] sm:$0xff]
          %v1888 = vld [vmem:[#allocation3 + $0x90] sm:$0xff]
          %v1889 = vld [vmem:[#allocation3 + $0x98] sm:$0xff]
          %v1890 = vld [vmem:[#allocation3 + $0xa0] sm:$0xff]
          %v1891 = vld [vmem:[#allocation3 + $0xa8] sm:$0xff]
          %v1892 = vld [vmem:[#allocation3 + $0xb0] sm:$0xff]
          %v1893 = vld [vmem:[#allocation3 + $0xb8] sm:$0xff]
          %v1894 = vld [vmem:[#allocation3 + $0xc0] sm:$0xff]
          %v1895 = vld [vmem:[#allocation3 + $0xc8] sm:$0xff]
          %v1896 = vld [vmem:[#allocation3 + $0xd0] sm:$0xff]
          %v1897 = vld [vmem:[#allocation3 + $0xd8] sm:$0xff]
          %v1898 = vld [vmem:[#allocation3 + $0xe0] sm:$0xff]
          %v1899 = vld [vmem:[#allocation3 + $0xe8] sm:$0xff]
          %v1900 = vld [vmem:[#allocation3 + $0xf0] sm:$0xff]
          %v1901 = vld [vmem:[#allocation3 + $0xf8] sm:$0xff]
          %v1902 = vld [vmem:[#allocation3 + $0x100] sm:$0xff]
          %v1903 = vld [vmem:[#allocation3 + $0x108] sm:$0xff]
          %v1904 = vld [vmem:[#allocation3 + $0x110] sm:$0xff]
          %v1905 = vld [vmem:[#allocation3 + $0x118] sm:$0xff]
          %s1906 = smul.u32 %s1474, 32
          %s1907 = scalar_lea.vmem %s2, %s1906
          %v1908 = vld [vmem:[%s1907] sm:$0xff]
          %v1909 = vld [vmem:[%s1907 + $0x8] sm:$0xff]
          %v1910 = vld [vmem:[%s1907 + $0x10] sm:$0xff]
          %v1911 = vld [vmem:[%s1907 + $0x18] sm:$0xff]
          %1913 = vset.pattern.permute.xlu0 0
          %1914 = vperm.xlu0 %1913, %v1908
          %v1915 = vpop.permute.xlu0 %1914
          %1918 = vset.pattern.permute.xlu0 0
          %1919 = vperm.xlu0 %1918, %v1909
          %v1920 = vpop.permute.xlu0 %1919
          %1923 = vset.pattern.permute.xlu0 0
          %1924 = vperm.xlu0 %1923, %v1910
          %v1925 = vpop.permute.xlu0 %1924
          %1928 = vset.pattern.permute.xlu0 0
          %1929 = vperm.xlu0 %1928, %v1911
          %v1930 = vpop.permute.xlu0 %1929
          %v1940 = vunpack.c.l.b16 %v1862
          %v1941 = vunpack.c.h.b16 %v1862
          %v1942 = vunpack.c.l.b16 %v1863
          %v1943 = vunpack.c.l.b16 %v1864
          %v1944 = vunpack.c.h.b16 %v1864
          %v1945 = vunpack.c.l.b16 %v1865
          %v1946 = vunpack.c.l.b16 %v1866
          %v1947 = vunpack.c.h.b16 %v1866
          %v1948 = vunpack.c.l.b16 %v1867
          %v1949 = vunpack.c.l.b16 %v1868
          %v1950 = vunpack.c.h.b16 %v1868
          %v1951 = vunpack.c.l.b16 %v1869
          %v1952 = vpack.c.b16 %v1943, %v1940
          %v1953 = vpack.c.b16 %v1944, %v1941
          %v1954 = vpack.c.b16 %v1945, %v1942
          %v1955 = vpack.c.b16 %v1949, %v1946
          %v1956 = vpack.c.b16 %v1950, %v1947
          %v1957 = vpack.c.b16 %v1951, %v1948
          %v1963 = vsel %vm722, %v1954, 0
          %v1966 = vsel %vm722, %v1957, 0
          %1968 = vmatprep.subr.bf16.mxu0 %v1871
          %1969 = vmatpush1.bf16.msra.mxu0 %v1870
          %1970 = vmatprep.subr.bf16.mxu0 %v1873
          %1971 = vmatpush1.bf16.msra.mxu0 %v1872
          %1972 = vmatprep.subr.bf16.mxu0 %v1875
          %1973 = vmatpush1.bf16.msra.mxu0 %v1874
          %1974 = vmatprep.subr.bf16.mxu0 %v1877
          %1975 = vmatpush1.bf16.msra.mxu0 %v1876
          %1976 = vmatprep.subr.bf16.mxu0 %v1879
          %1977 = vmatpush1.bf16.msra.mxu0 %v1878
          %1978 = vmatprep.subr.bf16.mxu0 %v1881
          %1979 = vmatpush1.bf16.msra.mxu0 %v1880
          %1980 = vmatprep.subr.bf16.mxu0 %v1883
          %1981 = vmatpush1.bf16.msra.mxu0 %v1882
          %1982 = vmatprep.subr.bf16.mxu0 %v1885
          %1983 = vmatpush1.bf16.msra.mxu0 %v1884
          %1984 = vmatprep.subr.bf16.mxu0 %v1887
          %1985 = vmatpush1.bf16.msra.mxu0 %v1886
          %1986 = vmatprep.subr.bf16.mxu0 %v1889
          %1987 = vmatpush1.bf16.msra.mxu0 %v1888
          %1988 = vmatprep.subr.bf16.mxu0 %v1891
          %1989 = vmatpush1.bf16.msra.mxu0 %v1890
          %1990 = vmatprep.subr.bf16.mxu0 %v1893
          %1991 = vmatpush1.bf16.msra.mxu0 %v1892
          %1992 = vmatprep.subr.bf16.mxu0 %v1895
          %1993 = vmatpush1.bf16.msra.mxu0 %v1894
          %1994 = vmatprep.subr.bf16.mxu0 %v1897
          %1995 = vmatpush1.bf16.msra.mxu0 %v1896
          %1996 = vmatprep.subr.bf16.mxu0 %v1899
          %1997 = vmatpush1.bf16.msra.mxu0 %v1898
          %1998 = vmatprep.subr.bf16.mxu0 %v1901
          %1999 = vmatpush1.bf16.msra.mxu0 %v1900
          %2000 = vmatprep.mubr.bf16.mxu0 %v1953
          %2001 = vmatmul.mubr.bf16.gmra.mrb[0].mxu0 %v1952
          %v2002 = vpop.f32.mrb[0].mxu0
          %v2003 = vadd.f32 %v1915, %v2002
          %v2004 = vpop.f32.mrb[0].mxu0
          %v2005 = vadd.f32 %v1915, %v2004
          %v2006 = vpop.f32.mrb[0].mxu0
          %v2007 = vadd.f32 %v1920, %v2006
          %v2008 = vpop.f32.mrb[0].mxu0
          %v2009 = vadd.f32 %v1920, %v2008
          %2010 = vmatprep.mubr.bf16.mxu0 %v1956
          %2011 = vmatmul.mubr.bf16.gmra.mrb[0].mxu0 %v1955
          %v2012 = vpop.f32.mrb[0].mxu0
          %v2013 = vadd.f32 %v1925, %v2012
          %v2014 = vpop.f32.mrb[0].mxu0
          %v2015 = vadd.f32 %v1925, %v2014
          %v2016 = vpop.f32.mrb[0].mxu0
          %v2017 = vadd.f32 %v1930, %v2016
          %v2018 = vpop.f32.mrb[0].mxu0
          %v2019 = vadd.f32 %v1930, %v2018
          %2020 = vdwg.mxu0
          %2021 = vmatprep.subr.bf16.mxu0 %v1903
          %2022 = vmatpush1.bf16.msra.mxu0 %v1902
          %2023 = vmatprep.subr.bf16.mxu0 %v1905
          %2024 = vmatpush1.bf16.msra.mxu0 %v1904
          %2025 = vmatprep.subr.bf16.mxu0 0
          %2026 = vmatpush1.bf16.msra.mxu0 0
          %2027 = vmatprep.subr.bf16.mxu0 0
          %2028 = vmatpush1.bf16.msra.mxu0 0
          %2029 = vmatprep.subr.bf16.mxu0 0
          %2030 = vmatpush1.bf16.msra.mxu0 0
          %2031 = vmatprep.subr.bf16.mxu0 0
          %2032 = vmatpush1.bf16.msra.mxu0 0
          %2033 = vmatprep.subr.bf16.mxu0 0
          %2034 = vmatpush1.bf16.msra.mxu0 0
          %2035 = vmatprep.subr.bf16.mxu0 0
          %2036 = vmatpush1.bf16.msra.mxu0 0
          %2037 = vmatprep.subr.bf16.mxu0 0
          %2038 = vmatpush1.bf16.msra.mxu0 0
          %2039 = vmatprep.subr.bf16.mxu0 0
          %2040 = vmatpush1.bf16.msra.mxu0 0
          %2041 = vmatprep.subr.bf16.mxu0 0
          %2042 = vmatpush1.bf16.msra.mxu0 0
          %2043 = vmatprep.subr.bf16.mxu0 0
          %2044 = vmatpush1.bf16.msra.mxu0 0
          %2045 = vmatprep.subr.bf16.mxu0 0
          %2046 = vmatpush1.bf16.msra.mxu0 0
          %2047 = vmatprep.subr.bf16.mxu0 0
          %2048 = vmatpush1.bf16.msra.mxu0 0
          %2049 = vmatprep.subr.bf16.mxu0 0
          %2050 = vmatpush1.bf16.msra.mxu0 0
          %2051 = vmatprep.subr.bf16.mxu0 0
          %2052 = vmatpush1.bf16.msra.mxu0 0
          %2053 = vmatprep.mubr.bf16.mxu0 0
          %2054 = vmatmul.mubr.bf16.gmra.mrb[0].mxu0 %v1963
          %v2055 = vpop.f32.mrb[0].mxu0
          %v2056 = vadd.f32 %v2003, %v2055
          %v2057 = vpop.f32.mrb[0].mxu0
          %v2058 = vadd.f32 %v2005, %v2057
          %v2059 = vpop.f32.mrb[0].mxu0
          %v2060 = vadd.f32 %v2007, %v2059
          %v2061 = vpop.f32.mrb[0].mxu0
          %v2062 = vadd.f32 %v2009, %v2061
          %2063 = vmatprep.mubr.bf16.mxu0 0
          %2064 = vmatmul.mubr.bf16.gmra.mrb[0].mxu0 %v1966
          %v2065 = vpop.f32.mrb[0].mxu0
          %v2066 = vadd.f32 %v2013, %v2065
          %v2067 = vpop.f32.mrb[0].mxu0
          %v2068 = vadd.f32 %v2015, %v2067
          %v2069 = vpop.f32.mrb[0].mxu0
          %v2070 = vadd.f32 %v2017, %v2069
          %v2071 = vpop.f32.mrb[0].mxu0
          %v2072 = vadd.f32 %v2019, %v2071
          %2073 = vdwg.mxu0
          %v2074 = vld [vmem:[#allocation2] sm:$0xff]
          %v2075 = vld [vmem:[#allocation2 + $0x8] sm:$0xff]
          %v2076 = vld [vmem:[#allocation2 + $0x10] sm:$0xff]
          %v2077 = vld [vmem:[#allocation2 + $0x18] sm:$0xff]
          %v2078 = vld [vmem:[#allocation2 + $0x20] sm:$0xff]
          %v2079 = vld [vmem:[#allocation2 + $0x28] sm:$0xff]
          %v2080 = vld [vmem:[#allocation2 + $0x30] sm:$0xff]
          %v2081 = vld [vmem:[#allocation2 + $0x38] sm:$0xff]
          %v2082 = vadd.f32 %v2074, %v2056
          %v2083 = vadd.f32 %v2075, %v2058
          %v2084 = vadd.f32 %v2076, %v2060
          %v2085 = vadd.f32 %v2077, %v2062
          %v2086 = vadd.f32 %v2078, %v2066
          %v2087 = vadd.f32 %v2079, %v2068
          %v2088 = vadd.f32 %v2080, %v2070
          %v2089 = vadd.f32 %v2081, %v2072
          %2090 = vst [vmem:[#allocation2] sm:$0xff] %v2082
          %2091 = vst [vmem:[#allocation2 + $0x8] sm:$0xff] %v2083
          %2092 = vst [vmem:[#allocation2 + $0x10] sm:$0xff] %v2084
          %2093 = vst [vmem:[#allocation2 + $0x18] sm:$0xff] %v2085
          %2094 = vst [vmem:[#allocation2 + $0x20] sm:$0xff] %v2086
          %2095 = vst [vmem:[#allocation2 + $0x28] sm:$0xff] %v2087
          %2096 = vst [vmem:[#allocation2 + $0x30] sm:$0xff] %v2088
          %2097 = vst [vmem:[#allocation2 + $0x38] sm:$0xff] %v2089
        $region41: #{tpu_custom_call.1} parent=31 // loop_footer
          %s856 = sadd.s32 1, %s852
        $region42: #{tpu_custom_call.1} parent=31 // loop_footer_branch
          %851 = sbr.rel target = $region38
        $region43: #{tpu_custom_call.1} parent=31 // loop_exit
          _
        %v2098 = vld [vmem:[%s178] sm:$0xff]
        %v2099 = vld [vmem:[%s178 + $0x8] sm:$0xff]
        %v2100 = vld [vmem:[%s178 + $0x10] sm:$0xff]
        %v2101 = vld [vmem:[%s178 + $0x18] sm:$0xff]
        %v2102 = vld [vmem:[%s178 + $0x20] sm:$0xff]
        %v2103 = vld [vmem:[%s178 + $0x28] sm:$0xff]
        %v2104 = vld [vmem:[%s178 + $0x30] sm:$0xff]
        %v2105 = vld [vmem:[%s178 + $0x38] sm:$0xff]
        %v2106 = vld [vmem:[#allocation2] sm:$0xff]
        %v2107 = vld [vmem:[#allocation2 + $0x8] sm:$0xff]
        %v2108 = vld [vmem:[#allocation2 + $0x10] sm:$0xff]
        %v2109 = vld [vmem:[#allocation2 + $0x18] sm:$0xff]
        %v2110 = vld [vmem:[#allocation2 + $0x20] sm:$0xff]
        %v2111 = vld [vmem:[#allocation2 + $0x28] sm:$0xff]
        %v2112 = vld [vmem:[#allocation2 + $0x30] sm:$0xff]
        %v2113 = vld [vmem:[#allocation2 + $0x38] sm:$0xff]
        %2122 = vrot.lane.b32.xlu0 %v2106, 17
        %v2123 = vpop.permute.xlu0 %2122
        %2124 = vrot.lane.b32.xlu0 %v2107, 17
        %v2125 = vpop.permute.xlu0 %2124
        %2126 = vrot.lane.b32.xlu0 %v2108, 17
        %v2127 = vpop.permute.xlu0 %2126
        %2128 = vrot.lane.b32.xlu0 %v2109, 17
        %v2129 = vpop.permute.xlu0 %2128
        %2130 = vrot.lane.b32.xlu0 %v2110, 17
        %v2131 = vpop.permute.xlu0 %2130
        %2132 = vrot.lane.b32.xlu0 %v2111, 17
        %v2133 = vpop.permute.xlu0 %2132
        %2134 = vrot.lane.b32.xlu0 %v2112, 17
        %v2135 = vpop.permute.xlu0 %2134
        %2136 = vrot.lane.b32.xlu0 %v2113, 17
        %v2137 = vpop.permute.xlu0 %2136
        %v2138 = vsel %vm248, %v2123, %v2125
        %v2139 = vsel %vm248, %v2127, %v2129
        %v2140 = vsel %vm248, %v2131, %v2133
        %v2141 = vsel %vm248, %v2135, %v2137
        %v2150 = vsel %vm248, 0.0, %v2123
        %v2151 = vsel %vm248, 0.0, %v2127
        %v2152 = vsel %vm248, 0.0, %v2131
        %v2153 = vsel %vm248, 0.0, %v2135
        %v2154 = vsel %vm267, %v2150, 0.0
        %v2155 = vsel %vm268, %v2138, 0.0
        %v2156 = vsel %vm267, %v2151, 0.0
        %v2157 = vsel %vm268, %v2139, 0.0
        %v2158 = vsel %vm267, %v2152, 0.0
        %v2159 = vsel %vm268, %v2140, 0.0
        %v2160 = vsel %vm267, %v2153, 0.0
        %v2161 = vsel %vm268, %v2141, 0.0
        %v2162 = vpack.c.bf16 %v2156, %v2154
        %v2163 = vpack.c.bf16 %v2157, %v2155
        %v2164 = vpack.c.bf16 %v2160, %v2158
        %v2165 = vpack.c.bf16 %v2161, %v2159
        %2166 = vst [vmem:[#allocation3] sm:$0xff] %v2162
        %2167 = vst [vmem:[#allocation3 + $0x8] sm:$0xff] %v2163
        %2168 = vst [vmem:[#allocation3 + $0x10] sm:$0xff] %v2164
        %2169 = vst [vmem:[#allocation3 + $0x18] sm:$0xff] %v2165
        %2170 = vrot.lane.b32.xlu0 %v2106, 16
        %v2171 = vpop.permute.xlu0 %2170
        %2172 = vrot.lane.b32.xlu0 %v2107, 16
        %v2173 = vpop.permute.xlu0 %2172
        %2174 = vrot.lane.b32.xlu0 %v2108, 16
        %v2175 = vpop.permute.xlu0 %2174
        %2176 = vrot.lane.b32.xlu0 %v2109, 16
        %v2177 = vpop.permute.xlu0 %2176
        %2178 = vrot.lane.b32.xlu0 %v2110, 16
        %v2179 = vpop.permute.xlu0 %2178
        %2180 = vrot.lane.b32.xlu0 %v2111, 16
        %v2181 = vpop.permute.xlu0 %2180
        %2182 = vrot.lane.b32.xlu0 %v2112, 16
        %v2183 = vpop.permute.xlu0 %2182
        %2184 = vrot.lane.b32.xlu0 %v2113, 16
        %v2185 = vpop.permute.xlu0 %2184
        %v2186 = vsel %vm301, %v2171, %v2173
        %v2187 = vsel %vm301, %v2175, %v2177
        %v2188 = vsel %vm301, %v2179, %v2181
        %v2189 = vsel %vm301, %v2183, %v2185
        %v2198 = vsel %vm301, 0.0, %v2171
        %v2199 = vsel %vm301, 0.0, %v2175
        %v2200 = vsel %vm301, 0.0, %v2179
        %v2201 = vsel %vm301, 0.0, %v2183
        %v2202 = vpack.c.bf16 %v2199, %v2198
        %v2203 = vpack.c.bf16 %v2187, %v2186
        %v2204 = vpack.c.bf16 %v2201, %v2200
        %v2205 = vpack.c.bf16 %v2189, %v2188
        %2206 = vst [vmem:[#allocation3 + $0x20] sm:$0xff] %v2202
        %2207 = vst [vmem:[#allocation3 + $0x28] sm:$0xff] %v2203
        %2208 = vst [vmem:[#allocation3 + $0x30] sm:$0xff] %v2204
        %2209 = vst [vmem:[#allocation3 + $0x38] sm:$0xff] %v2205
        %2210 = vrot.lane.b32.xlu0 %v2106, 15
        %v2211 = vpop.permute.xlu0 %2210
        %2212 = vrot.lane.b32.xlu0 %v2107, 15
        %v2213 = vpop.permute.xlu0 %2212
        %2214 = vrot.lane.b32.xlu0 %v2108, 15
        %v2215 = vpop.permute.xlu0 %2214
        %2216 = vrot.lane.b32.xlu0 %v2109, 15
        %v2217 = vpop.permute.xlu0 %2216
        %2218 = vrot.lane.b32.xlu0 %v2110, 15
        %v2219 = vpop.permute.xlu0 %2218
        %2220 = vrot.lane.b32.xlu0 %v2111, 15
        %v2221 = vpop.permute.xlu0 %2220
        %2222 = vrot.lane.b32.xlu0 %v2112, 15
        %v2223 = vpop.permute.xlu0 %2222
        %2224 = vrot.lane.b32.xlu0 %v2113, 15
        %v2225 = vpop.permute.xlu0 %2224
        %v2226 = vsel %vm342, %v2211, %v2213
        %v2227 = vsel %vm342, %v2215, %v2217
        %v2228 = vsel %vm342, %v2219, %v2221
        %v2229 = vsel %vm342, %v2223, %v2225
        %v2238 = vsel %vm342, 0.0, %v2211
        %v2239 = vsel %vm342, 0.0, %v2215
        %v2240 = vsel %vm342, 0.0, %v2219
        %v2241 = vsel %vm342, 0.0, %v2223
        %v2242 = vsel %vm361, %v2238, 0.0
        %v2243 = vsel %vm362, %v2226, 0.0
        %v2244 = vsel %vm361, %v2239, 0.0
        %v2245 = vsel %vm362, %v2227, 0.0
        %v2246 = vsel %vm361, %v2240, 0.0
        %v2247 = vsel %vm362, %v2228, 0.0
        %v2248 = vsel %vm361, %v2241, 0.0
        %v2249 = vsel %vm362, %v2229, 0.0
        %v2250 = vpack.c.bf16 %v2244, %v2242
        %v2251 = vpack.c.bf16 %v2245, %v2243
        %v2252 = vpack.c.bf16 %v2248, %v2246
        %v2253 = vpack.c.bf16 %v2249, %v2247
        %2254 = vst [vmem:[#allocation3 + $0x40] sm:$0xff] %v2250
        %2255 = vst [vmem:[#allocation3 + $0x48] sm:$0xff] %v2251
        %2256 = vst [vmem:[#allocation3 + $0x50] sm:$0xff] %v2252
        %2257 = vst [vmem:[#allocation3 + $0x58] sm:$0xff] %v2253
        %2258 = vrot.lane.b32.xlu0 %v2106, 1
        %v2259 = vpop.permute.xlu0 %2258
        %2260 = vrot.lane.b32.xlu0 %v2107, 1
        %v2261 = vpop.permute.xlu0 %2260
        %2262 = vrot.lane.b32.xlu0 %v2108, 1
        %v2263 = vpop.permute.xlu0 %2262
        %2264 = vrot.lane.b32.xlu0 %v2109, 1
        %v2265 = vpop.permute.xlu0 %2264
        %2266 = vrot.lane.b32.xlu0 %v2110, 1
        %v2267 = vpop.permute.xlu0 %2266
        %2268 = vrot.lane.b32.xlu0 %v2111, 1
        %v2269 = vpop.permute.xlu0 %2268
        %2270 = vrot.lane.b32.xlu0 %v2112, 1
        %v2271 = vpop.permute.xlu0 %2270
        %2272 = vrot.lane.b32.xlu0 %v2113, 1
        %v2273 = vpop.permute.xlu0 %2272
        %v2274 = vsel %vm395, %v2259, %v2261
        %v2275 = vsel %vm395, %v2263, %v2265
        %v2276 = vsel %vm395, %v2267, %v2269
        %v2277 = vsel %vm395, %v2271, %v2273
        %v2286 = vsel %vm395, 0.0, %v2259
        %v2287 = vsel %vm395, 0.0, %v2263
        %v2288 = vsel %vm395, 0.0, %v2267
        %v2289 = vsel %vm395, 0.0, %v2271
        %v2290 = vsel %vm267, %v2286, 0.0
        %v2291 = vsel %vm268, %v2274, 0.0
        %v2292 = vsel %vm267, %v2287, 0.0
        %v2293 = vsel %vm268, %v2275, 0.0
        %v2294 = vsel %vm267, %v2288, 0.0
        %v2295 = vsel %vm268, %v2276, 0.0
        %v2296 = vsel %vm267, %v2289, 0.0
        %v2297 = vsel %vm268, %v2277, 0.0
        %v2298 = vpack.c.bf16 %v2292, %v2290
        %v2299 = vpack.c.bf16 %v2293, %v2291
        %v2300 = vpack.c.bf16 %v2296, %v2294
        %v2301 = vpack.c.bf16 %v2297, %v2295
        %2302 = vst [vmem:[#allocation3 + $0x60] sm:$0xff] %v2298
        %2303 = vst [vmem:[#allocation3 + $0x68] sm:$0xff] %v2299
        %2304 = vst [vmem:[#allocation3 + $0x70] sm:$0xff] %v2300
        %2305 = vst [vmem:[#allocation3 + $0x78] sm:$0xff] %v2301
        %v2306 = vpack.c.bf16 %v2108, %v2106
        %v2307 = vpack.c.bf16 %v2109, %v2107
        %v2308 = vpack.c.bf16 %v2112, %v2110
        %v2309 = vpack.c.bf16 %v2113, %v2111
        %2310 = vst [vmem:[#allocation3 + $0x80] sm:$0xff] %v2306
        %2311 = vst [vmem:[#allocation3 + $0x88] sm:$0xff] %v2307
        %2312 = vst [vmem:[#allocation3 + $0x90] sm:$0xff] %v2308
        %2313 = vst [vmem:[#allocation3 + $0x98] sm:$0xff] %v2309
        %2314 = vrot.lane.b32.xlu0 %v2106, 127
        %v2315 = vpop.permute.xlu0 %2314
        %2316 = vrot.lane.b32.xlu0 %v2107, 127
        %v2317 = vpop.permute.xlu0 %2316
        %2318 = vrot.lane.b32.xlu0 %v2108, 127
        %v2319 = vpop.permute.xlu0 %2318
        %2320 = vrot.lane.b32.xlu0 %v2109, 127
        %v2321 = vpop.permute.xlu0 %2320
        %2322 = vrot.lane.b32.xlu0 %v2110, 127
        %v2323 = vpop.permute.xlu0 %2322
        %2324 = vrot.lane.b32.xlu0 %v2111, 127
        %v2325 = vpop.permute.xlu0 %2324
        %2326 = vrot.lane.b32.xlu0 %v2112, 127
        %v2327 = vpop.permute.xlu0 %2326
        %2328 = vrot.lane.b32.xlu0 %v2113, 127
        %v2329 = vpop.permute.xlu0 %2328
        %v2330 = vsel %vm452, %v2315, %v2317
        %v2331 = vsel %vm452, %v2319, %v2321
        %v2332 = vsel %vm452, %v2323, %v2325
        %v2333 = vsel %vm452, %v2327, %v2329
        %v2342 = vsel %vm452, %v2317, 0.0
        %v2343 = vsel %vm452, %v2321, 0.0
        %v2344 = vsel %vm452, %v2325, 0.0
        %v2345 = vsel %vm452, %v2329, 0.0
        %v2346 = vsel %vm361, %v2330, 0.0
        %v2347 = vsel %vm362, %v2342, 0.0
        %v2348 = vsel %vm361, %v2331, 0.0
        %v2349 = vsel %vm362, %v2343, 0.0
        %v2350 = vsel %vm361, %v2332, 0.0
        %v2351 = vsel %vm362, %v2344, 0.0
        %v2352 = vsel %vm361, %v2333, 0.0
        %v2353 = vsel %vm362, %v2345, 0.0
        %v2354 = vpack.c.bf16 %v2348, %v2346
        %v2355 = vpack.c.bf16 %v2349, %v2347
        %v2356 = vpack.c.bf16 %v2352, %v2350
        %v2357 = vpack.c.bf16 %v2353, %v2351
        %2358 = vst [vmem:[#allocation3 + $0xa0] sm:$0xff] %v2354
        %2359 = vst [vmem:[#allocation3 + $0xa8] sm:$0xff] %v2355
        %2360 = vst [vmem:[#allocation3 + $0xb0] sm:$0xff] %v2356
        %2361 = vst [vmem:[#allocation3 + $0xb8] sm:$0xff] %v2357
        %2362 = vrot.lane.b32.xlu0 %v2106, 113
        %v2363 = vpop.permute.xlu0 %2362
        %2364 = vrot.lane.b32.xlu0 %v2107, 113
        %v2365 = vpop.permute.xlu0 %2364
        %2366 = vrot.lane.b32.xlu0 %v2108, 113
        %v2367 = vpop.permute.xlu0 %2366
        %2368 = vrot.lane.b32.xlu0 %v2109, 113
        %v2369 = vpop.permute.xlu0 %2368
        %2370 = vrot.lane.b32.xlu0 %v2110, 113
        %v2371 = vpop.permute.xlu0 %2370
        %2372 = vrot.lane.b32.xlu0 %v2111, 113
        %v2373 = vpop.permute.xlu0 %2372
        %2374 = vrot.lane.b32.xlu0 %v2112, 113
        %v2375 = vpop.permute.xlu0 %2374
        %2376 = vrot.lane.b32.xlu0 %v2113, 113
        %v2377 = vpop.permute.xlu0 %2376
        %v2378 = vsel %vm501, %v2363, %v2365
        %v2379 = vsel %vm501, %v2367, %v2369
        %v2380 = vsel %vm501, %v2371, %v2373
        %v2381 = vsel %vm501, %v2375, %v2377
        %v2390 = vsel %vm501, %v2365, 0.0
        %v2391 = vsel %vm501, %v2369, 0.0
        %v2392 = vsel %vm501, %v2373, 0.0
        %v2393 = vsel %vm501, %v2377, 0.0
        %v2394 = vsel %vm267, %v2378, 0.0
        %v2395 = vsel %vm268, %v2390, 0.0
        %v2396 = vsel %vm267, %v2379, 0.0
        %v2397 = vsel %vm268, %v2391, 0.0
        %v2398 = vsel %vm267, %v2380, 0.0
        %v2399 = vsel %vm268, %v2392, 0.0
        %v2400 = vsel %vm267, %v2381, 0.0
        %v2401 = vsel %vm268, %v2393, 0.0
        %v2402 = vpack.c.bf16 %v2396, %v2394
        %v2403 = vpack.c.bf16 %v2397, %v2395
        %v2404 = vpack.c.bf16 %v2400, %v2398
        %v2405 = vpack.c.bf16 %v2401, %v2399
        %2406 = vst [vmem:[#allocation3 + $0xc0] sm:$0xff] %v2402
        %2407 = vst [vmem:[#allocation3 + $0xc8] sm:$0xff] %v2403
        %2408 = vst [vmem:[#allocation3 + $0xd0] sm:$0xff] %v2404
        %2409 = vst [vmem:[#allocation3 + $0xd8] sm:$0xff] %v2405
        %2410 = vrot.lane.b32.xlu0 %v2106, 112
        %v2411 = vpop.permute.xlu0 %2410
        %2412 = vrot.lane.b32.xlu0 %v2107, 112
        %v2413 = vpop.permute.xlu0 %2412
        %2414 = vrot.lane.b32.xlu0 %v2108, 112
        %v2415 = vpop.permute.xlu0 %2414
        %2416 = vrot.lane.b32.xlu0 %v2109, 112
        %v2417 = vpop.permute.xlu0 %2416
        %2418 = vrot.lane.b32.xlu0 %v2110, 112
        %v2419 = vpop.permute.xlu0 %2418
        %2420 = vrot.lane.b32.xlu0 %v2111, 112
        %v2421 = vpop.permute.xlu0 %2420
        %2422 = vrot.lane.b32.xlu0 %v2112, 112
        %v2423 = vpop.permute.xlu0 %2422
        %2424 = vrot.lane.b32.xlu0 %v2113, 112
        %v2425 = vpop.permute.xlu0 %2424
        %v2426 = vsel %vm550, %v2411, %v2413
        %v2427 = vsel %vm550, %v2415, %v2417
        %v2428 = vsel %vm550, %v2419, %v2421
        %v2429 = vsel %vm550, %v2423, %v2425
        %v2438 = vsel %vm550, %v2413, 0.0
        %v2439 = vsel %vm550, %v2417, 0.0
        %v2440 = vsel %vm550, %v2421, 0.0
        %v2441 = vsel %vm550, %v2425, 0.0
        %v2442 = vpack.c.bf16 %v2427, %v2426
        %v2443 = vpack.c.bf16 %v2439, %v2438
        %v2444 = vpack.c.bf16 %v2429, %v2428
        %v2445 = vpack.c.bf16 %v2441, %v2440
        %2446 = vst [vmem:[#allocation3 + $0xe0] sm:$0xff] %v2442
        %2447 = vst [vmem:[#allocation3 + $0xe8] sm:$0xff] %v2443
        %2448 = vst [vmem:[#allocation3 + $0xf0] sm:$0xff] %v2444
        %2449 = vst [vmem:[#allocation3 + $0xf8] sm:$0xff] %v2445
        %2450 = vrot.lane.b32.xlu0 %v2106, 111
        %v2451 = vpop.permute.xlu0 %2450
        %2452 = vrot.lane.b32.xlu0 %v2107, 111
        %v2453 = vpop.permute.xlu0 %2452
        %2454 = vrot.lane.b32.xlu0 %v2108, 111
        %v2455 = vpop.permute.xlu0 %2454
        %2456 = vrot.lane.b32.xlu0 %v2109, 111
        %v2457 = vpop.permute.xlu0 %2456
        %2458 = vrot.lane.b32.xlu0 %v2110, 111
        %v2459 = vpop.permute.xlu0 %2458
        %2460 = vrot.lane.b32.xlu0 %v2111, 111
        %v2461 = vpop.permute.xlu0 %2460
        %2462 = vrot.lane.b32.xlu0 %v2112, 111
        %v2463 = vpop.permute.xlu0 %2462
        %2464 = vrot.lane.b32.xlu0 %v2113, 111
        %v2465 = vpop.permute.xlu0 %2464
        %v2466 = vsel %vm591, %v2451, %v2453
        %v2467 = vsel %vm591, %v2455, %v2457
        %v2468 = vsel %vm591, %v2459, %v2461
        %v2469 = vsel %vm591, %v2463, %v2465
        %v2478 = vsel %vm591, %v2453, 0.0
        %v2479 = vsel %vm591, %v2457, 0.0
        %v2480 = vsel %vm591, %v2461, 0.0
        %v2481 = vsel %vm591, %v2465, 0.0
        %v2482 = vsel %vm361, %v2466, 0.0
        %v2483 = vsel %vm362, %v2478, 0.0
        %v2484 = vsel %vm361, %v2467, 0.0
        %v2485 = vsel %vm362, %v2479, 0.0
        %v2486 = vsel %vm361, %v2468, 0.0
        %v2487 = vsel %vm362, %v2480, 0.0
        %v2488 = vsel %vm361, %v2469, 0.0
        %v2489 = vsel %vm362, %v2481, 0.0
        %v2490 = vpack.c.bf16 %v2484, %v2482
        %v2491 = vpack.c.bf16 %v2485, %v2483
        %v2492 = vpack.c.bf16 %v2488, %v2486
        %v2493 = vpack.c.bf16 %v2489, %v2487
        %2494 = vst [vmem:[#allocation3 + $0x100] sm:$0xff] %v2490
        %2495 = vst [vmem:[#allocation3 + $0x108] sm:$0xff] %v2491
        %2496 = vst [vmem:[#allocation3 + $0x110] sm:$0xff] %v2492
        %2497 = vst [vmem:[#allocation3 + $0x118] sm:$0xff] %v2493
        %s2498 = scalar_lea.vmem [#allocation4], 432
        %v2499 = vld [vmem:[%s2498] sm:$0xff]
        %v2500 = vld [vmem:[%s2498 + $0x8] sm:$0xf]
        %v2501 = vld [vmem:[%s2498 + $0xc] sm:$0xff]
        %v2502 = vld [vmem:[%s2498 + $0x14] sm:$0xf]
        %v2503 = vld [vmem:[%s2498 + $0x18] sm:$0xff]
        %v2504 = vld [vmem:[%s2498 + $0x20] sm:$0xf]
        %v2505 = vld [vmem:[%s2498 + $0x24] sm:$0xff]
        %v2506 = vld [vmem:[%s2498 + $0x2c] sm:$0xf]
        %v2507 = vld [vmem:[#allocation3] sm:$0xff]
        %v2508 = vld [vmem:[#allocation3 + $0x8] sm:$0xff]
        %v2509 = vld [vmem:[#allocation3 + $0x10] sm:$0xff]
        %v2510 = vld [vmem:[#allocation3 + $0x18] sm:$0xff]
        %v2511 = vld [vmem:[#allocation3 + $0x20] sm:$0xff]
        %v2512 = vld [vmem:[#allocation3 + $0x28] sm:$0xff]
        %v2513 = vld [vmem:[#allocation3 + $0x30] sm:$0xff]
        %v2514 = vld [vmem:[#allocation3 + $0x38] sm:$0xff]
        %v2515 = vld [vmem:[#allocation3 + $0x40] sm:$0xff]
        %v2516 = vld [vmem:[#allocation3 + $0x48] sm:$0xff]
        %v2517 = vld [vmem:[#allocation3 + $0x50] sm:$0xff]
        %v2518 = vld [vmem:[#allocation3 + $0x58] sm:$0xff]
        %v2519 = vld [vmem:[#allocation3 + $0x60] sm:$0xff]
        %v2520 = vld [vmem:[#allocation3 + $0x68] sm:$0xff]
        %v2521 = vld [vmem:[#allocation3 + $0x70] sm:$0xff]
        %v2522 = vld [vmem:[#allocation3 + $0x78] sm:$0xff]
        %v2523 = vld [vmem:[#allocation3 + $0x80] sm:$0xff]
        %v2524 = vld [vmem:[#allocation3 + $0x88] sm:$0xff]
        %v2525 = vld [vmem:[#allocation3 + $0x90] sm:$0xff]
        %v2526 = vld [vmem:[#allocation3 + $0x98] sm:$0xff]
        %v2527 = vld [vmem:[#allocation3 + $0xa0] sm:$0xff]
        %v2528 = vld [vmem:[#allocation3 + $0xa8] sm:$0xff]
        %v2529 = vld [vmem:[#allocation3 + $0xb0] sm:$0xff]
        %v2530 = vld [vmem:[#allocation3 + $0xb8] sm:$0xff]
        %v2531 = vld [vmem:[#allocation3 + $0xc0] sm:$0xff]
        %v2532 = vld [vmem:[#allocation3 + $0xc8] sm:$0xff]
        %v2533 = vld [vmem:[#allocation3 + $0xd0] sm:$0xff]
        %v2534 = vld [vmem:[#allocation3 + $0xd8] sm:$0xff]
        %v2535 = vld [vmem:[#allocation3 + $0xe0] sm:$0xff]
        %v2536 = vld [vmem:[#allocation3 + $0xe8] sm:$0xff]
        %v2537 = vld [vmem:[#allocation3 + $0xf0] sm:$0xff]
        %v2538 = vld [vmem:[#allocation3 + $0xf8] sm:$0xff]
        %v2539 = vld [vmem:[#allocation3 + $0x100] sm:$0xff]
        %v2540 = vld [vmem:[#allocation3 + $0x108] sm:$0xff]
        %v2541 = vld [vmem:[#allocation3 + $0x110] sm:$0xff]
        %v2542 = vld [vmem:[#allocation3 + $0x118] sm:$0xff]
        %s2543 = scalar_lea.vmem %s2, 288
        %v2544 = vld [vmem:[%s2543] sm:$0xff]
        %v2545 = vld [vmem:[%s2543 + $0x8] sm:$0xff]
        %v2546 = vld [vmem:[%s2543 + $0x10] sm:$0xff]
        %v2547 = vld [vmem:[%s2543 + $0x18] sm:$0xff]
        %2549 = vset.pattern.permute.xlu0 0
        %2550 = vperm.xlu0 %2549, %v2544
        %v2551 = vpop.permute.xlu0 %2550
        %2554 = vset.pattern.permute.xlu0 0
        %2555 = vperm.xlu0 %2554, %v2545
        %v2556 = vpop.permute.xlu0 %2555
        %2559 = vset.pattern.permute.xlu0 0
        %2560 = vperm.xlu0 %2559, %v2546
        %v2561 = vpop.permute.xlu0 %2560
        %2564 = vset.pattern.permute.xlu0 0
        %2565 = vperm.xlu0 %2564, %v2547
        %v2566 = vpop.permute.xlu0 %2565
        %v2576 = vunpack.c.l.b16 %v2499
        %v2577 = vunpack.c.h.b16 %v2499
        %v2578 = vunpack.c.l.b16 %v2500
        %v2579 = vunpack.c.l.b16 %v2501
        %v2580 = vunpack.c.h.b16 %v2501
        %v2581 = vunpack.c.l.b16 %v2502
        %v2582 = vunpack.c.l.b16 %v2503
        %v2583 = vunpack.c.h.b16 %v2503
        %v2584 = vunpack.c.l.b16 %v2504
        %v2585 = vunpack.c.l.b16 %v2505
        %v2586 = vunpack.c.h.b16 %v2505
        %v2587 = vunpack.c.l.b16 %v2506
        %v2588 = vpack.c.b16 %v2579, %v2576
        %v2589 = vpack.c.b16 %v2580, %v2577
        %v2590 = vpack.c.b16 %v2581, %v2578
        %v2591 = vpack.c.b16 %v2585, %v2582
        %v2592 = vpack.c.b16 %v2586, %v2583
        %v2593 = vpack.c.b16 %v2587, %v2584
        %v2599 = vsel %vm722, %v2590, 0
        %v2602 = vsel %vm722, %v2593, 0
        %2604 = vmatprep.subr.bf16.mxu0 %v2508
        %2605 = vmatpush1.bf16.msra.mxu0 %v2507
        %2606 = vmatprep.subr.bf16.mxu0 %v2510
        %2607 = vmatpush1.bf16.msra.mxu0 %v2509
        %2608 = vmatprep.subr.bf16.mxu0 %v2512
        %2609 = vmatpush1.bf16.msra.mxu0 %v2511
        %2610 = vmatprep.subr.bf16.mxu0 %v2514
        %2611 = vmatpush1.bf16.msra.mxu0 %v2513
        %2612 = vmatprep.subr.bf16.mxu0 %v2516
        %2613 = vmatpush1.bf16.msra.mxu0 %v2515
        %2614 = vmatprep.subr.bf16.mxu0 %v2518
        %2615 = vmatpush1.bf16.msra.mxu0 %v2517
        %2616 = vmatprep.subr.bf16.mxu0 %v2520
        %2617 = vmatpush1.bf16.msra.mxu0 %v2519
        %2618 = vmatprep.subr.bf16.mxu0 %v2522
        %2619 = vmatpush1.bf16.msra.mxu0 %v2521
        %2620 = vmatprep.subr.bf16.mxu0 %v2524
        %2621 = vmatpush1.bf16.msra.mxu0 %v2523
        %2622 = vmatprep.subr.bf16.mxu0 %v2526
        %2623 = vmatpush1.bf16.msra.mxu0 %v2525
        %2624 = vmatprep.subr.bf16.mxu0 %v2528
        %2625 = vmatpush1.bf16.msra.mxu0 %v2527
        %2626 = vmatprep.subr.bf16.mxu0 %v2530
        %2627 = vmatpush1.bf16.msra.mxu0 %v2529
        %2628 = vmatprep.subr.bf16.mxu0 %v2532
        %2629 = vmatpush1.bf16.msra.mxu0 %v2531
        %2630 = vmatprep.subr.bf16.mxu0 %v2534
        %2631 = vmatpush1.bf16.msra.mxu0 %v2533
        %2632 = vmatprep.subr.bf16.mxu0 %v2536
        %2633 = vmatpush1.bf16.msra.mxu0 %v2535
        %2634 = vmatprep.subr.bf16.mxu0 %v2538
        %2635 = vmatpush1.bf16.msra.mxu0 %v2537
        %2636 = vmatprep.mubr.bf16.mxu0 %v2589
        %2637 = vmatmul.mubr.bf16.gmra.mrb[0].mxu0 %v2588
        %v2638 = vpop.f32.mrb[0].mxu0
        %v2639 = vadd.f32 %v2551, %v2638
        %v2640 = vpop.f32.mrb[0].mxu0
        %v2641 = vadd.f32 %v2551, %v2640
        %v2642 = vpop.f32.mrb[0].mxu0
        %v2643 = vadd.f32 %v2556, %v2642
        %v2644 = vpop.f32.mrb[0].mxu0
        %v2645 = vadd.f32 %v2556, %v2644
        %2646 = vmatprep.mubr.bf16.mxu0 %v2592
        %2647 = vmatmul.mubr.bf16.gmra.mrb[0].mxu0 %v2591
        %v2648 = vpop.f32.mrb[0].mxu0
        %v2649 = vadd.f32 %v2561, %v2648
        %v2650 = vpop.f32.mrb[0].mxu0
        %v2651 = vadd.f32 %v2561, %v2650
        %v2652 = vpop.f32.mrb[0].mxu0
        %v2653 = vadd.f32 %v2566, %v2652
        %v2654 = vpop.f32.mrb[0].mxu0
        %v2655 = vadd.f32 %v2566, %v2654
        %2656 = vdwg.mxu0
        %2657 = vmatprep.subr.bf16.mxu0 %v2540
        %2658 = vmatpush1.bf16.msra.mxu0 %v2539
        %2659 = vmatprep.subr.bf16.mxu0 %v2542
        %2660 = vmatpush1.bf16.msra.mxu0 %v2541
        %2661 = vmatprep.subr.bf16.mxu0 0
        %2662 = vmatpush1.bf16.msra.mxu0 0
        %2663 = vmatprep.subr.bf16.mxu0 0
        %2664 = vmatpush1.bf16.msra.mxu0 0
        %2665 = vmatprep.subr.bf16.mxu0 0
        %2666 = vmatpush1.bf16.msra.mxu0 0
        %2667 = vmatprep.subr.bf16.mxu0 0
        %2668 = vmatpush1.bf16.msra.mxu0 0
        %2669 = vmatprep.subr.bf16.mxu0 0
        %2670 = vmatpush1.bf16.msra.mxu0 0
        %2671 = vmatprep.subr.bf16.mxu0 0
        %2672 = vmatpush1.bf16.msra.mxu0 0
        %2673 = vmatprep.subr.bf16.mxu0 0
        %2674 = vmatpush1.bf16.msra.mxu0 0
        %2675 = vmatprep.subr.bf16.mxu0 0
        %2676 = vmatpush1.bf16.msra.mxu0 0
        %2677 = vmatprep.subr.bf16.mxu0 0
        %2678 = vmatpush1.bf16.msra.mxu0 0
        %2679 = vmatprep.subr.bf16.mxu0 0
        %2680 = vmatpush1.bf16.msra.mxu0 0
        %2681 = vmatprep.subr.bf16.mxu0 0
        %2682 = vmatpush1.bf16.msra.mxu0 0
        %2683 = vmatprep.subr.bf16.mxu0 0
        %2684 = vmatpush1.bf16.msra.mxu0 0
        %2685 = vmatprep.subr.bf16.mxu0 0
        %2686 = vmatpush1.bf16.msra.mxu0 0
        %2687 = vmatprep.subr.bf16.mxu0 0
        %2688 = vmatpush1.bf16.msra.mxu0 0
        %2689 = vmatprep.mubr.bf16.mxu0 0
        %2690 = vmatmul.mubr.bf16.gmra.mrb[0].mxu0 %v2599
        %v2691 = vpop.f32.mrb[0].mxu0
        %v2692 = vadd.f32 %v2639, %v2691
        %v2693 = vpop.f32.mrb[0].mxu0
        %v2694 = vadd.f32 %v2641, %v2693
        %v2695 = vpop.f32.mrb[0].mxu0
        %v2696 = vadd.f32 %v2643, %v2695
        %v2697 = vpop.f32.mrb[0].mxu0
        %v2698 = vadd.f32 %v2645, %v2697
        %2699 = vmatprep.mubr.bf16.mxu0 0
        %2700 = vmatmul.mubr.bf16.gmra.mrb[0].mxu0 %v2602
        %v2701 = vpop.f32.mrb[0].mxu0
        %v2702 = vadd.f32 %v2649, %v2701
        %v2703 = vpop.f32.mrb[0].mxu0
        %v2704 = vadd.f32 %v2651, %v2703
        %v2705 = vpop.f32.mrb[0].mxu0
        %v2706 = vadd.f32 %v2653, %v2705
        %v2707 = vpop.f32.mrb[0].mxu0
        %v2708 = vadd.f32 %v2655, %v2707
        %2709 = vdwg.mxu0
        %v2710 = vadd.f32 %v2098, %v2692
        %v2711 = vadd.f32 %v2099, %v2694
        %v2712 = vadd.f32 %v2100, %v2696
        %v2713 = vadd.f32 %v2101, %v2698
        %v2714 = vadd.f32 %v2102, %v2702
        %v2715 = vadd.f32 %v2103, %v2704
        %v2716 = vadd.f32 %v2104, %v2706
        %v2717 = vadd.f32 %v2105, %v2708
        %2718 = vst [vmem:[%s178] sm:$0xff] %v2710
        %2719 = vst [vmem:[%s178 + $0x8] sm:$0xff] %v2711
        %2720 = vst [vmem:[%s178 + $0x10] sm:$0xff] %v2712
        %2721 = vst [vmem:[%s178 + $0x18] sm:$0xff] %v2713
        %2722 = vst [vmem:[%s178 + $0x20] sm:$0xff] %v2714
        %2723 = vst [vmem:[%s178 + $0x28] sm:$0xff] %v2715
        %2724 = vst [vmem:[%s178 + $0x30] sm:$0xff] %v2716
        %2725 = vst [vmem:[%s178 + $0x38] sm:$0xff] %v2717
        %s2726 = sand.u32 %s94, 1
        %s2727 = scalar_lea.sflag [#allocation6], %s2726
        %s2728 = sand.u32 %s94, 1
        %s2729 = smul.addr %s2728, 64
        %s2730 = scalar_lea.vmem [#allocation7], %s2729
        // Predicated region
        $region44: #{tpu_custom_call.1} parent=31 // pred_check
          %p2731 = pneg %p104
        $region45: #{tpu_custom_call.1} parent=31 // pred_check_branch
          %2733 = sbr.rel (%p2731) target = $region47
        $region46: #{tpu_custom_call.1} parent=31 // pred_region
          %s2735 = ssub.s32 1024, 1024
          %2736 = vsyncadd %s2727, %s2735
          %s2737 = smul.addr %s18, 8
          %s2738 = smul.addr %s2737, 128
          %s2739 = scalar_lea.hbm %s3, %s2738
          %s2740 = sshll.u32 %s2730, 4
          %s2741 = int_to_ptr.vmem [resolvable:$true] %s2740
          %2746 = dma.vmem_to_hbm [thread:$0]  %s2741, 1024, %s2739, %s2727, 256, 256, 16
        $region47: #{tpu_custom_call.1} parent=31 // pred_fallthru
          _
      $region32: #{tpu_custom_call.1} parent=5 // pred_fallthru
        _
      %p2747 = scmp.le.s32.totalorder 2, %s13
      // Predicated region
      $region48: #{tpu_custom_call.1} parent=5 // pred_check
        %p2748 = pneg %p2747
      $region49: #{tpu_custom_call.1} parent=5 // pred_check_branch
        %2750 = sbr.rel (%p2748) target = $region51
      $region50: #{tpu_custom_call.1} parent=5 // pred_region
        %s2751 = ssub.s32 %s13, 2
        // Predicated region
        $region52: #{tpu_custom_call.1} parent=50 // pred_check
          %p2752 = pneg %p110
        $region53: #{tpu_custom_call.1} parent=50 // pred_check_branch
          %2754 = sbr.rel (%p2752) target = $region55
        $region54: #{tpu_custom_call.1} parent=50 // pred_region
          %s2755 = sand.u32 %s95, 1
          %s2756 = scalar_lea.sflag [#allocation6], %s2755
          %s2757 = sand.u32 %s95, 1
          %s2758 = smul.addr %s2757, 64
          %s2759 = scalar_lea.vmem [#allocation7], %s2758
          %2760 = dma.done %s2756, 1024
        $region55: #{tpu_custom_call.1} parent=50 // pred_fallthru
          _
      $region51: #{tpu_custom_call.1} parent=5 // pred_fallthru
        _
    $region6: #{tpu_custom_call.1} parent=1 // loop_footer
      %s17 = sadd.s32 1, %s13
    $region7: #{tpu_custom_call.1} parent=1 // loop_footer_branch
      %12 = sbr.rel target = $region3
    $region8: #{tpu_custom_call.1} parent=1 // loop_exit
      _
    %2761 = vsyncpa [#allocation5], 1
    %s2762 = scalar_lea.sflag [#allocation5], 1
    %2763 = vsyncpa %s2762, 1
    %2764 = vsyncpa [#allocation6], 1
    %s2765 = scalar_lea.sflag [#allocation6], 1
    %2766 = vsyncpa %s2765, 1

</llo_original>
